<compile_context>
chip_gen: v5e
topology: v5e:2x2
jax: 0.10.0
libtpu: 0.0.40
codegen_flags: <defaults>
</compile_context>

<pallas_src>
import math
from functools import partial
from typing import NamedTuple

import jax
import jax.numpy as jnp
from jax.experimental import pallas as pl
from jax.experimental.pallas import tpu as pltpu


# ----------------------------------------------------------------------------------
# Shared math helpers (identical inside the kernel and in the pure-JAX reference)
# ----------------------------------------------------------------------------------
_SQRT_2_OVER_PI = 0.7978845608028654


def _gelu(x):
    # tanh-approximate GELU (EUP tanh inside the kernel).
    return 0.5 * x * (1.0 + jnp.tanh(_SQRT_2_OVER_PI * (x + 0.044715 * x * x * x)))


def _layernorm(x, g, b, eps):
    mu = jnp.mean(x, axis=-1, keepdims=True)
    xc = x - mu
    var = jnp.mean(xc * xc, axis=-1, keepdims=True)
    return xc * jax.lax.rsqrt(var + eps) * g + b


# ----------------------------------------------------------------------------------
# The fused Pallas kernel: one grid step == one encoder layer
# ----------------------------------------------------------------------------------
def _bert_fused_kernel(
    # inputs (resident)
    emb_ref, emb_g_ref, emb_b_ref,
    # inputs (per-layer, streamed: one layer per grid step)
    wqkv_ref, bqkv_ref, wo_ref, bo_ref, ln1g_ref, ln1b_ref,
    wi_ref, bi_ref, wf_ref, bf_ref, ln2g_ref, ln2b_ref,
    # inputs (MLM head, resident)
    mlmw_ref, mlmb_ref, mlmg_ref, mlmbeta_ref, decw_ref, decb_ref,
    # output
    out_ref,
    # scratch: hidden state resident in VMEM across layers
    x_sc,
    *, B, S, nH, eps, scale, apply_softmax):
    l = pl.program_id(0)
    bf16 = jnp.bfloat16
    H = emb_ref.shape[-1]
    dh = H // nH

    def mm(a, w_ref, b_ref):
        # bf16 operands on the MXU, f32 accumulation, f32 bias add.
        return jnp.dot(a.astype(bf16), w_ref[...],
                       preferred_element_type=jnp.float32) + b_ref[...]

    # ---- step 0: embedding-sum -> LayerNorm into the resident hidden state ----
    @pl.when(l == 0)
    def _():
        x_sc[...] = _layernorm(emb_ref[...], emb_g_ref[...], emb_b_ref[...], eps)

    x = x_sc[...]                                                   # (M, H) f32

    # ---- fused QKV projection: one (M,H)x(H,3H) MXU matmul ----
    qkv = mm(x, wqkv_ref, bqkv_ref)                                 # (M, 3H) f32

    # ---- multi-head attention; heads split via static 128-aligned lane slices ----
    ctx_rows = []
    for b in range(B):                                              # static unroll
        r0 = b * S
        heads = []
        for h in range(nH):                                         # static unroll
            c0 = h * dh
            q = qkv[r0:r0 + S, c0:c0 + dh].astype(bf16)             # (S, dh)
            k = qkv[r0:r0 + S, H + c0:H + c0 + dh].astype(bf16)
            v = qkv[r0:r0 + S, 2 * H + c0:2 * H + c0 + dh].astype(bf16)
            s = jax.lax.dot_general(q, k, (((1,), (1,)), ((), ())),
                                    preferred_element_type=jnp.float32) * scale
            s = s - jnp.max(s, axis=-1, keepdims=True)
            p = jnp.exp(s)
            p = p * pl.reciprocal(jnp.sum(p, axis=-1, keepdims=True), approx=True)
            heads.append(jnp.dot(p.astype(bf16), v,
                                 preferred_element_type=jnp.float32))
        ctx_rows.append(jnp.concatenate(heads, axis=-1))            # (S, H)
    ctx = jnp.concatenate(ctx_rows, axis=0)                         # (M, H) f32

    # ---- attention output projection + residual + LayerNorm (fused epilogue) ----
    x1 = _layernorm(mm(ctx, wo_ref, bo_ref) + x, ln1g_ref[...], ln1b_ref[...], eps)

    # ---- FFN: up-proj (+bias+GELU fused), down-proj + residual + LayerNorm ----
    inter = _gelu(mm(x1, wi_ref, bi_ref))                           # (M, I)
    x2 = _layernorm(mm(inter, wf_ref, bf_ref) + x1, ln2g_ref[...], ln2b_ref[...], eps)

    x_sc[...] = x2

    # ---- last step: MLM head (transform+GELU, LN, tied decoder, optional softmax) ----
    @pl.when(l == pl.num_programs(0) - 1)
    def _():
        t = _layernorm(_gelu(mm(x2, mlmw_ref, mlmb_ref)),
                       mlmg_ref[...], mlmbeta_ref[...], eps)
        logits = mm(t, decw_ref, decb_ref)                          # (M, V) lane-dense
        if apply_softmax:
            logits = logits - jnp.max(logits, axis=-1, keepdims=True)
            e = jnp.exp(logits)
            logits = e * pl.reciprocal(jnp.sum(e, axis=-1, keepdims=True), approx=True)
        out_ref[...] = logits.astype(out_ref.dtype)


# ----------------------------------------------------------------------------------
# Model: config, params, forward
# ----------------------------------------------------------------------------------
class BertConfig(NamedTuple):
    vocab_size: int = 512
    hidden_size: int = 256
    num_layers: int = 2
    num_heads: int = 2           # head_dim = 128 -> all head slices lane-aligned
    intermediate_size: int = 1024
    max_position: int = 64
    layer_norm_eps: float = 1e-12


def init_bert_params(key, cfg):
    V, H, I, P, L = (cfg.vocab_size, cfg.hidden_size, cfg.intermediate_size,
                     cfg.max_position, cfg.num_layers)
    keys = iter(jax.random.split(key, 32))
    bf16 = jnp.bfloat16

    def normal(shape, dtype=jnp.float32):
        return (0.02 * jax.random.normal(next(keys), shape, jnp.float32)).astype(dtype)

    params = {
        "word_emb": normal((V, H)),                       # f32 (embedding gather)
        "pos_emb": normal((P, H)),
        "type_emb": normal((2, H)),
        "emb_ln_g": jnp.ones((1, H), jnp.float32),
        "emb_ln_b": jnp.zeros((1, H), jnp.float32),
        # per-layer params stacked on a leading layer axis (streamed by BlockSpec)
        "w_qkv": normal((L, H, 3 * H), bf16), "b_qkv": normal((L, 1, 3 * H)),
        "w_o": normal((L, H, H), bf16), "b_o": normal((L, 1, H)),
        "ln1_g": jnp.ones((L, 1, H), jnp.float32), "ln1_b": jnp.zeros((L, 1, H), jnp.float32),
        "w_i": normal((L, H, I), bf16), "b_i": normal((L, 1, I)),
        "w_f": normal((L, I, H), bf16), "b_f": normal((L, 1, H)),
        "ln2_g": jnp.ones((L, 1, H), jnp.float32), "ln2_b": jnp.zeros((L, 1, H), jnp.float32),
        # MLM head
        "mlm_dense_w": normal((H, H), bf16), "mlm_dense_b": normal((1, H)),
        "mlm_ln_g": jnp.ones((1, H), jnp.float32), "mlm_ln_b": jnp.zeros((1, H), jnp.float32),
        "dec_b": normal((1, V)),
    }
    # tied decoder weight, pre-transposed once at init: lane-dense (H, V) MXU RHS.
    params["dec_w"] = params["word_emb"].T.astype(bf16)
    return params


def bert_forward_pallas(params, ids, *, cfg, apply_softmax):
    """BERT MLM logits/probs (B, S, vocab) from input_ids (B, S) — one pallas_call."""
    B, S = ids.shape
    H, nH, L, V = cfg.hidden_size, cfg.num_heads, cfg.num_layers, cfg.vocab_size
    I = cfg.intermediate_size
    M = B * S
    assert H % nH == 0 and (H // nH) % 128 == 0, "head_dim must be lane-aligned"

    # Embedding gather + position/type add stay in XLA (fused into one tiny op).
    word = jnp.take(params["word_emb"], ids.reshape(-1), axis=0)            # (M, H)
    pos_type = params["pos_emb"][:S] + params["type_emb"][0][None, :]       # (S, H)
    emb = word + jnp.broadcast_to(pos_type[None], (B, S, H)).reshape(M, H)

    kernel = partial(_bert_fused_kernel, B=B, S=S, nH=nH, eps=cfg.layer_norm_eps,
                     scale=1.0 / math.sqrt(H // nH), apply_softmax=apply_softmax)

    def const_spec(shape):
        return pl.BlockSpec(shape, lambda l: (0,) * len(shape))     # fetched once

    def layer_spec(d1, d2):
        return pl.BlockSpec((None, d1, d2), lambda l: (l, 0, 0))    # layer l's slice

    in_specs = [
        const_spec((M, H)), const_spec((1, H)), const_spec((1, H)),  # emb sum + emb LN
        layer_spec(H, 3 * H), layer_spec(1, 3 * H),                  # fused QKV
        layer_spec(H, H), layer_spec(1, H),                          # attn out proj
        layer_spec(1, H), layer_spec(1, H),                          # LN1
        layer_spec(H, I), layer_spec(1, I),                          # FFN up
        layer_spec(I, H), layer_spec(1, H),                          # FFN down
        layer_spec(1, H), layer_spec(1, H),                          # LN2
        const_spec((H, H)), const_spec((1, H)),                      # MLM transform
        const_spec((1, H)), const_spec((1, H)),                      # MLM LN
        const_spec((H, V)), const_spec((1, V)),                      # tied decoder
    ]

    out = pl.pallas_call(
        kernel,
        out_shape=jax.ShapeDtypeStruct((M, V), jnp.float32),
        grid_spec=pltpu.PrefetchScalarGridSpec(
            num_scalar_prefetch=0,
            grid=(L,),                                 # one step per encoder layer
            in_specs=in_specs,
            out_specs=pl.BlockSpec((M, V), lambda l: (0, 0)),
            scratch_shapes=[pltpu.VMEM((M, H), jnp.float32)],  # resident hidden state
        ),
        compiler_params=pltpu.CompilerParams(
            dimension_semantics=("arbitrary",)),       # layers are sequential
    )(emb, params["emb_ln_g"], params["emb_ln_b"],
      params["w_qkv"], params["b_qkv"], params["w_o"], params["b_o"],
      params["ln1_g"], params["ln1_b"],
      params["w_i"], params["b_i"], params["w_f"], params["b_f"],
      params["ln2_g"], params["ln2_b"],
      params["mlm_dense_w"], params["mlm_dense_b"],
      params["mlm_ln_g"], params["mlm_ln_b"],
      params["dec_w"], params["dec_b"])
    return out.reshape(B, S, V)


class BertForMLMPallas:
    """Mirrors BertForMLM.forward(x, apply_softmax): returns (logits_or_probs, x[0])."""

    def __init__(self, key, cfg):
        self.cfg = cfg
        self.params = init_bert_params(key, cfg)
        self._fwd = {
            flag: jax.jit(partial(bert_forward_pallas, cfg=cfg, apply_softmax=flag))
            for flag in (False, True)
        }

    def __call__(self, x, apply_softmax=False):
        ids = x[0]
        return self._fwd[bool(apply_softmax)](self.params, ids), ids


# ----------------------------------------------------------------------------------
# Pure-JAX reference (same math / same bf16 operand casts) for correctness checking
# ----------------------------------------------------------------------------------
def _bert_forward_reference(params, ids, cfg, apply_softmax=False):
    B, S = ids.shape
    H, nH, L, V = cfg.hidden_size, cfg.num_heads, cfg.num_layers, cfg.vocab_size
    dh = H // nH
    M = B * S
    eps = cfg.layer_norm_eps
    bf16 = jnp.bfloat16

    def ln(x, g, b):
        return _layernorm(x, g, b, eps)

    def dense(x, w, b):
        return jnp.dot(x.astype(bf16), w.astype(bf16),
                       preferred_element_type=jnp.float32) + b

    word = jnp.take(params["word_emb"], ids.reshape(-1), axis=0)
    pos_type = params["pos_emb"][:S] + params["type_emb"][0][None, :]
    x = ln(word + jnp.broadcast_to(pos_type[None], (B, S, H)).reshape(M, H),
           params["emb_ln_g"], params["emb_ln_b"])

    scale = 1.0 / math.sqrt(dh)
    for l in range(L):
        qkv = dense(x, params["w_qkv"][l], params["b_qkv"][l])
        ctx_rows = []
        for b in range(B):
            r0 = b * S
            heads = []
            for h in range(nH):
                c0 = h * dh
                q = qkv[r0:r0 + S, c0:c0 + dh].astype(bf16)
                k = qkv[r0:r0 + S, H + c0:H + c0 + dh].astype(bf16)
                v = qkv[r0:r0 + S, 2 * H + c0:2 * H + c0 + dh].astype(bf16)
                s = jax.lax.dot_general(q, k, (((1,), (1,)), ((), ())),
                                        preferred_element_type=jnp.float32) * scale
                p = jax.nn.softmax(s, axis=-1)
                heads.append(jnp.dot(p.astype(bf16), v,
                                     preferred_element_type=jnp.float32))
            ctx_rows.append(jnp.concatenate(heads, -1))
        ctx = jnp.concatenate(ctx_rows, 0)
        x1 = ln(dense(ctx, params["w_o"][l], params["b_o"][l]) + x,
                params["ln1_g"][l], params["ln1_b"][l])
        inter = _gelu(dense(x1, params["w_i"][l], params["b_i"][l]))
        x = ln(dense(inter, params["w_f"][l], params["b_f"][l]) + x1,
               params["ln2_g"][l], params["ln2_b"][l])

    t = ln(_gelu(dense(x, params["mlm_dense_w"], params["mlm_dense_b"])),
           params["mlm_ln_g"], params["mlm_ln_b"])
    logits = dense(t, params["dec_w"], params["dec_b"]).reshape(B, S, V)
    return jax.nn.softmax(logits, -1) if apply_softmax else logits


# ----------------------------------------------------------------------------------
# Main
# ----------------------------------------------------------------------------------
if __name__ == "__main__":
    key = jax.random.PRNGKey(0)
    k_params, k_ids = jax.random.split(key)

    cfg = BertConfig(vocab_size=512, hidden_size=256, num_layers=2, num_heads=2,
                     intermediate_size=1024, max_position=64)
    batch, seq = 2, 8

    model = BertForMLMPallas(k_params, cfg)
    ids = jax.random.randint(k_ids, (batch, seq), 0, cfg.vocab_size, dtype=jnp.int32)

    # forward (mirrors BertForMLM.forward((input_ids,), apply_softmax=False))
    logits, ids_out = model((ids,), apply_softmax=False)
    logits = jax.block_until_ready(logits)

    assert logits.shape == (batch, seq, cfg.vocab_size)
    assert bool(jnp.array_equal(ids_out, ids))

    # correctness vs pure-JAX reference (same bf16 operand casts, f32 accumulation)
    ref_logits = _bert_forward_reference(model.params, ids, cfg)
    max_err = float(jnp.max(jnp.abs(logits - ref_logits)))
    assert jnp.allclose(logits, ref_logits, atol=1e-2, rtol=1e-2), max_err

    # apply_softmax=True branch (fused in-kernel softmax vs softmax of Pallas logits)
    probs, _ = model((ids,), apply_softmax=True)
    probs = jax.block_until_ready(probs)
    assert jnp.allclose(probs, jax.nn.softmax(logits, axis=-1), atol=2e-3, rtol=1e-2)
    assert jnp.allclose(jnp.sum(probs, axis=-1), 1.0, atol=5e-3)

    print("KERNEL_OK")
</pallas_src>

<mosaic_0001>
module attributes {stable_mosaic.version = 11 : i64} {
  func.func @_bert_fused_kernel(%arg0: i32, %arg1: memref<16x256xf32, #tpu.memory_space<vmem>>, %arg2: memref<1x256xf32, #tpu.memory_space<vmem>>, %arg3: memref<1x256xf32, #tpu.memory_space<vmem>>, %arg4: memref<1x256x768xbf16, #tpu.memory_space<vmem>>, %arg5: memref<1x1x768xf32, #tpu.memory_space<vmem>>, %arg6: memref<1x256x256xbf16, #tpu.memory_space<vmem>>, %arg7: memref<1x1x256xf32, #tpu.memory_space<vmem>>, %arg8: memref<1x1x256xf32, #tpu.memory_space<vmem>>, %arg9: memref<1x1x256xf32, #tpu.memory_space<vmem>>, %arg10: memref<1x256x1024xbf16, #tpu.memory_space<vmem>>, %arg11: memref<1x1x1024xf32, #tpu.memory_space<vmem>>, %arg12: memref<1x1024x256xbf16, #tpu.memory_space<vmem>>, %arg13: memref<1x1x256xf32, #tpu.memory_space<vmem>>, %arg14: memref<1x1x256xf32, #tpu.memory_space<vmem>>, %arg15: memref<1x1x256xf32, #tpu.memory_space<vmem>>, %arg16: memref<256x256xbf16, #tpu.memory_space<vmem>>, %arg17: memref<1x256xf32, #tpu.memory_space<vmem>>, %arg18: memref<1x256xf32, #tpu.memory_space<vmem>>, %arg19: memref<1x256xf32, #tpu.memory_space<vmem>>, %arg20: memref<256x512xbf16, #tpu.memory_space<vmem>>, %arg21: memref<1x512xf32, #tpu.memory_space<vmem>>, %arg22: memref<16x512xf32, #tpu.memory_space<vmem>>, %arg23: memref<16x256xf32, #tpu.memory_space<vmem>>) attributes {dimension_semantics = [#tpu.dimension_semantics<arbitrary>], iteration_bounds = array<i64: 2>, scalar_prefetch = 0 : i64, scratch_operands = 1 : i64, tpu.core_type = #tpu.core_type<tc>, window_params = [{pipeline_mode = #tpu.pipeline_mode<synchronous>, transform_indices = @transform_0, window_bounds = array<i64: 16, 256>}, {pipeline_mode = #tpu.pipeline_mode<synchronous>, transform_indices = @transform_1, window_bounds = array<i64: 1, 256>}, {pipeline_mode = #tpu.pipeline_mode<synchronous>, transform_indices = @transform_2, window_bounds = array<i64: 1, 256>}, {transform_indices = @transform_3, window_bounds = array<i64: 1, 256, 768>}, {transform_indices = @transform_4, window_bounds = array<i64: 1, 1, 768>}, {transform_indices = @transform_5, window_bounds = array<i64: 1, 256, 256>}, {transform_indices = @transform_6, window_bounds = array<i64: 1, 1, 256>}, {transform_indices = @transform_7, window_bounds = array<i64: 1, 1, 256>}, {transform_indices = @transform_8, window_bounds = array<i64: 1, 1, 256>}, {transform_indices = @transform_9, window_bounds = array<i64: 1, 256, 1024>}, {transform_indices = @transform_10, window_bounds = array<i64: 1, 1, 1024>}, {transform_indices = @transform_11, window_bounds = array<i64: 1, 1024, 256>}, {transform_indices = @transform_12, window_bounds = array<i64: 1, 1, 256>}, {transform_indices = @transform_13, window_bounds = array<i64: 1, 1, 256>}, {transform_indices = @transform_14, window_bounds = array<i64: 1, 1, 256>}, {pipeline_mode = #tpu.pipeline_mode<synchronous>, transform_indices = @transform_15, window_bounds = array<i64: 256, 256>}, {pipeline_mode = #tpu.pipeline_mode<synchronous>, transform_indices = @transform_16, window_bounds = array<i64: 1, 256>}, {pipeline_mode = #tpu.pipeline_mode<synchronous>, transform_indices = @transform_17, window_bounds = array<i64: 1, 256>}, {pipeline_mode = #tpu.pipeline_mode<synchronous>, transform_indices = @transform_18, window_bounds = array<i64: 1, 256>}, {pipeline_mode = #tpu.pipeline_mode<synchronous>, transform_indices = @transform_19, window_bounds = array<i64: 256, 512>}, {pipeline_mode = #tpu.pipeline_mode<synchronous>, transform_indices = @transform_20, window_bounds = array<i64: 1, 512>}, {pipeline_mode = #tpu.pipeline_mode<synchronous>, transform_indices = @transform_21, window_bounds = array<i64: 16, 512>}]} {
    %c0_i32 = arith.constant 0 : i32
    %0 = arith.cmpi eq, %arg0, %c0_i32 : i32
    %1 = arith.extui %0 : i1 to i32
    %c0_i32_0 = arith.constant 0 : i32
    %2 = arith.cmpi ne, %1, %c0_i32_0 : i32
    scf.if %2 {
      %c0_78 = arith.constant 0 : index
      %c0_79 = arith.constant 0 : index
      %190 = vector.load %arg1[%c0_78, %c0_79] : memref<16x256xf32, #tpu.memory_space<vmem>>, vector<16x256xf32>
      %c0_80 = arith.constant 0 : index
      %c0_81 = arith.constant 0 : index
      %191 = vector.load %arg2[%c0_80, %c0_81] : memref<1x256xf32, #tpu.memory_space<vmem>>, vector<1x256xf32>
      %c0_82 = arith.constant 0 : index
      %c0_83 = arith.constant 0 : index
      %192 = vector.load %arg3[%c0_82, %c0_83] : memref<1x256xf32, #tpu.memory_space<vmem>>, vector<1x256xf32>
      %cst_84 = arith.constant dense<0.000000e+00> : vector<16xf32>
      %193 = vector.multi_reduction <add>, %190, %cst_84 [1] : vector<16x256xf32> to vector<16xf32>
      %194 = vector.shape_cast %193 : vector<16xf32> to vector<16x1xf32>
      %cst_85 = arith.constant 2.560000e+02 : f32
      %195 = vector.broadcast %cst_85 : f32 to vector<16x1xf32>
      %196 = arith.divf %194, %195 : vector<16x1xf32>
      %197 = vector.broadcast %196 : vector<16x1xf32> to vector<16x256xf32>
      %198 = arith.subf %190, %197 : vector<16x256xf32>
      %199 = arith.mulf %198, %198 : vector<16x256xf32>
      %cst_86 = arith.constant dense<0.000000e+00> : vector<16xf32>
      %200 = vector.multi_reduction <add>, %199, %cst_86 [1] : vector<16x256xf32> to vector<16xf32>
      %201 = vector.shape_cast %200 : vector<16xf32> to vector<16x1xf32>
      %cst_87 = arith.constant 2.560000e+02 : f32
      %202 = vector.broadcast %cst_87 : f32 to vector<16x1xf32>
      %203 = arith.divf %201, %202 : vector<16x1xf32>
      %cst_88 = arith.constant 9.99999996E-13 : f32
      %204 = vector.broadcast %cst_88 : f32 to vector<16x1xf32>
      %205 = arith.addf %203, %204 : vector<16x1xf32>
      %206 = math.rsqrt %205 : vector<16x1xf32>
      %207 = vector.broadcast %206 : vector<16x1xf32> to vector<16x256xf32>
      %208 = arith.mulf %198, %207 : vector<16x256xf32>
      %209 = vector.broadcast %191 : vector<1x256xf32> to vector<16x256xf32>
      %210 = arith.mulf %208, %209 : vector<16x256xf32>
      %211 = vector.broadcast %192 : vector<1x256xf32> to vector<16x256xf32>
      %212 = arith.addf %210, %211 : vector<16x256xf32>
      %c0_89 = arith.constant 0 : index
      %c0_90 = arith.constant 0 : index
      %213 = vector.load %arg23[%c0_89, %c0_90] : memref<16x256xf32, #tpu.memory_space<vmem>>, vector<16x256xf32>
      tpu.vector_store %arg23[%c0_89, %c0_90], %212 {strides = array<i32>} : memref<16x256xf32, #tpu.memory_space<vmem>>, vector<16x256xf32>,
    } else {
    }
    %c0 = arith.constant 0 : index
    %c0_1 = arith.constant 0 : index
    %3 = vector.load %arg23[%c0, %c0_1] : memref<16x256xf32, #tpu.memory_space<vmem>>, vector<16x256xf32>
    %4 = arith.truncf %3 : vector<16x256xf32> to vector<16x256xbf16>
    %c0_2 = arith.constant 0 : index
    %c0_3 = arith.constant 0 : index
    %c0_4 = arith.constant 0 : index
    %5 = vector.load %arg4[%c0_2, %c0_3, %c0_4] : memref<1x256x768xbf16, #tpu.memory_space<vmem>>, vector<1x256x768xbf16>
    %6 = vector.shape_cast %5 : vector<1x256x768xbf16> to vector<256x768xbf16>
    %cst = arith.constant dense<0.000000e+00> : vector<16x768xf32>
    %7 = tpu.matmul %4, %6, %cst {dimension_numbers = #tpu.dot_dimension_numbers<[1], [0], [0], [1], [0, 0, 1, 1], [], []>} : vector<16x256xbf16>, vector<256x768xbf16>, vector<16x768xf32> -> vector<16x768xf32>
    %c0_5 = arith.constant 0 : index
    %c0_6 = arith.constant 0 : index
    %c0_7 = arith.constant 0 : index
    %8 = vector.load %arg5[%c0_5, %c0_6, %c0_7] : memref<1x1x768xf32, #tpu.memory_space<vmem>>, vector<1x1x768xf32>
    %9 = vector.shape_cast %8 : vector<1x1x768xf32> to vector<1x768xf32>
    %10 = vector.broadcast %9 : vector<1x768xf32> to vector<16x768xf32>
    %11 = arith.addf %7, %10 : vector<16x768xf32>
    %12 = vector.extract_strided_slice %11 {offsets = [0, 0], sizes = [8, 128], strides = [1, 1]} : vector<16x768xf32> to vector<8x128xf32>
    %13 = arith.truncf %12 : vector<8x128xf32> to vector<8x128xbf16>
    %14 = vector.extract_strided_slice %11 {offsets = [0, 256], sizes = [8, 128], strides = [1, 1]} : vector<16x768xf32> to vector<8x128xf32>
    %15 = arith.truncf %14 : vector<8x128xf32> to vector<8x128xbf16>
    %16 = vector.extract_strided_slice %11 {offsets = [0, 512], sizes = [8, 128], strides = [1, 1]} : vector<16x768xf32> to vector<8x128xf32>
    %17 = arith.truncf %16 : vector<8x128xf32> to vector<8x128xbf16>
    %cst_8 = arith.constant dense<0.000000e+00> : vector<8x8xf32>
    %18 = tpu.matmul %13, %15, %cst_8 {dimension_numbers = #tpu.dot_dimension_numbers<[1], [1], [0], [0], [0, 0, 1, 0], [], []>} : vector<8x128xbf16>, vector<8x128xbf16>, vector<8x8xf32> -> vector<8x8xf32>
    %cst_9 = arith.constant 0.0883883461 : f32
    %19 = vector.broadcast %cst_9 : f32 to vector<8x8xf32>
    %20 = arith.mulf %18, %19 : vector<8x8xf32>
    %cst_10 = arith.constant dense<0xFF800000> : vector<8xf32>
    %21 = vector.multi_reduction <maximumf>, %20, %cst_10 [1] : vector<8x8xf32> to vector<8xf32>
    %22 = vector.shape_cast %21 : vector<8xf32> to vector<8x1xf32>
    %23 = vector.broadcast %22 : vector<8x1xf32> to vector<8x8xf32>
    %24 = arith.subf %20, %23 : vector<8x8xf32>
    %25 = math.exp %24 : vector<8x8xf32>
    %cst_11 = arith.constant dense<0.000000e+00> : vector<8xf32>
    %26 = vector.multi_reduction <add>, %25, %cst_11 [1] : vector<8x8xf32> to vector<8xf32>
    %27 = vector.shape_cast %26 : vector<8xf32> to vector<8x1xf32>
    %28 = tpu.reciprocal %27 {approx = true} : vector<8x1xf32> -> vector<8x1xf32>
    %29 = vector.broadcast %28 : vector<8x1xf32> to vector<8x8xf32>
    %30 = arith.mulf %25, %29 : vector<8x8xf32>
    %31 = arith.truncf %30 : vector<8x8xf32> to vector<8x8xbf16>
    %cst_12 = arith.constant dense<0.000000e+00> : vector<8x128xf32>
    %32 = tpu.matmul %31, %17, %cst_12 {dimension_numbers = #tpu.dot_dimension_numbers<[1], [0], [0], [1], [0, 0, 1, 1], [], []>} : vector<8x8xbf16>, vector<8x128xbf16>, vector<8x128xf32> -> vector<8x128xf32>
    %33 = vector.extract_strided_slice %11 {offsets = [0, 128], sizes = [8, 128], strides = [1, 1]} : vector<16x768xf32> to vector<8x128xf32>
    %34 = arith.truncf %33 : vector<8x128xf32> to vector<8x128xbf16>
    %35 = vector.extract_strided_slice %11 {offsets = [0, 384], sizes = [8, 128], strides = [1, 1]} : vector<16x768xf32> to vector<8x128xf32>
    %36 = arith.truncf %35 : vector<8x128xf32> to vector<8x128xbf16>
    %37 = vector.extract_strided_slice %11 {offsets = [0, 640], sizes = [8, 128], strides = [1, 1]} : vector<16x768xf32> to vector<8x128xf32>
    %38 = arith.truncf %37 : vector<8x128xf32> to vector<8x128xbf16>
    %cst_13 = arith.constant dense<0.000000e+00> : vector<8x8xf32>
    %39 = tpu.matmul %34, %36, %cst_13 {dimension_numbers = #tpu.dot_dimension_numbers<[1], [1], [0], [0], [0, 0, 1, 0], [], []>} : vector<8x128xbf16>, vector<8x128xbf16>, vector<8x8xf32> -> vector<8x8xf32>
    %cst_14 = arith.constant 0.0883883461 : f32
    %40 = vector.broadcast %cst_14 : f32 to vector<8x8xf32>
    %41 = arith.mulf %39, %40 : vector<8x8xf32>
    %cst_15 = arith.constant dense<0xFF800000> : vector<8xf32>
    %42 = vector.multi_reduction <maximumf>, %41, %cst_15 [1] : vector<8x8xf32> to vector<8xf32>
    %43 = vector.shape_cast %42 : vector<8xf32> to vector<8x1xf32>
    %44 = vector.broadcast %43 : vector<8x1xf32> to vector<8x8xf32>
    %45 = arith.subf %41, %44 : vector<8x8xf32>
    %46 = math.exp %45 : vector<8x8xf32>
    %cst_16 = arith.constant dense<0.000000e+00> : vector<8xf32>
    %47 = vector.multi_reduction <add>, %46, %cst_16 [1] : vector<8x8xf32> to vector<8xf32>
    %48 = vector.shape_cast %47 : vector<8xf32> to vector<8x1xf32>
    %49 = tpu.reciprocal %48 {approx = true} : vector<8x1xf32> -> vector<8x1xf32>
    %50 = vector.broadcast %49 : vector<8x1xf32> to vector<8x8xf32>
    %51 = arith.mulf %46, %50 : vector<8x8xf32>
    %52 = arith.truncf %51 : vector<8x8xf32> to vector<8x8xbf16>
    %cst_17 = arith.constant dense<0.000000e+00> : vector<8x128xf32>
    %53 = tpu.matmul %52, %38, %cst_17 {dimension_numbers = #tpu.dot_dimension_numbers<[1], [0], [0], [1], [0, 0, 1, 1], [], []>} : vector<8x8xbf16>, vector<8x128xbf16>, vector<8x128xf32> -> vector<8x128xf32>
    %54 = tpu.concatenate %32, %53 in 1 : vector<8x128xf32>, vector<8x128xf32> -> vector<8x256xf32>
    %55 = vector.extract_strided_slice %11 {offsets = [8, 0], sizes = [8, 128], strides = [1, 1]} : vector<16x768xf32> to vector<8x128xf32>
    %56 = arith.truncf %55 : vector<8x128xf32> to vector<8x128xbf16>
    %57 = vector.extract_strided_slice %11 {offsets = [8, 256], sizes = [8, 128], strides = [1, 1]} : vector<16x768xf32> to vector<8x128xf32>
    %58 = arith.truncf %57 : vector<8x128xf32> to vector<8x128xbf16>
    %59 = vector.extract_strided_slice %11 {offsets = [8, 512], sizes = [8, 128], strides = [1, 1]} : vector<16x768xf32> to vector<8x128xf32>
    %60 = arith.truncf %59 : vector<8x128xf32> to vector<8x128xbf16>
    %cst_18 = arith.constant dense<0.000000e+00> : vector<8x8xf32>
    %61 = tpu.matmul %56, %58, %cst_18 {dimension_numbers = #tpu.dot_dimension_numbers<[1], [1], [0], [0], [0, 0, 1, 0], [], []>} : vector<8x128xbf16>, vector<8x128xbf16>, vector<8x8xf32> -> vector<8x8xf32>
    %cst_19 = arith.constant 0.0883883461 : f32
    %62 = vector.broadcast %cst_19 : f32 to vector<8x8xf32>
    %63 = arith.mulf %61, %62 : vector<8x8xf32>
    %cst_20 = arith.constant dense<0xFF800000> : vector<8xf32>
    %64 = vector.multi_reduction <maximumf>, %63, %cst_20 [1] : vector<8x8xf32> to vector<8xf32>
    %65 = vector.shape_cast %64 : vector<8xf32> to vector<8x1xf32>
    %66 = vector.broadcast %65 : vector<8x1xf32> to vector<8x8xf32>
    %67 = arith.subf %63, %66 : vector<8x8xf32>
    %68 = math.exp %67 : vector<8x8xf32>
    %cst_21 = arith.constant dense<0.000000e+00> : vector<8xf32>
    %69 = vector.multi_reduction <add>, %68, %cst_21 [1] : vector<8x8xf32> to vector<8xf32>
    %70 = vector.shape_cast %69 : vector<8xf32> to vector<8x1xf32>
    %71 = tpu.reciprocal %70 {approx = true} : vector<8x1xf32> -> vector<8x1xf32>
    %72 = vector.broadcast %71 : vector<8x1xf32> to vector<8x8xf32>
    %73 = arith.mulf %68, %72 : vector<8x8xf32>
    %74 = arith.truncf %73 : vector<8x8xf32> to vector<8x8xbf16>
    %cst_22 = arith.constant dense<0.000000e+00> : vector<8x128xf32>
    %75 = tpu.matmul %74, %60, %cst_22 {dimension_numbers = #tpu.dot_dimension_numbers<[1], [0], [0], [1], [0, 0, 1, 1], [], []>} : vector<8x8xbf16>, vector<8x128xbf16>, vector<8x128xf32> -> vector<8x128xf32>
    %76 = vector.extract_strided_slice %11 {offsets = [8, 128], sizes = [8, 128], strides = [1, 1]} : vector<16x768xf32> to vector<8x128xf32>
    %77 = arith.truncf %76 : vector<8x128xf32> to vector<8x128xbf16>
    %78 = vector.extract_strided_slice %11 {offsets = [8, 384], sizes = [8, 128], strides = [1, 1]} : vector<16x768xf32> to vector<8x128xf32>
    %79 = arith.truncf %78 : vector<8x128xf32> to vector<8x128xbf16>
    %80 = vector.extract_strided_slice %11 {offsets = [8, 640], sizes = [8, 128], strides = [1, 1]} : vector<16x768xf32> to vector<8x128xf32>
    %81 = arith.truncf %80 : vector<8x128xf32> to vector<8x128xbf16>
    %cst_23 = arith.constant dense<0.000000e+00> : vector<8x8xf32>
    %82 = tpu.matmul %77, %79, %cst_23 {dimension_numbers = #tpu.dot_dimension_numbers<[1], [1], [0], [0], [0, 0, 1, 0], [], []>} : vector<8x128xbf16>, vector<8x128xbf16>, vector<8x8xf32> -> vector<8x8xf32>
    %cst_24 = arith.constant 0.0883883461 : f32
    %83 = vector.broadcast %cst_24 : f32 to vector<8x8xf32>
    %84 = arith.mulf %82, %83 : vector<8x8xf32>
    %cst_25 = arith.constant dense<0xFF800000> : vector<8xf32>
    %85 = vector.multi_reduction <maximumf>, %84, %cst_25 [1] : vector<8x8xf32> to vector<8xf32>
    %86 = vector.shape_cast %85 : vector<8xf32> to vector<8x1xf32>
    %87 = vector.broadcast %86 : vector<8x1xf32> to vector<8x8xf32>
    %88 = arith.subf %84, %87 : vector<8x8xf32>
    %89 = math.exp %88 : vector<8x8xf32>
    %cst_26 = arith.constant dense<0.000000e+00> : vector<8xf32>
    %90 = vector.multi_reduction <add>, %89, %cst_26 [1] : vector<8x8xf32> to vector<8xf32>
    %91 = vector.shape_cast %90 : vector<8xf32> to vector<8x1xf32>
    %92 = tpu.reciprocal %91 {approx = true} : vector<8x1xf32> -> vector<8x1xf32>
    %93 = vector.broadcast %92 : vector<8x1xf32> to vector<8x8xf32>
    %94 = arith.mulf %89, %93 : vector<8x8xf32>
    %95 = arith.truncf %94 : vector<8x8xf32> to vector<8x8xbf16>
    %cst_27 = arith.constant dense<0.000000e+00> : vector<8x128xf32>
    %96 = tpu.matmul %95, %81, %cst_27 {dimension_numbers = #tpu.dot_dimension_numbers<[1], [0], [0], [1], [0, 0, 1, 1], [], []>} : vector<8x8xbf16>, vector<8x128xbf16>, vector<8x128xf32> -> vector<8x128xf32>
    %97 = tpu.concatenate %75, %96 in 1 : vector<8x128xf32>, vector<8x128xf32> -> vector<8x256xf32>
    %98 = tpu.concatenate %54, %97 in 0 : vector<8x256xf32>, vector<8x256xf32> -> vector<16x256xf32>
    %99 = arith.truncf %98 : vector<16x256xf32> to vector<16x256xbf16>
    %c0_28 = arith.constant 0 : index
    %c0_29 = arith.constant 0 : index
    %c0_30 = arith.constant 0 : index
    %100 = vector.load %arg6[%c0_28, %c0_29, %c0_30] : memref<1x256x256xbf16, #tpu.memory_space<vmem>>, vector<1x256x256xbf16>
    %101 = vector.shape_cast %100 : vector<1x256x256xbf16> to vector<256x256xbf16>
    %cst_31 = arith.constant dense<0.000000e+00> : vector<16x256xf32>
    %102 = tpu.matmul %99, %101, %cst_31 {dimension_numbers = #tpu.dot_dimension_numbers<[1], [0], [0], [1], [0, 0, 1, 1], [], []>} : vector<16x256xbf16>, vector<256x256xbf16>, vector<16x256xf32> -> vector<16x256xf32>
    %c0_32 = arith.constant 0 : index
    %c0_33 = arith.constant 0 : index
    %c0_34 = arith.constant 0 : index
    %103 = vector.load %arg7[%c0_32, %c0_33, %c0_34] : memref<1x1x256xf32, #tpu.memory_space<vmem>>, vector<1x1x256xf32>
    %104 = vector.shape_cast %103 : vector<1x1x256xf32> to vector<1x256xf32>
    %105 = vector.broadcast %104 : vector<1x256xf32> to vector<16x256xf32>
    %106 = arith.addf %102, %105 : vector<16x256xf32>
    %107 = arith.addf %106, %3 : vector<16x256xf32>
    %c0_35 = arith.constant 0 : index
    %c0_36 = arith.constant 0 : index
    %c0_37 = arith.constant 0 : index
    %108 = vector.load %arg8[%c0_35, %c0_36, %c0_37] : memref<1x1x256xf32, #tpu.memory_space<vmem>>, vector<1x1x256xf32>
    %109 = vector.shape_cast %108 : vector<1x1x256xf32> to vector<1x256xf32>
    %c0_38 = arith.constant 0 : index
    %c0_39 = arith.constant 0 : index
    %c0_40 = arith.constant 0 : index
    %110 = vector.load %arg9[%c0_38, %c0_39, %c0_40] : memref<1x1x256xf32, #tpu.memory_space<vmem>>, vector<1x1x256xf32>
    %111 = vector.shape_cast %110 : vector<1x1x256xf32> to vector<1x256xf32>
    %cst_41 = arith.constant dense<0.000000e+00> : vector<16xf32>
    %112 = vector.multi_reduction <add>, %107, %cst_41 [1] : vector<16x256xf32> to vector<16xf32>
    %113 = vector.shape_cast %112 : vector<16xf32> to vector<16x1xf32>
    %cst_42 = arith.constant 2.560000e+02 : f32
    %114 = vector.broadcast %cst_42 : f32 to vector<16x1xf32>
    %115 = arith.divf %113, %114 : vector<16x1xf32>
    %116 = vector.broadcast %115 : vector<16x1xf32> to vector<16x256xf32>
    %117 = arith.subf %107, %116 : vector<16x256xf32>
    %118 = arith.mulf %117, %117 : vector<16x256xf32>
    %cst_43 = arith.constant dense<0.000000e+00> : vector<16xf32>
    %119 = vector.multi_reduction <add>, %118, %cst_43 [1] : vector<16x256xf32> to vector<16xf32>
    %120 = vector.shape_cast %119 : vector<16xf32> to vector<16x1xf32>
    %cst_44 = arith.constant 2.560000e+02 : f32
    %121 = vector.broadcast %cst_44 : f32 to vector<16x1xf32>
    %122 = arith.divf %120, %121 : vector<16x1xf32>
    %cst_45 = arith.constant 9.99999996E-13 : f32
    %123 = vector.broadcast %cst_45 : f32 to vector<16x1xf32>
    %124 = arith.addf %122, %123 : vector<16x1xf32>
    %125 = math.rsqrt %124 : vector<16x1xf32>
    %126 = vector.broadcast %125 : vector<16x1xf32> to vector<16x256xf32>
    %127 = arith.mulf %117, %126 : vector<16x256xf32>
    %128 = vector.broadcast %109 : vector<1x256xf32> to vector<16x256xf32>
    %129 = arith.mulf %127, %128 : vector<16x256xf32>
    %130 = vector.broadcast %111 : vector<1x256xf32> to vector<16x256xf32>
    %131 = arith.addf %129, %130 : vector<16x256xf32>
    %132 = arith.truncf %131 : vector<16x256xf32> to vector<16x256xbf16>
    %c0_46 = arith.constant 0 : index
    %c0_47 = arith.constant 0 : index
    %c0_48 = arith.constant 0 : index
    %133 = vector.load %arg10[%c0_46, %c0_47, %c0_48] : memref<1x256x1024xbf16, #tpu.memory_space<vmem>>, vector<1x256x1024xbf16>
    %134 = vector.shape_cast %133 : vector<1x256x1024xbf16> to vector<256x1024xbf16>
    %cst_49 = arith.constant dense<0.000000e+00> : vector<16x1024xf32>
    %135 = tpu.matmul %132, %134, %cst_49 {dimension_numbers = #tpu.dot_dimension_numbers<[1], [0], [0], [1], [0, 0, 1, 1], [], []>} : vector<16x256xbf16>, vector<256x1024xbf16>, vector<16x1024xf32> -> vector<16x1024xf32>
    %c0_50 = arith.constant 0 : index
    %c0_51 = arith.constant 0 : index
    %c0_52 = arith.constant 0 : index
    %136 = vector.load %arg11[%c0_50, %c0_51, %c0_52] : memref<1x1x1024xf32, #tpu.memory_space<vmem>>, vector<1x1x1024xf32>
    %137 = vector.shape_cast %136 : vector<1x1x1024xf32> to vector<1x1024xf32>
    %138 = vector.broadcast %137 : vector<1x1024xf32> to vector<16x1024xf32>
    %139 = arith.addf %135, %138 : vector<16x1024xf32>
    %cst_53 = arith.constant 5.000000e-01 : f32
    %140 = vector.broadcast %cst_53 : f32 to vector<16x1024xf32>
    %141 = arith.mulf %140, %139 : vector<16x1024xf32>
    %cst_54 = arith.constant 4.471500e-02 : f32
    %142 = vector.broadcast %cst_54 : f32 to vector<16x1024xf32>
    %143 = arith.mulf %142, %139 : vector<16x1024xf32>
    %144 = arith.mulf %143, %139 : vector<16x1024xf32>
    %145 = arith.mulf %144, %139 : vector<16x1024xf32>
    %146 = arith.addf %139, %145 : vector<16x1024xf32>
    %cst_55 = arith.constant 0.797884583 : f32
    %147 = vector.broadcast %cst_55 : f32 to vector<16x1024xf32>
    %148 = arith.mulf %147, %146 : vector<16x1024xf32>
    %149 = math.tanh %148 : vector<16x1024xf32>
    %cst_56 = arith.constant 1.000000e+00 : f32
    %150 = vector.broadcast %cst_56 : f32 to vector<16x1024xf32>
    %151 = arith.addf %150, %149 : vector<16x1024xf32>
    %152 = arith.mulf %141, %151 : vector<16x1024xf32>
    %153 = arith.truncf %152 : vector<16x1024xf32> to vector<16x1024xbf16>
    %c0_57 = arith.constant 0 : index
    %c0_58 = arith.constant 0 : index
    %c0_59 = arith.constant 0 : index
    %154 = vector.load %arg12[%c0_57, %c0_58, %c0_59] : memref<1x1024x256xbf16, #tpu.memory_space<vmem>>, vector<1x1024x256xbf16>
    %155 = vector.shape_cast %154 : vector<1x1024x256xbf16> to vector<1024x256xbf16>
    %cst_60 = arith.constant dense<0.000000e+00> : vector<16x256xf32>
    %156 = tpu.matmul %153, %155, %cst_60 {dimension_numbers = #tpu.dot_dimension_numbers<[1], [0], [0], [1], [0, 0, 1, 1], [], []>} : vector<16x1024xbf16>, vector<1024x256xbf16>, vector<16x256xf32> -> vector<16x256xf32>
    %c0_61 = arith.constant 0 : index
    %c0_62 = arith.constant 0 : index
    %c0_63 = arith.constant 0 : index
    %157 = vector.load %arg13[%c0_61, %c0_62, %c0_63] : memref<1x1x256xf32, #tpu.memory_space<vmem>>, vector<1x1x256xf32>
    %158 = vector.shape_cast %157 : vector<1x1x256xf32> to vector<1x256xf32>
    %159 = vector.broadcast %158 : vector<1x256xf32> to vector<16x256xf32>
    %160 = arith.addf %156, %159 : vector<16x256xf32>
    %161 = arith.addf %160, %131 : vector<16x256xf32>
    %c0_64 = arith.constant 0 : index
    %c0_65 = arith.constant 0 : index
    %c0_66 = arith.constant 0 : index
    %162 = vector.load %arg14[%c0_64, %c0_65, %c0_66] : memref<1x1x256xf32, #tpu.memory_space<vmem>>, vector<1x1x256xf32>
    %163 = vector.shape_cast %162 : vector<1x1x256xf32> to vector<1x256xf32>
    %c0_67 = arith.constant 0 : index
    %c0_68 = arith.constant 0 : index
    %c0_69 = arith.constant 0 : index
    %164 = vector.load %arg15[%c0_67, %c0_68, %c0_69] : memref<1x1x256xf32, #tpu.memory_space<vmem>>, vector<1x1x256xf32>
    %165 = vector.shape_cast %164 : vector<1x1x256xf32> to vector<1x256xf32>
    %cst_70 = arith.constant dense<0.000000e+00> : vector<16xf32>
    %166 = vector.multi_reduction <add>, %161, %cst_70 [1] : vector<16x256xf32> to vector<16xf32>
    %167 = vector.shape_cast %166 : vector<16xf32> to vector<16x1xf32>
    %cst_71 = arith.constant 2.560000e+02 : f32
    %168 = vector.broadcast %cst_71 : f32 to vector<16x1xf32>
    %169 = arith.divf %167, %168 : vector<16x1xf32>
    %170 = vector.broadcast %169 : vector<16x1xf32> to vector<16x256xf32>
    %171 = arith.subf %161, %170 : vector<16x256xf32>
    %172 = arith.mulf %171, %171 : vector<16x256xf32>
    %cst_72 = arith.constant dense<0.000000e+00> : vector<16xf32>
    %173 = vector.multi_reduction <add>, %172, %cst_72 [1] : vector<16x256xf32> to vector<16xf32>
    %174 = vector.shape_cast %173 : vector<16xf32> to vector<16x1xf32>
    %cst_73 = arith.constant 2.560000e+02 : f32
    %175 = vector.broadcast %cst_73 : f32 to vector<16x1xf32>
    %176 = arith.divf %174, %175 : vector<16x1xf32>
    %cst_74 = arith.constant 9.99999996E-13 : f32
    %177 = vector.broadcast %cst_74 : f32 to vector<16x1xf32>
    %178 = arith.addf %176, %177 : vector<16x1xf32>
    %179 = math.rsqrt %178 : vector<16x1xf32>
    %180 = vector.broadcast %179 : vector<16x1xf32> to vector<16x256xf32>
    %181 = arith.mulf %171, %180 : vector<16x256xf32>
    %182 = vector.broadcast %163 : vector<1x256xf32> to vector<16x256xf32>
    %183 = arith.mulf %181, %182 : vector<16x256xf32>
    %184 = vector.broadcast %165 : vector<1x256xf32> to vector<16x256xf32>
    %185 = arith.addf %183, %184 : vector<16x256xf32>
    %c0_75 = arith.constant 0 : index
    %c0_76 = arith.constant 0 : index
    %186 = vector.load %arg23[%c0_75, %c0_76] : memref<16x256xf32, #tpu.memory_space<vmem>>, vector<16x256xf32>
    tpu.vector_store %arg23[%c0_75, %c0_76], %185 {strides = array<i32>} : memref<16x256xf32, #tpu.memory_space<vmem>>, vector<16x256xf32>,
    %c1_i32 = arith.constant 1 : i32
    %187 = arith.cmpi eq, %arg0, %c1_i32 : i32
    %188 = arith.extui %187 : i1 to i32
    %c0_i32_77 = arith.constant 0 : i32
    %189 = arith.cmpi ne, %188, %c0_i32_77 : i32
    scf.if %189 {
      %190 = arith.truncf %185 : vector<16x256xf32> to vector<16x256xbf16>
      %c0_78 = arith.constant 0 : index
      %c0_79 = arith.constant 0 : index
      %191 = vector.load %arg16[%c0_78, %c0_79] : memref<256x256xbf16, #tpu.memory_space<vmem>>, vector<256x256xbf16>
      %cst_80 = arith.constant dense<0.000000e+00> : vector<16x256xf32>
      %192 = tpu.matmul %190, %191, %cst_80 {dimension_numbers = #tpu.dot_dimension_numbers<[1], [0], [0], [1], [0, 0, 1, 1], [], []>} : vector<16x256xbf16>, vector<256x256xbf16>, vector<16x256xf32> -> vector<16x256xf32>
      %c0_81 = arith.constant 0 : index
      %c0_82 = arith.constant 0 : index
      %193 = vector.load %arg17[%c0_81, %c0_82] : memref<1x256xf32, #tpu.memory_space<vmem>>, vector<1x256xf32>
      %194 = vector.broadcast %193 : vector<1x256xf32> to vector<16x256xf32>
      %195 = arith.addf %192, %194 : vector<16x256xf32>
      %cst_83 = arith.constant 5.000000e-01 : f32
      %196 = vector.broadcast %cst_83 : f32 to vector<16x256xf32>
      %197 = arith.mulf %196, %195 : vector<16x256xf32>
      %cst_84 = arith.constant 4.471500e-02 : f32
      %198 = vector.broadcast %cst_84 : f32 to vector<16x256xf32>
      %199 = arith.mulf %198, %195 : vector<16x256xf32>
      %200 = arith.mulf %199, %195 : vector<16x256xf32>
      %201 = arith.mulf %200, %195 : vector<16x256xf32>
      %202 = arith.addf %195, %201 : vector<16x256xf32>
      %cst_85 = arith.constant 0.797884583 : f32
      %203 = vector.broadcast %cst_85 : f32 to vector<16x256xf32>
      %204 = arith.mulf %203, %202 : vector<16x256xf32>
      %205 = math.tanh %204 : vector<16x256xf32>
      %cst_86 = arith.constant 1.000000e+00 : f32
      %206 = vector.broadcast %cst_86 : f32 to vector<16x256xf32>
      %207 = arith.addf %206, %205 : vector<16x256xf32>
      %208 = arith.mulf %197, %207 : vector<16x256xf32>
      %c0_87 = arith.constant 0 : index
      %c0_88 = arith.constant 0 : index
      %209 = vector.load %arg18[%c0_87, %c0_88] : memref<1x256xf32, #tpu.memory_space<vmem>>, vector<1x256xf32>
      %c0_89 = arith.constant 0 : index
      %c0_90 = arith.constant 0 : index
      %210 = vector.load %arg19[%c0_89, %c0_90] : memref<1x256xf32, #tpu.memory_space<vmem>>, vector<1x256xf32>
      %cst_91 = arith.constant dense<0.000000e+00> : vector<16xf32>
      %211 = vector.multi_reduction <add>, %208, %cst_91 [1] : vector<16x256xf32> to vector<16xf32>
      %212 = vector.shape_cast %211 : vector<16xf32> to vector<16x1xf32>
      %cst_92 = arith.constant 2.560000e+02 : f32
      %213 = vector.broadcast %cst_92 : f32 to vector<16x1xf32>
      %214 = arith.divf %212, %213 : vector<16x1xf32>
      %215 = vector.broadcast %214 : vector<16x1xf32> to vector<16x256xf32>
      %216 = arith.subf %208, %215 : vector<16x256xf32>
      %217 = arith.mulf %216, %216 : vector<16x256xf32>
      %cst_93 = arith.constant dense<0.000000e+00> : vector<16xf32>
      %218 = vector.multi_reduction <add>, %217, %cst_93 [1] : vector<16x256xf32> to vector<16xf32>
      %219 = vector.shape_cast %218 : vector<16xf32> to vector<16x1xf32>
      %cst_94 = arith.constant 2.560000e+02 : f32
      %220 = vector.broadcast %cst_94 : f32 to vector<16x1xf32>
      %221 = arith.divf %219, %220 : vector<16x1xf32>
      %cst_95 = arith.constant 9.99999996E-13 : f32
      %222 = vector.broadcast %cst_95 : f32 to vector<16x1xf32>
      %223 = arith.addf %221, %222 : vector<16x1xf32>
      %224 = math.rsqrt %223 : vector<16x1xf32>
      %225 = vector.broadcast %224 : vector<16x1xf32> to vector<16x256xf32>
      %226 = arith.mulf %216, %225 : vector<16x256xf32>
      %227 = vector.broadcast %209 : vector<1x256xf32> to vector<16x256xf32>
      %228 = arith.mulf %226, %227 : vector<16x256xf32>
      %229 = vector.broadcast %210 : vector<1x256xf32> to vector<16x256xf32>
      %230 = arith.addf %228, %229 : vector<16x256xf32>
      %231 = arith.truncf %230 : vector<16x256xf32> to vector<16x256xbf16>
      %c0_96 = arith.constant 0 : index
      %c0_97 = arith.constant 0 : index
      %232 = vector.load %arg20[%c0_96, %c0_97] : memref<256x512xbf16, #tpu.memory_space<vmem>>, vector<256x512xbf16>
      %cst_98 = arith.constant dense<0.000000e+00> : vector<16x512xf32>
      %233 = tpu.matmul %231, %232, %cst_98 {dimension_numbers = #tpu.dot_dimension_numbers<[1], [0], [0], [1], [0, 0, 1, 1], [], []>} : vector<16x256xbf16>, vector<256x512xbf16>, vector<16x512xf32> -> vector<16x512xf32>
      %c0_99 = arith.constant 0 : index
      %c0_100 = arith.constant 0 : index
      %234 = vector.load %arg21[%c0_99, %c0_100] : memref<1x512xf32, #tpu.memory_space<vmem>>, vector<1x512xf32>
      %235 = vector.broadcast %234 : vector<1x512xf32> to vector<16x512xf32>
      %236 = arith.addf %233, %235 : vector<16x512xf32>
      %c0_101 = arith.constant 0 : index
      %c0_102 = arith.constant 0 : index
      %237 = vector.load %arg22[%c0_101, %c0_102] : memref<16x512xf32, #tpu.memory_space<vmem>>, vector<16x512xf32>
      tpu.vector_store %arg22[%c0_101, %c0_102], %236 {strides = array<i32>} : memref<16x512xf32, #tpu.memory_space<vmem>>, vector<16x512xf32>,
    } else {
    }
    return
  }
  func.func @transform_0(%arg0: i32) -> (i32, i32) {
    %c0_i32 = arith.constant 0 : i32
    %c0_i32_0 = arith.constant 0 : i32
    %c0_i32_1 = arith.constant 0 : i32
    return %c0_i32, %c0_i32_0 : i32, i32
  }
  func.func @transform_1(%arg0: i32) -> (i32, i32) {
    %c0_i32 = arith.constant 0 : i32
    %c0_i32_0 = arith.constant 0 : i32
    %c0_i32_1 = arith.constant 0 : i32
    return %c0_i32, %c0_i32_0 : i32, i32
  }
  func.func @transform_2(%arg0: i32) -> (i32, i32) {
    %c0_i32 = arith.constant 0 : i32
    %c0_i32_0 = arith.constant 0 : i32
    %c0_i32_1 = arith.constant 0 : i32
    return %c0_i32, %c0_i32_0 : i32, i32
  }
  func.func @transform_3(%arg0: i32) -> (i32, i32, i32) {
    %c0_i32 = arith.constant 0 : i32
    %c0_i32_0 = arith.constant 0 : i32
    %c0_i32_1 = arith.constant 0 : i32
    return %arg0, %c0_i32, %c0_i32_0 : i32, i32, i32
  }
  func.func @transform_4(%arg0: i32) -> (i32, i32, i32) {
    %c0_i32 = arith.constant 0 : i32
    %c0_i32_0 = arith.constant 0 : i32
    %c0_i32_1 = arith.constant 0 : i32
    return %arg0, %c0_i32, %c0_i32_0 : i32, i32, i32
  }
  func.func @transform_5(%arg0: i32) -> (i32, i32, i32) {
    %c0_i32 = arith.constant 0 : i32
    %c0_i32_0 = arith.constant 0 : i32
    %c0_i32_1 = arith.constant 0 : i32
    return %arg0, %c0_i32, %c0_i32_0 : i32, i32, i32
  }
  func.func @transform_6(%arg0: i32) -> (i32, i32, i32) {
    %c0_i32 = arith.constant 0 : i32
    %c0_i32_0 = arith.constant 0 : i32
    %c0_i32_1 = arith.constant 0 : i32
    return %arg0, %c0_i32, %c0_i32_0 : i32, i32, i32
  }
  func.func @transform_7(%arg0: i32) -> (i32, i32, i32) {
    %c0_i32 = arith.constant 0 : i32
    %c0_i32_0 = arith.constant 0 : i32
    %c0_i32_1 = arith.constant 0 : i32
    return %arg0, %c0_i32, %c0_i32_0 : i32, i32, i32
  }
  func.func @transform_8(%arg0: i32) -> (i32, i32, i32) {
    %c0_i32 = arith.constant 0 : i32
    %c0_i32_0 = arith.constant 0 : i32
    %c0_i32_1 = arith.constant 0 : i32
    return %arg0, %c0_i32, %c0_i32_0 : i32, i32, i32
  }
  func.func @transform_9(%arg0: i32) -> (i32, i32, i32) {
    %c0_i32 = arith.constant 0 : i32
    %c0_i32_0 = arith.constant 0 : i32
    %c0_i32_1 = arith.constant 0 : i32
    return %arg0, %c0_i32, %c0_i32_0 : i32, i32, i32
  }
  func.func @transform_10(%arg0: i32) -> (i32, i32, i32) {
    %c0_i32 = arith.constant 0 : i32
    %c0_i32_0 = arith.constant 0 : i32
    %c0_i32_1 = arith.constant 0 : i32
    return %arg0, %c0_i32, %c0_i32_0 : i32, i32, i32
  }
  func.func @transform_11(%arg0: i32) -> (i32, i32, i32) {
    %c0_i32 = arith.constant 0 : i32
    %c0_i32_0 = arith.constant 0 : i32
    %c0_i32_1 = arith.constant 0 : i32
    return %arg0, %c0_i32, %c0_i32_0 : i32, i32, i32
  }
  func.func @transform_12(%arg0: i32) -> (i32, i32, i32) {
    %c0_i32 = arith.constant 0 : i32
    %c0_i32_0 = arith.constant 0 : i32
    %c0_i32_1 = arith.constant 0 : i32
    return %arg0, %c0_i32, %c0_i32_0 : i32, i32, i32
  }
  func.func @transform_13(%arg0: i32) -> (i32, i32, i32) {
    %c0_i32 = arith.constant 0 : i32
    %c0_i32_0 = arith.constant 0 : i32
    %c0_i32_1 = arith.constant 0 : i32
    return %arg0, %c0_i32, %c0_i32_0 : i32, i32, i32
  }
  func.func @transform_14(%arg0: i32) -> (i32, i32, i32) {
    %c0_i32 = arith.constant 0 : i32
    %c0_i32_0 = arith.constant 0 : i32
    %c0_i32_1 = arith.constant 0 : i32
    return %arg0, %c0_i32, %c0_i32_0 : i32, i32, i32
  }
  func.func @transform_15(%arg0: i32) -> (i32, i32) {
    %c0_i32 = arith.constant 0 : i32
    %c0_i32_0 = arith.constant 0 : i32
    %c0_i32_1 = arith.constant 0 : i32
    return %c0_i32, %c0_i32_0 : i32, i32
  }
  func.func @transform_16(%arg0: i32) -> (i32, i32) {
    %c0_i32 = arith.constant 0 : i32
    %c0_i32_0 = arith.constant 0 : i32
    %c0_i32_1 = arith.constant 0 : i32
    return %c0_i32, %c0_i32_0 : i32, i32
  }
  func.func @transform_17(%arg0: i32) -> (i32, i32) {
    %c0_i32 = arith.constant 0 : i32
    %c0_i32_0 = arith.constant 0 : i32
    %c0_i32_1 = arith.constant 0 : i32
    return %c0_i32, %c0_i32_0 : i32, i32
  }
  func.func @transform_18(%arg0: i32) -> (i32, i32) {
    %c0_i32 = arith.constant 0 : i32
    %c0_i32_0 = arith.constant 0 : i32
    %c0_i32_1 = arith.constant 0 : i32
    return %c0_i32, %c0_i32_0 : i32, i32
  }
  func.func @transform_19(%arg0: i32) -> (i32, i32) {
    %c0_i32 = arith.constant 0 : i32
    %c0_i32_0 = arith.constant 0 : i32
    %c0_i32_1 = arith.constant 0 : i32
    return %c0_i32, %c0_i32_0 : i32, i32
  }
  func.func @transform_20(%arg0: i32) -> (i32, i32) {
    %c0_i32 = arith.constant 0 : i32
    %c0_i32_0 = arith.constant 0 : i32
    %c0_i32_1 = arith.constant 0 : i32
    return %c0_i32, %c0_i32_0 : i32, i32
  }
  func.func @transform_21(%arg0: i32) -> (i32, i32) {
    %c0_i32 = arith.constant 0 : i32
    %c0_i32_0 = arith.constant 0 : i32
    %c0_i32_1 = arith.constant 0 : i32
    return %c0_i32, %c0_i32_0 : i32, i32
  }
}

</mosaic_0001>

<llo_original>
// kernel: bert_forward_pallas.1
$region0: #{bert_forward_pallas.1}
  #allocation0 [shape = 'u32[]', space=smem, size = 0x4, offset = 0x4, fixed_abs, tag = 'smem constant byte address 0x4 - core index']
  #allocation1 [shape = 'u32[72,128]{1,0:T(1,128)}', space=vmem, size = 0x9000, scoped, tag = 'internal scratch']
  #allocation2 [shape = 'f32[16,256]{1,0:T(8,128)}', space=vmem, size = 0x4000, scoped, tag = 'scratch operand']
  %s0 = inlined_call_operand.vmem [shape: f32[16,256], index: 0, kind: input, shape index: {}]
  %s1 = inlined_call_operand.vmem [shape: f32[1,256], index: 1, kind: input, shape index: {}]
  %s2 = inlined_call_operand.vmem [shape: f32[1,256], index: 2, kind: input, shape index: {}]
  %s3 = inlined_call_operand.hbm [shape: bf16[2,256,768], index: 3, kind: input, shape index: {}]
  %s4 = inlined_call_operand.vmem [shape: f32[2,1,768], index: 4, kind: input, shape index: {}]
  %s5 = inlined_call_operand.hbm [shape: bf16[2,256,256], index: 5, kind: input, shape index: {}]
  %s6 = inlined_call_operand.vmem [shape: f32[2,1,256], index: 6, kind: input, shape index: {}]
  %s7 = inlined_call_operand.vmem [shape: f32[2,1,256], index: 7, kind: input, shape index: {}]
  %s8 = inlined_call_operand.vmem [shape: f32[2,1,256], index: 8, kind: input, shape index: {}]
  %s9 = inlined_call_operand.hbm [shape: bf16[2,256,1024], index: 9, kind: input, shape index: {}]
  %s10 = inlined_call_operand.vmem [shape: f32[2,1,1024], index: 10, kind: input, shape index: {}]
  %s11 = inlined_call_operand.hbm [shape: bf16[2,1024,256], index: 11, kind: input, shape index: {}]
  %s12 = inlined_call_operand.vmem [shape: f32[2,1,256], index: 12, kind: input, shape index: {}]
  %s13 = inlined_call_operand.vmem [shape: f32[2,1,256], index: 13, kind: input, shape index: {}]
  %s14 = inlined_call_operand.vmem [shape: f32[2,1,256], index: 14, kind: input, shape index: {}]
  %s15 = inlined_call_operand.vmem [shape: bf16[256,256], index: 15, kind: input, shape index: {}]
  %s16 = inlined_call_operand.vmem [shape: f32[1,256], index: 16, kind: input, shape index: {}]
  %s17 = inlined_call_operand.vmem [shape: f32[1,256], index: 17, kind: input, shape index: {}]
  %s18 = inlined_call_operand.vmem [shape: f32[1,256], index: 18, kind: input, shape index: {}]
  %s19 = inlined_call_operand.hbm [shape: bf16[256,512], index: 19, kind: input, shape index: {}]
  %s20 = inlined_call_operand.vmem [shape: f32[1,512], index: 20, kind: input, shape index: {}]
  %s21 = inlined_call_operand.hbm [shape: f32[16,512], index: 21, kind: output, shape index: {}]
  %s22 = sld [smem:[#allocation0]]
  $region145: #{bert_forward_pallas.1} parent=0
    _
  %s24 = ssub.s32 1, %s22
  %s25 = scalar_select 0, %s24, %s22
  $region1: #{bert_forward_pallas.1} parent=0
    #allocation3 [shape = 'u8[786432]{0}', space=vmem, size = 0xc0000, scoped, tag = 'input window, operand 3']
    #allocation4 [shape = 's32[2]{0}', space=sflag, size = 0x8, scoped, tag = 'scoped memory for bert_forward_pallas.1']
    #allocation5 [shape = 's32[2]{0}', space=sflag, size = 0x8, scoped, tag = 'scoped memory for bert_forward_pallas.1']
    #allocation6 [shape = 'u8[262144]{0}', space=vmem, size = 0x40000, scoped, tag = 'input window, operand 5']
    #allocation7 [shape = 's32[2]{0}', space=sflag, size = 0x8, scoped, tag = 'scoped memory for bert_forward_pallas.1']
    #allocation8 [shape = 'u8[1048576]{0}', space=vmem, size = 0x100000, scoped, tag = 'input window, operand 9']
    #allocation9 [shape = 'u8[1048576]{0}', space=vmem, size = 0x100000, scoped, tag = 'input window, operand 11']
    #allocation10 [shape = 's32[2]{0}', space=sflag, size = 0x8, scoped, tag = 'scoped memory for bert_forward_pallas.1']
    #allocation11 [shape = 'u8[262144]{0}', space=vmem, size = 0x40000, scoped, tag = 'input window, operand 19, single buffered']
    #allocation12 [shape = 'u8[32768]{0}', space=vmem, size = 0x8000, scoped, tag = 'output window, operand 0, single buffered']
    %26 = vsyncpa [#allocation4], 0
    %s27 = scalar_lea.sflag [#allocation4], 1
    %28 = vsyncpa %s27, 0
    %29 = vsyncpa [#allocation7], 0
    %s30 = scalar_lea.sflag [#allocation7], 1
    %31 = vsyncpa %s30, 0
    %32 = vsyncpa [#allocation10], 0
    %s33 = scalar_lea.sflag [#allocation10], 1
    %34 = vsyncpa %s33, 0
    %35 = vsyncpa [#allocation5], 0
    loop: start=0, step=1, limit=4
    $region2: #{bert_forward_pallas.1} parent=1 // loop_pre_header
      _
    $region3: #{bert_forward_pallas.1} parent=1 // loop_header
      %s37 = sphi 0, %s41
      %p38 = scmp.ge.s32.totalorder %s37, 4
      %s45 = sphi 0, %s45
      %s47 = sphi 0, %s45
      %s48 = sphi 0, %s47
      %s62 = sphi 0, %s48
      %s66 = sphi 0, %s66
      %s68 = sphi 0, %s66
      %s69 = sphi 0, %s68
      %s83 = sphi 0, %s69
      %s87 = sphi 0, %s87
      %s89 = sphi 0, %s87
      %s90 = sphi 0, %s89
      %s104 = sphi 0, %s90
      %s110 = sphi 0, %s112
      %s113 = sphi 0, %s110
      %s114 = sphi 0, %s113
      %s130 = sphi 0, %s114
      %s136 = sphi 0, %s138
      %s139 = sphi 0, %s136
      %s140 = sphi 0, %s139
      %s156 = sphi 0, %s140
      %s162 = sphi 0, %s164
      %s165 = sphi 0, %s162
      %s166 = sphi 0, %s165
      %s182 = sphi 0, %s166
      %s188 = sphi 0, %s190
      %s191 = sphi 0, %s188
      %s192 = sphi 0, %s191
      %s208 = sphi 0, %s192
      %s214 = sphi 0, %s216
      %s217 = sphi 0, %s214
      %s218 = sphi 0, %s217
      %s234 = sphi 0, %s218
      %s240 = sphi 0, %s242
      %s243 = sphi 0, %s240
      %s244 = sphi 0, %s243
      %s260 = sphi 0, %s244
      %s266 = sphi 0, %s268
      %s269 = sphi 0, %s266
      %s270 = sphi 0, %s269
      %s286 = sphi 0, %s270
      %s292 = sphi 0, %s294
      %s295 = sphi 0, %s292
      %s296 = sphi 0, %s295
      %s312 = sphi 0, %s296
      %s318 = sphi 0, %s320
      %s321 = sphi 0, %s318
      %s322 = sphi 0, %s321
      %s338 = sphi 0, %s322
      %s344 = sphi 0, %s346
      %s347 = sphi 0, %s344
      %s348 = sphi 0, %s347
      %s364 = sphi 0, %s348
      %s370 = sphi 0, %s372
      %s373 = sphi 0, %s370
      %s374 = sphi 0, %s373
      %s390 = sphi 0, %s374
      %s396 = sphi 0, %s398
      %s399 = sphi 0, %s396
      %s400 = sphi 0, %s399
      %s416 = sphi 0, %s400
      %s420 = sphi 0, %s420
      %s422 = sphi 0, %s420
      %s423 = sphi 0, %s422
      %s437 = sphi 0, %s423
      %s441 = sphi 0, %s441
      %s443 = sphi 0, %s441
      %s444 = sphi 0, %s443
      %s458 = sphi 0, %s444
      %s462 = sphi 0, %s462
      %s464 = sphi 0, %s462
      %s465 = sphi 0, %s464
      %s479 = sphi 0, %s465
      %s483 = sphi 0, %s483
      %s485 = sphi 0, %s483
      %s486 = sphi 0, %s485
      %s500 = sphi 0, %s486
      %s504 = sphi 0, %s504
      %s506 = sphi 0, %s504
      %s507 = sphi 0, %s506
      %s521 = sphi 0, %s507
      %s525 = sphi 0, %s525
      %s527 = sphi 0, %s525
      %s528 = sphi 0, %s527
      %s542 = sphi 0, %s528
      %s546 = sphi 0, %s546
      %s548 = sphi 0, %s546
      %s549 = sphi 0, %s548
      %s563 = sphi 0, %s549
    $region4: #{bert_forward_pallas.1} parent=1 // loop_header_branch
      %40 = sbr.rel (%p38) target = $region8
    $region5: #{bert_forward_pallas.1} parent=1 // loop_body
      %s42 = ssub.s32 %s37, 1
      %s43 = ssub.s32 %s37, 2
      %s44 = sadd.s32 %s37, 1
      %s46 = sadd.s32 %s45, 1
      %p49 = scmp.eq.s32.totalorder %s37, 1
      %p50 = scmp.ne.s32.totalorder %s45, %s47
      %p51 = scmp.eq.s32.totalorder %s37, 0
      %p52 = por %p50, %p51
      %p53 = scmp.ne.s32.totalorder %s45, %s47
      %p54 = scmp.eq.s32.totalorder %s42, 1
      %p55 = por %p53, %p54
      %p56 = scmp.ne.s32.totalorder %s47, %s48
      %p57 = scmp.eq.s32.totalorder %s42, 0
      %p58 = por %p56, %p57
      %p59 = scmp.ne.s32.totalorder %s47, %s48
      %p60 = scmp.eq.s32.totalorder %s43, 1
      %p61 = por %p59, %p60
      %p63 = scmp.ne.s32.totalorder %s48, %s62
      %p64 = scmp.eq.s32.totalorder %s43, 0
      %p65 = por %p63, %p64
      %s67 = sadd.s32 %s66, 1
      %p70 = scmp.eq.s32.totalorder %s37, 1
      %p71 = scmp.ne.s32.totalorder %s66, %s68
      %p72 = scmp.eq.s32.totalorder %s37, 0
      %p73 = por %p71, %p72
      %p74 = scmp.ne.s32.totalorder %s66, %s68
      %p75 = scmp.eq.s32.totalorder %s42, 1
      %p76 = por %p74, %p75
      %p77 = scmp.ne.s32.totalorder %s68, %s69
      %p78 = scmp.eq.s32.totalorder %s42, 0
      %p79 = por %p77, %p78
      %p80 = scmp.ne.s32.totalorder %s68, %s69
      %p81 = scmp.eq.s32.totalorder %s43, 1
      %p82 = por %p80, %p81
      %p84 = scmp.ne.s32.totalorder %s69, %s83
      %p85 = scmp.eq.s32.totalorder %s43, 0
      %p86 = por %p84, %p85
      %s88 = sadd.s32 %s87, 1
      %p91 = scmp.eq.s32.totalorder %s37, 1
      %p92 = scmp.ne.s32.totalorder %s87, %s89
      %p93 = scmp.eq.s32.totalorder %s37, 0
      %p94 = por %p92, %p93
      %p95 = scmp.ne.s32.totalorder %s87, %s89
      %p96 = scmp.eq.s32.totalorder %s42, 1
      %p97 = por %p95, %p96
      %p98 = scmp.ne.s32.totalorder %s89, %s90
      %p99 = scmp.eq.s32.totalorder %s42, 0
      %p100 = por %p98, %p99
      %p101 = scmp.ne.s32.totalorder %s89, %s90
      %p102 = scmp.eq.s32.totalorder %s43, 1
      %p103 = por %p101, %p102
      %p105 = scmp.ne.s32.totalorder %s90, %s104
      %p106 = scmp.eq.s32.totalorder %s43, 0
      %p107 = por %p105, %p106
      %s108 = ssub.s32 %s37, %s44
      %p109 = scmp.eq.s32.totalorder %s108, 0
      %s111 = sadd.s32 %s110, 1
      %s112 = scalar_select %p109, %s110, %s111
      %p115 = pneg %p109
      %p116 = scmp.eq.s32.totalorder %s37, 1
      %p117 = por %p115, %p116
      %p118 = scmp.ne.s32.totalorder %s110, %s113
      %p119 = scmp.eq.s32.totalorder %s37, 0
      %p120 = por %p118, %p119
      %p121 = scmp.ne.s32.totalorder %s110, %s113
      %p122 = scmp.eq.s32.totalorder %s42, 1
      %p123 = por %p121, %p122
      %p124 = scmp.ne.s32.totalorder %s113, %s114
      %p125 = scmp.eq.s32.totalorder %s42, 0
      %p126 = por %p124, %p125
      %p127 = scmp.ne.s32.totalorder %s113, %s114
      %p128 = scmp.eq.s32.totalorder %s43, 1
      %p129 = por %p127, %p128
      %p131 = scmp.ne.s32.totalorder %s114, %s130
      %p132 = scmp.eq.s32.totalorder %s43, 0
      %p133 = por %p131, %p132
      %s134 = ssub.s32 %s37, %s44
      %p135 = scmp.eq.s32.totalorder %s134, 0
      %s137 = sadd.s32 %s136, 1
      %s138 = scalar_select %p135, %s136, %s137
      %p141 = pneg %p135
      %p142 = scmp.eq.s32.totalorder %s37, 1
      %p143 = por %p141, %p142
      %p144 = scmp.ne.s32.totalorder %s136, %s139
      %p145 = scmp.eq.s32.totalorder %s37, 0
      %p146 = por %p144, %p145
      %p147 = scmp.ne.s32.totalorder %s136, %s139
      %p148 = scmp.eq.s32.totalorder %s42, 1
      %p149 = por %p147, %p148
      %p150 = scmp.ne.s32.totalorder %s139, %s140
      %p151 = scmp.eq.s32.totalorder %s42, 0
      %p152 = por %p150, %p151
      %p153 = scmp.ne.s32.totalorder %s139, %s140
      %p154 = scmp.eq.s32.totalorder %s43, 1
      %p155 = por %p153, %p154
      %p157 = scmp.ne.s32.totalorder %s140, %s156
      %p158 = scmp.eq.s32.totalorder %s43, 0
      %p159 = por %p157, %p158
      %s160 = ssub.s32 %s37, %s44
      %p161 = scmp.eq.s32.totalorder %s160, 0
      %s163 = sadd.s32 %s162, 1
      %s164 = scalar_select %p161, %s162, %s163
      %p167 = pneg %p161
      %p168 = scmp.eq.s32.totalorder %s37, 1
      %p169 = por %p167, %p168
      %p170 = scmp.ne.s32.totalorder %s162, %s165
      %p171 = scmp.eq.s32.totalorder %s37, 0
      %p172 = por %p170, %p171
      %p173 = scmp.ne.s32.totalorder %s162, %s165
      %p174 = scmp.eq.s32.totalorder %s42, 1
      %p175 = por %p173, %p174
      %p176 = scmp.ne.s32.totalorder %s165, %s166
      %p177 = scmp.eq.s32.totalorder %s42, 0
      %p178 = por %p176, %p177
      %p179 = scmp.ne.s32.totalorder %s165, %s166
      %p180 = scmp.eq.s32.totalorder %s43, 1
      %p181 = por %p179, %p180
      %p183 = scmp.ne.s32.totalorder %s166, %s182
      %p184 = scmp.eq.s32.totalorder %s43, 0
      %p185 = por %p183, %p184
      %s186 = ssub.s32 %s37, %s44
      %p187 = scmp.eq.s32.totalorder %s186, 0
      %s189 = sadd.s32 %s188, 1
      %s190 = scalar_select %p187, %s188, %s189
      %p193 = pneg %p187
      %p194 = scmp.eq.s32.totalorder %s37, 1
      %p195 = por %p193, %p194
      %p196 = scmp.ne.s32.totalorder %s188, %s191
      %p197 = scmp.eq.s32.totalorder %s37, 0
      %p198 = por %p196, %p197
      %p199 = scmp.ne.s32.totalorder %s188, %s191
      %p200 = scmp.eq.s32.totalorder %s42, 1
      %p201 = por %p199, %p200
      %p202 = scmp.ne.s32.totalorder %s191, %s192
      %p203 = scmp.eq.s32.totalorder %s42, 0
      %p204 = por %p202, %p203
      %p205 = scmp.ne.s32.totalorder %s191, %s192
      %p206 = scmp.eq.s32.totalorder %s43, 1
      %p207 = por %p205, %p206
      %p209 = scmp.ne.s32.totalorder %s192, %s208
      %p210 = scmp.eq.s32.totalorder %s43, 0
      %p211 = por %p209, %p210
      %s212 = ssub.s32 %s37, %s44
      %p213 = scmp.eq.s32.totalorder %s212, 0
      %s215 = sadd.s32 %s214, 1
      %s216 = scalar_select %p213, %s214, %s215
      %p219 = pneg %p213
      %p220 = scmp.eq.s32.totalorder %s37, 1
      %p221 = por %p219, %p220
      %p222 = scmp.ne.s32.totalorder %s214, %s217
      %p223 = scmp.eq.s32.totalorder %s37, 0
      %p224 = por %p222, %p223
      %p225 = scmp.ne.s32.totalorder %s214, %s217
      %p226 = scmp.eq.s32.totalorder %s42, 1
      %p227 = por %p225, %p226
      %p228 = scmp.ne.s32.totalorder %s217, %s218
      %p229 = scmp.eq.s32.totalorder %s42, 0
      %p230 = por %p228, %p229
      %p231 = scmp.ne.s32.totalorder %s217, %s218
      %p232 = scmp.eq.s32.totalorder %s43, 1
      %p233 = por %p231, %p232
      %p235 = scmp.ne.s32.totalorder %s218, %s234
      %p236 = scmp.eq.s32.totalorder %s43, 0
      %p237 = por %p235, %p236
      %s238 = ssub.s32 %s37, %s44
      %p239 = scmp.eq.s32.totalorder %s238, 0
      %s241 = sadd.s32 %s240, 1
      %s242 = scalar_select %p239, %s240, %s241
      %p245 = pneg %p239
      %p246 = scmp.eq.s32.totalorder %s37, 1
      %p247 = por %p245, %p246
      %p248 = scmp.ne.s32.totalorder %s240, %s243
      %p249 = scmp.eq.s32.totalorder %s37, 0
      %p250 = por %p248, %p249
      %p251 = scmp.ne.s32.totalorder %s240, %s243
      %p252 = scmp.eq.s32.totalorder %s42, 1
      %p253 = por %p251, %p252
      %p254 = scmp.ne.s32.totalorder %s243, %s244
      %p255 = scmp.eq.s32.totalorder %s42, 0
      %p256 = por %p254, %p255
      %p257 = scmp.ne.s32.totalorder %s243, %s244
      %p258 = scmp.eq.s32.totalorder %s43, 1
      %p259 = por %p257, %p258
      %p261 = scmp.ne.s32.totalorder %s244, %s260
      %p262 = scmp.eq.s32.totalorder %s43, 0
      %p263 = por %p261, %p262
      %s264 = ssub.s32 %s37, %s44
      %p265 = scmp.eq.s32.totalorder %s264, 0
      %s267 = sadd.s32 %s266, 1
      %s268 = scalar_select %p265, %s266, %s267
      %p271 = pneg %p265
      %p272 = scmp.eq.s32.totalorder %s37, 1
      %p273 = por %p271, %p272
      %p274 = scmp.ne.s32.totalorder %s266, %s269
      %p275 = scmp.eq.s32.totalorder %s37, 0
      %p276 = por %p274, %p275
      %p277 = scmp.ne.s32.totalorder %s266, %s269
      %p278 = scmp.eq.s32.totalorder %s42, 1
      %p279 = por %p277, %p278
      %p280 = scmp.ne.s32.totalorder %s269, %s270
      %p281 = scmp.eq.s32.totalorder %s42, 0
      %p282 = por %p280, %p281
      %p283 = scmp.ne.s32.totalorder %s269, %s270
      %p284 = scmp.eq.s32.totalorder %s43, 1
      %p285 = por %p283, %p284
      %p287 = scmp.ne.s32.totalorder %s270, %s286
      %p288 = scmp.eq.s32.totalorder %s43, 0
      %p289 = por %p287, %p288
      %s290 = ssub.s32 %s37, %s44
      %p291 = scmp.eq.s32.totalorder %s290, 0
      %s293 = sadd.s32 %s292, 1
      %s294 = scalar_select %p291, %s292, %s293
      %p297 = pneg %p291
      %p298 = scmp.eq.s32.totalorder %s37, 1
      %p299 = por %p297, %p298
      %p300 = scmp.ne.s32.totalorder %s292, %s295
      %p301 = scmp.eq.s32.totalorder %s37, 0
      %p302 = por %p300, %p301
      %p303 = scmp.ne.s32.totalorder %s292, %s295
      %p304 = scmp.eq.s32.totalorder %s42, 1
      %p305 = por %p303, %p304
      %p306 = scmp.ne.s32.totalorder %s295, %s296
      %p307 = scmp.eq.s32.totalorder %s42, 0
      %p308 = por %p306, %p307
      %p309 = scmp.ne.s32.totalorder %s295, %s296
      %p310 = scmp.eq.s32.totalorder %s43, 1
      %p311 = por %p309, %p310
      %p313 = scmp.ne.s32.totalorder %s296, %s312
      %p314 = scmp.eq.s32.totalorder %s43, 0
      %p315 = por %p313, %p314
      %s316 = ssub.s32 %s37, %s44
      %p317 = scmp.eq.s32.totalorder %s316, 0
      %s319 = sadd.s32 %s318, 1
      %s320 = scalar_select %p317, %s318, %s319
      %p323 = pneg %p317
      %p324 = scmp.eq.s32.totalorder %s37, 1
      %p325 = por %p323, %p324
      %p326 = scmp.ne.s32.totalorder %s318, %s321
      %p327 = scmp.eq.s32.totalorder %s37, 0
      %p328 = por %p326, %p327
      %p329 = scmp.ne.s32.totalorder %s318, %s321
      %p330 = scmp.eq.s32.totalorder %s42, 1
      %p331 = por %p329, %p330
      %p332 = scmp.ne.s32.totalorder %s321, %s322
      %p333 = scmp.eq.s32.totalorder %s42, 0
      %p334 = por %p332, %p333
      %p335 = scmp.ne.s32.totalorder %s321, %s322
      %p336 = scmp.eq.s32.totalorder %s43, 1
      %p337 = por %p335, %p336
      %p339 = scmp.ne.s32.totalorder %s322, %s338
      %p340 = scmp.eq.s32.totalorder %s43, 0
      %p341 = por %p339, %p340
      %s342 = ssub.s32 %s37, %s44
      %p343 = scmp.eq.s32.totalorder %s342, 0
      %s345 = sadd.s32 %s344, 1
      %s346 = scalar_select %p343, %s344, %s345
      %p349 = pneg %p343
      %p350 = scmp.eq.s32.totalorder %s37, 1
      %p351 = por %p349, %p350
      %p352 = scmp.ne.s32.totalorder %s344, %s347
      %p353 = scmp.eq.s32.totalorder %s37, 0
      %p354 = por %p352, %p353
      %p355 = scmp.ne.s32.totalorder %s344, %s347
      %p356 = scmp.eq.s32.totalorder %s42, 1
      %p357 = por %p355, %p356
      %p358 = scmp.ne.s32.totalorder %s347, %s348
      %p359 = scmp.eq.s32.totalorder %s42, 0
      %p360 = por %p358, %p359
      %p361 = scmp.ne.s32.totalorder %s347, %s348
      %p362 = scmp.eq.s32.totalorder %s43, 1
      %p363 = por %p361, %p362
      %p365 = scmp.ne.s32.totalorder %s348, %s364
      %p366 = scmp.eq.s32.totalorder %s43, 0
      %p367 = por %p365, %p366
      %s368 = ssub.s32 %s37, %s44
      %p369 = scmp.eq.s32.totalorder %s368, 0
      %s371 = sadd.s32 %s370, 1
      %s372 = scalar_select %p369, %s370, %s371
      %p375 = pneg %p369
      %p376 = scmp.eq.s32.totalorder %s37, 1
      %p377 = por %p375, %p376
      %p378 = scmp.ne.s32.totalorder %s370, %s373
      %p379 = scmp.eq.s32.totalorder %s37, 0
      %p380 = por %p378, %p379
      %p381 = scmp.ne.s32.totalorder %s370, %s373
      %p382 = scmp.eq.s32.totalorder %s42, 1
      %p383 = por %p381, %p382
      %p384 = scmp.ne.s32.totalorder %s373, %s374
      %p385 = scmp.eq.s32.totalorder %s42, 0
      %p386 = por %p384, %p385
      %p387 = scmp.ne.s32.totalorder %s373, %s374
      %p388 = scmp.eq.s32.totalorder %s43, 1
      %p389 = por %p387, %p388
      %p391 = scmp.ne.s32.totalorder %s374, %s390
      %p392 = scmp.eq.s32.totalorder %s43, 0
      %p393 = por %p391, %p392
      %s394 = ssub.s32 %s37, %s44
      %p395 = scmp.eq.s32.totalorder %s394, 0
      %s397 = sadd.s32 %s396, 1
      %s398 = scalar_select %p395, %s396, %s397
      %p401 = pneg %p395
      %p402 = scmp.eq.s32.totalorder %s37, 1
      %p403 = por %p401, %p402
      %p404 = scmp.ne.s32.totalorder %s396, %s399
      %p405 = scmp.eq.s32.totalorder %s37, 0
      %p406 = por %p404, %p405
      %p407 = scmp.ne.s32.totalorder %s396, %s399
      %p408 = scmp.eq.s32.totalorder %s42, 1
      %p409 = por %p407, %p408
      %p410 = scmp.ne.s32.totalorder %s399, %s400
      %p411 = scmp.eq.s32.totalorder %s42, 0
      %p412 = por %p410, %p411
      %p413 = scmp.ne.s32.totalorder %s399, %s400
      %p414 = scmp.eq.s32.totalorder %s43, 1
      %p415 = por %p413, %p414
      %p417 = scmp.ne.s32.totalorder %s400, %s416
      %p418 = scmp.eq.s32.totalorder %s43, 0
      %p419 = por %p417, %p418
      %s421 = sadd.s32 %s420, 1
      %p424 = scmp.eq.s32.totalorder %s37, 1
      %p425 = scmp.ne.s32.totalorder %s420, %s422
      %p426 = scmp.eq.s32.totalorder %s37, 0
      %p427 = por %p425, %p426
      %p428 = scmp.ne.s32.totalorder %s420, %s422
      %p429 = scmp.eq.s32.totalorder %s42, 1
      %p430 = por %p428, %p429
      %p431 = scmp.ne.s32.totalorder %s422, %s423
      %p432 = scmp.eq.s32.totalorder %s42, 0
      %p433 = por %p431, %p432
      %p434 = scmp.ne.s32.totalorder %s422, %s423
      %p435 = scmp.eq.s32.totalorder %s43, 1
      %p436 = por %p434, %p435
      %p438 = scmp.ne.s32.totalorder %s423, %s437
      %p439 = scmp.eq.s32.totalorder %s43, 0
      %p440 = por %p438, %p439
      %s442 = sadd.s32 %s441, 1
      %p445 = scmp.eq.s32.totalorder %s37, 1
      %p446 = scmp.ne.s32.totalorder %s441, %s443
      %p447 = scmp.eq.s32.totalorder %s37, 0
      %p448 = por %p446, %p447
      %p449 = scmp.ne.s32.totalorder %s441, %s443
      %p450 = scmp.eq.s32.totalorder %s42, 1
      %p451 = por %p449, %p450
      %p452 = scmp.ne.s32.totalorder %s443, %s444
      %p453 = scmp.eq.s32.totalorder %s42, 0
      %p454 = por %p452, %p453
      %p455 = scmp.ne.s32.totalorder %s443, %s444
      %p456 = scmp.eq.s32.totalorder %s43, 1
      %p457 = por %p455, %p456
      %p459 = scmp.ne.s32.totalorder %s444, %s458
      %p460 = scmp.eq.s32.totalorder %s43, 0
      %p461 = por %p459, %p460
      %s463 = sadd.s32 %s462, 1
      %p466 = scmp.eq.s32.totalorder %s37, 1
      %p467 = scmp.ne.s32.totalorder %s462, %s464
      %p468 = scmp.eq.s32.totalorder %s37, 0
      %p469 = por %p467, %p468
      %p470 = scmp.ne.s32.totalorder %s462, %s464
      %p471 = scmp.eq.s32.totalorder %s42, 1
      %p472 = por %p470, %p471
      %p473 = scmp.ne.s32.totalorder %s464, %s465
      %p474 = scmp.eq.s32.totalorder %s42, 0
      %p475 = por %p473, %p474
      %p476 = scmp.ne.s32.totalorder %s464, %s465
      %p477 = scmp.eq.s32.totalorder %s43, 1
      %p478 = por %p476, %p477
      %p480 = scmp.ne.s32.totalorder %s465, %s479
      %p481 = scmp.eq.s32.totalorder %s43, 0
      %p482 = por %p480, %p481
      %s484 = sadd.s32 %s483, 1
      %p487 = scmp.eq.s32.totalorder %s37, 1
      %p488 = scmp.ne.s32.totalorder %s483, %s485
      %p489 = scmp.eq.s32.totalorder %s37, 0
      %p490 = por %p488, %p489
      %p491 = scmp.ne.s32.totalorder %s483, %s485
      %p492 = scmp.eq.s32.totalorder %s42, 1
      %p493 = por %p491, %p492
      %p494 = scmp.ne.s32.totalorder %s485, %s486
      %p495 = scmp.eq.s32.totalorder %s42, 0
      %p496 = por %p494, %p495
      %p497 = scmp.ne.s32.totalorder %s485, %s486
      %p498 = scmp.eq.s32.totalorder %s43, 1
      %p499 = por %p497, %p498
      %p501 = scmp.ne.s32.totalorder %s486, %s500
      %p502 = scmp.eq.s32.totalorder %s43, 0
      %p503 = por %p501, %p502
      %s505 = sadd.s32 %s504, 1
      %p508 = scmp.eq.s32.totalorder %s37, 1
      %p509 = scmp.ne.s32.totalorder %s504, %s506
      %p510 = scmp.eq.s32.totalorder %s37, 0
      %p511 = por %p509, %p510
      %p512 = scmp.ne.s32.totalorder %s504, %s506
      %p513 = scmp.eq.s32.totalorder %s42, 1
      %p514 = por %p512, %p513
      %p515 = scmp.ne.s32.totalorder %s506, %s507
      %p516 = scmp.eq.s32.totalorder %s42, 0
      %p517 = por %p515, %p516
      %p518 = scmp.ne.s32.totalorder %s506, %s507
      %p519 = scmp.eq.s32.totalorder %s43, 1
      %p520 = por %p518, %p519
      %p522 = scmp.ne.s32.totalorder %s507, %s521
      %p523 = scmp.eq.s32.totalorder %s43, 0
      %p524 = por %p522, %p523
      %s526 = sadd.s32 %s525, 1
      %p529 = scmp.eq.s32.totalorder %s37, 1
      %p530 = scmp.ne.s32.totalorder %s525, %s527
      %p531 = scmp.eq.s32.totalorder %s37, 0
      %p532 = por %p530, %p531
      %p533 = scmp.ne.s32.totalorder %s525, %s527
      %p534 = scmp.eq.s32.totalorder %s42, 1
      %p535 = por %p533, %p534
      %p536 = scmp.ne.s32.totalorder %s527, %s528
      %p537 = scmp.eq.s32.totalorder %s42, 0
      %p538 = por %p536, %p537
      %p539 = scmp.ne.s32.totalorder %s527, %s528
      %p540 = scmp.eq.s32.totalorder %s43, 1
      %p541 = por %p539, %p540
      %p543 = scmp.ne.s32.totalorder %s528, %s542
      %p544 = scmp.eq.s32.totalorder %s43, 0
      %p545 = por %p543, %p544
      %s547 = sadd.s32 %s546, 1
      %p550 = scmp.eq.s32.totalorder %s37, 1
      %p551 = scmp.ne.s32.totalorder %s546, %s548
      %p552 = scmp.eq.s32.totalorder %s37, 0
      %p553 = por %p551, %p552
      %p554 = scmp.ne.s32.totalorder %s546, %s548
      %p555 = scmp.eq.s32.totalorder %s42, 1
      %p556 = por %p554, %p555
      %p557 = scmp.ne.s32.totalorder %s548, %s549
      %p558 = scmp.eq.s32.totalorder %s42, 0
      %p559 = por %p557, %p558
      %p560 = scmp.ne.s32.totalorder %s548, %s549
      %p561 = scmp.eq.s32.totalorder %s43, 1
      %p562 = por %p560, %p561
      %p564 = scmp.ne.s32.totalorder %s549, %s563
      %p565 = scmp.eq.s32.totalorder %s43, 0
      %p566 = por %p564, %p565
      %p567 = scmp.le.s32.totalorder 1, %s37
      %p568 = scmp.lt.s32.totalorder %s37, 3
      %p569 = pnand %p567, %p568
      %p570 = pneg %p569
      // Predicated region
      $region9: #{bert_forward_pallas.1} parent=5 // pred_check
        _
      $region10: #{bert_forward_pallas.1} parent=5 // pred_check_branch
        %572 = sbr.rel (%p569) target = $region12
      $region11: #{bert_forward_pallas.1} parent=5 // pred_region
        %s573 = ssub.s32 %s37, 1
        // Predicated region
        $region13: #{bert_forward_pallas.1} parent=11 // pred_check
          %p574 = pneg %p58
        $region14: #{bert_forward_pallas.1} parent=11 // pred_check_branch
          %576 = sbr.rel (%p574) target = $region16
        $region15: #{bert_forward_pallas.1} parent=11 // pred_region
          _
        $region16: #{bert_forward_pallas.1} parent=11 // pred_fallthru
          _
        // Predicated region
        $region17: #{bert_forward_pallas.1} parent=11 // pred_check
          %p577 = pneg %p79
        $region18: #{bert_forward_pallas.1} parent=11 // pred_check_branch
          %579 = sbr.rel (%p577) target = $region20
        $region19: #{bert_forward_pallas.1} parent=11 // pred_region
          _
        $region20: #{bert_forward_pallas.1} parent=11 // pred_fallthru
          _
        // Predicated region
        $region21: #{bert_forward_pallas.1} parent=11 // pred_check
          %p580 = pneg %p100
        $region22: #{bert_forward_pallas.1} parent=11 // pred_check_branch
          %582 = sbr.rel (%p580) target = $region24
        $region23: #{bert_forward_pallas.1} parent=11 // pred_region
          _
        $region24: #{bert_forward_pallas.1} parent=11 // pred_fallthru
          _
        // Predicated region
        $region25: #{bert_forward_pallas.1} parent=11 // pred_check
          %p583 = pneg %p433
        $region26: #{bert_forward_pallas.1} parent=11 // pred_check_branch
          %585 = sbr.rel (%p583) target = $region28
        $region27: #{bert_forward_pallas.1} parent=11 // pred_region
          _
        $region28: #{bert_forward_pallas.1} parent=11 // pred_fallthru
          _
        // Predicated region
        $region29: #{bert_forward_pallas.1} parent=11 // pred_check
          %p586 = pneg %p454
        $region30: #{bert_forward_pallas.1} parent=11 // pred_check_branch
          %588 = sbr.rel (%p586) target = $region32
        $region31: #{bert_forward_pallas.1} parent=11 // pred_region
          _
        $region32: #{bert_forward_pallas.1} parent=11 // pred_fallthru
          _
        // Predicated region
        $region33: #{bert_forward_pallas.1} parent=11 // pred_check
          %p589 = pneg %p475
        $region34: #{bert_forward_pallas.1} parent=11 // pred_check_branch
          %591 = sbr.rel (%p589) target = $region36
        $region35: #{bert_forward_pallas.1} parent=11 // pred_region
          _
        $region36: #{bert_forward_pallas.1} parent=11 // pred_fallthru
          _
        // Predicated region
        $region37: #{bert_forward_pallas.1} parent=11 // pred_check
          %p592 = pneg %p496
        $region38: #{bert_forward_pallas.1} parent=11 // pred_check_branch
          %594 = sbr.rel (%p592) target = $region40
        $region39: #{bert_forward_pallas.1} parent=11 // pred_region
          _
        $region40: #{bert_forward_pallas.1} parent=11 // pred_fallthru
          _
        // Predicated region
        $region41: #{bert_forward_pallas.1} parent=11 // pred_check
          %p595 = pneg %p517
        $region42: #{bert_forward_pallas.1} parent=11 // pred_check_branch
          %597 = sbr.rel (%p595) target = $region44
        $region43: #{bert_forward_pallas.1} parent=11 // pred_region
          %599 = vsyncadd [#allocation10], 0
          %s600 = sshll.u32 %s19, 4
          %s601 = int_to_ptr.hbm [resolvable:$true] %s600
          %s602 = sshll.u32 [#allocation11], 4
          %s603 = int_to_ptr.vmem [resolvable:$true] %s602
          %608 = dma.hbm_to_vmem [thread:$0]  %s601, 8192, %s603, [#allocation10], 256, 256, 16
        $region44: #{bert_forward_pallas.1} parent=11 // pred_fallthru
          _
        // Predicated region
        $region45: #{bert_forward_pallas.1} parent=11 // pred_check
          %p609 = pneg %p538
        $region46: #{bert_forward_pallas.1} parent=11 // pred_check_branch
          %611 = sbr.rel (%p609) target = $region48
        $region47: #{bert_forward_pallas.1} parent=11 // pred_region
          _
        $region48: #{bert_forward_pallas.1} parent=11 // pred_fallthru
          _
      $region12: #{bert_forward_pallas.1} parent=5 // pred_fallthru
        _
      %p612 = scmp.lt.s32.totalorder %s37, 2
      // Predicated region
      $region49: #{bert_forward_pallas.1} parent=5 // pred_check
        %p613 = pneg %p612
      $region50: #{bert_forward_pallas.1} parent=5 // pred_check_branch
        %615 = sbr.rel (%p613) target = $region52
      $region51: #{bert_forward_pallas.1} parent=5 // pred_region
        // Predicated region
        $region53: #{bert_forward_pallas.1} parent=51 // pred_check
          %p616 = pneg %p120
        $region54: #{bert_forward_pallas.1} parent=51 // pred_check_branch
          %618 = sbr.rel (%p616) target = $region56
        $region55: #{bert_forward_pallas.1} parent=51 // pred_region
          %s619 = sand.u32 %s110, 1
          %s620 = scalar_lea.sflag [#allocation4], %s619
          %s621 = sand.u32 %s110, 1
          %s622 = smul.addr %s621, 768
          %s623 = scalar_lea.vmem [#allocation3], %s622
          %625 = vsyncadd %s620, 0
          %s626 = smul.addr %s37, 192
          %s627 = smul.addr %s626, 4
          %s628 = scalar_lea.hbm %s3, %s627
          %s629 = sshll.u32 %s628, 4
          %s630 = int_to_ptr.hbm [resolvable:$true] %s629
          %s631 = sshll.u32 %s623, 4
          %s632 = int_to_ptr.vmem [resolvable:$true] %s631
          %637 = dma.hbm_to_vmem [thread:$0]  %s630, 12288, %s632, %s620, 384, 384, 24
        $region56: #{bert_forward_pallas.1} parent=51 // pred_fallthru
          _
        // Predicated region
        $region57: #{bert_forward_pallas.1} parent=51 // pred_check
          %p638 = pneg %p146
        $region58: #{bert_forward_pallas.1} parent=51 // pred_check_branch
          %640 = sbr.rel (%p638) target = $region60
        $region59: #{bert_forward_pallas.1} parent=51 // pred_region
          %p641 = scmp.lt.s32.totalorder %s37, 1
          %s642 = scalar_select %p641, %s37, 1
          %s643 = smul.addr %s642, 6
          %s644 = scalar_lea.vmem %s4, %s643
        $region60: #{bert_forward_pallas.1} parent=51 // pred_fallthru
          _
        // Predicated region
        $region61: #{bert_forward_pallas.1} parent=51 // pred_check
          %p645 = pneg %p172
        $region62: #{bert_forward_pallas.1} parent=51 // pred_check_branch
          %647 = sbr.rel (%p645) target = $region64
        $region63: #{bert_forward_pallas.1} parent=51 // pred_region
          %s648 = sand.u32 %s37, 1
          %s649 = scalar_lea.sflag [#allocation7], %s648
          %s650 = sand.u32 %s162, 1
          %s651 = smul.addr %s650, 256
          %s652 = scalar_lea.vmem [#allocation6], %s651
          %654 = vsyncadd %s649, 0
          %s655 = smul.addr %s37, 64
          %s656 = smul.addr %s655, 4
          %s657 = scalar_lea.hbm %s5, %s656
          %s658 = sshll.u32 %s657, 4
          %s659 = int_to_ptr.hbm [resolvable:$true] %s658
          %s660 = sshll.u32 %s652, 4
          %s661 = int_to_ptr.vmem [resolvable:$true] %s660
          %666 = dma.hbm_to_vmem [thread:$0]  %s659, 4096, %s661, %s649, 128, 128, 8
        $region64: #{bert_forward_pallas.1} parent=51 // pred_fallthru
          _
        // Predicated region
        $region65: #{bert_forward_pallas.1} parent=51 // pred_check
          %p667 = pneg %p198
        $region66: #{bert_forward_pallas.1} parent=51 // pred_check_branch
          %669 = sbr.rel (%p667) target = $region68
        $region67: #{bert_forward_pallas.1} parent=51 // pred_region
          %p670 = scmp.lt.s32.totalorder %s37, 1
          %s671 = scalar_select %p670, %s37, 1
          %s672 = smul.addr %s671, 2
          %s673 = scalar_lea.vmem %s6, %s672
        $region68: #{bert_forward_pallas.1} parent=51 // pred_fallthru
          _
        // Predicated region
        $region69: #{bert_forward_pallas.1} parent=51 // pred_check
          %p674 = pneg %p224
        $region70: #{bert_forward_pallas.1} parent=51 // pred_check_branch
          %676 = sbr.rel (%p674) target = $region72
        $region71: #{bert_forward_pallas.1} parent=51 // pred_region
          %p677 = scmp.lt.s32.totalorder %s37, 1
          %s678 = scalar_select %p677, %s37, 1
          %s679 = smul.addr %s678, 2
          %s680 = scalar_lea.vmem %s7, %s679
        $region72: #{bert_forward_pallas.1} parent=51 // pred_fallthru
          _
        // Predicated region
        $region73: #{bert_forward_pallas.1} parent=51 // pred_check
          %p681 = pneg %p250
        $region74: #{bert_forward_pallas.1} parent=51 // pred_check_branch
          %683 = sbr.rel (%p681) target = $region76
        $region75: #{bert_forward_pallas.1} parent=51 // pred_region
          %p684 = scmp.lt.s32.totalorder %s37, 1
          %s685 = scalar_select %p684, %s37, 1
          %s686 = smul.addr %s685, 2
          %s687 = scalar_lea.vmem %s8, %s686
        $region76: #{bert_forward_pallas.1} parent=51 // pred_fallthru
          _
        // Predicated region
        $region77: #{bert_forward_pallas.1} parent=51 // pred_check
          %p688 = pneg %p276
        $region78: #{bert_forward_pallas.1} parent=51 // pred_check_branch
          %690 = sbr.rel (%p688) target = $region80
        $region79: #{bert_forward_pallas.1} parent=51 // pred_region
          %s691 = sand.u32 %s37, 1
          %s692 = scalar_lea.sflag [#allocation7], %s691
          %s693 = sand.u32 %s266, 1
          %s694 = smul.addr %s693, 1024
          %s695 = scalar_lea.vmem [#allocation8], %s694
          %697 = vsyncadd %s692, 0
          %s698 = smul.addr %s37, 256
          %s699 = smul.addr %s698, 4
          %s700 = scalar_lea.hbm %s9, %s699
          %s701 = sshll.u32 %s700, 4
          %s702 = int_to_ptr.hbm [resolvable:$true] %s701
          %s703 = sshll.u32 %s695, 4
          %s704 = int_to_ptr.vmem [resolvable:$true] %s703
          %709 = dma.hbm_to_vmem [thread:$0]  %s702, 16384, %s704, %s692, 512, 512, 32
        $region80: #{bert_forward_pallas.1} parent=51 // pred_fallthru
          _
        // Predicated region
        $region81: #{bert_forward_pallas.1} parent=51 // pred_check
          %p710 = pneg %p302
        $region82: #{bert_forward_pallas.1} parent=51 // pred_check_branch
          %712 = sbr.rel (%p710) target = $region84
        $region83: #{bert_forward_pallas.1} parent=51 // pred_region
          %p713 = scmp.lt.s32.totalorder %s37, 1
          %s714 = scalar_select %p713, %s37, 1
          %s715 = smul.addr %s714, 8
          %s716 = scalar_lea.vmem %s10, %s715
        $region84: #{bert_forward_pallas.1} parent=51 // pred_fallthru
          _
        // Predicated region
        $region85: #{bert_forward_pallas.1} parent=51 // pred_check
          %p717 = pneg %p328
        $region86: #{bert_forward_pallas.1} parent=51 // pred_check_branch
          %719 = sbr.rel (%p717) target = $region88
        $region87: #{bert_forward_pallas.1} parent=51 // pred_region
          %s720 = sand.u32 %s37, 1
          %s721 = scalar_lea.sflag [#allocation10], %s720
          %s722 = sand.u32 %s318, 1
          %s723 = smul.addr %s722, 1024
          %s724 = scalar_lea.vmem [#allocation9], %s723
          %726 = vsyncadd %s721, 0
          %s727 = smul.addr %s37, 256
          %s728 = smul.addr %s727, 4
          %s729 = scalar_lea.hbm %s11, %s728
          %s730 = sshll.u32 %s729, 4
          %s731 = int_to_ptr.hbm [resolvable:$true] %s730
          %s732 = sshll.u32 %s724, 4
          %s733 = int_to_ptr.vmem [resolvable:$true] %s732
          %738 = dma.hbm_to_vmem [thread:$0]  %s731, 16384, %s733, %s721, 128, 128, 8
        $region88: #{bert_forward_pallas.1} parent=51 // pred_fallthru
          _
        // Predicated region
        $region89: #{bert_forward_pallas.1} parent=51 // pred_check
          %p739 = pneg %p354
        $region90: #{bert_forward_pallas.1} parent=51 // pred_check_branch
          %741 = sbr.rel (%p739) target = $region92
        $region91: #{bert_forward_pallas.1} parent=51 // pred_region
          %p742 = scmp.lt.s32.totalorder %s37, 1
          %s743 = scalar_select %p742, %s37, 1
          %s744 = smul.addr %s743, 2
          %s745 = scalar_lea.vmem %s12, %s744
        $region92: #{bert_forward_pallas.1} parent=51 // pred_fallthru
          _
        // Predicated region
        $region93: #{bert_forward_pallas.1} parent=51 // pred_check
          %p746 = pneg %p380
        $region94: #{bert_forward_pallas.1} parent=51 // pred_check_branch
          %748 = sbr.rel (%p746) target = $region96
        $region95: #{bert_forward_pallas.1} parent=51 // pred_region
          %p749 = scmp.lt.s32.totalorder %s37, 1
          %s750 = scalar_select %p749, %s37, 1
          %s751 = smul.addr %s750, 2
          %s752 = scalar_lea.vmem %s13, %s751
        $region96: #{bert_forward_pallas.1} parent=51 // pred_fallthru
          _
        // Predicated region
        $region97: #{bert_forward_pallas.1} parent=51 // pred_check
          %p753 = pneg %p406
        $region98: #{bert_forward_pallas.1} parent=51 // pred_check_branch
          %755 = sbr.rel (%p753) target = $region100
        $region99: #{bert_forward_pallas.1} parent=51 // pred_region
          %p756 = scmp.lt.s32.totalorder %s37, 1
          %s757 = scalar_select %p756, %s37, 1
          %s758 = smul.addr %s757, 2
          %s759 = scalar_lea.vmem %s14, %s758
        $region100: #{bert_forward_pallas.1} parent=51 // pred_fallthru
          _
      $region52: #{bert_forward_pallas.1} parent=5 // pred_fallthru
        _
      %p760 = scmp.le.s32.totalorder 1, %s37
      %p761 = scmp.lt.s32.totalorder %s37, 3
      %p762 = pnand %p760, %p761
      %p763 = pneg %p762
      // Predicated region
      $region101: #{bert_forward_pallas.1} parent=5 // pred_check
        _
      $region102: #{bert_forward_pallas.1} parent=5 // pred_check_branch
        %765 = sbr.rel (%p762) target = $region104
      $region103: #{bert_forward_pallas.1} parent=5 // pred_region
        %s766 = ssub.s32 %s37, 1
        %s767 = sand.u32 %s113, 1
        %s768 = scalar_lea.sflag [#allocation4], %s767
        %s769 = sand.u32 %s113, 1
        %s770 = smul.addr %s769, 768
        %s771 = scalar_lea.vmem [#allocation3], %s770
        // Predicated region
        $region105: #{bert_forward_pallas.1} parent=103 // pred_check
          %p772 = pneg %p126
        $region106: #{bert_forward_pallas.1} parent=103 // pred_check_branch
          %774 = sbr.rel (%p772) target = $region108
        $region107: #{bert_forward_pallas.1} parent=103 // pred_region
          %776 = dma.done %s768, 12288
        $region108: #{bert_forward_pallas.1} parent=103 // pred_fallthru
          _
        %s777 = sand.u32 %s42, 1
        %s778 = scalar_lea.sflag [#allocation7], %s777
        %s779 = sand.u32 %s165, 1
        %s780 = smul.addr %s779, 256
        %s781 = scalar_lea.vmem [#allocation6], %s780
        // Predicated region
        $region109: #{bert_forward_pallas.1} parent=103 // pred_check
          %p782 = pneg %p178
        $region110: #{bert_forward_pallas.1} parent=103 // pred_check_branch
          %784 = sbr.rel (%p782) target = $region112
        $region111: #{bert_forward_pallas.1} parent=103 // pred_region
          %786 = dma.done %s778, 4096
        $region112: #{bert_forward_pallas.1} parent=103 // pred_fallthru
          _
        %s787 = sand.u32 %s42, 1
        %s788 = scalar_lea.sflag [#allocation7], %s787
        %s789 = sand.u32 %s269, 1
        %s790 = smul.addr %s789, 1024
        %s791 = scalar_lea.vmem [#allocation8], %s790
        // Predicated region
        $region113: #{bert_forward_pallas.1} parent=103 // pred_check
          %p792 = pneg %p282
        $region114: #{bert_forward_pallas.1} parent=103 // pred_check_branch
          %794 = sbr.rel (%p792) target = $region116
        $region115: #{bert_forward_pallas.1} parent=103 // pred_region
          %796 = dma.done %s788, 16384
        $region116: #{bert_forward_pallas.1} parent=103 // pred_fallthru
          _
        %s797 = sand.u32 %s42, 1
        %s798 = scalar_lea.sflag [#allocation10], %s797
        %s799 = sand.u32 %s321, 1
        %s800 = smul.addr %s799, 1024
        %s801 = scalar_lea.vmem [#allocation9], %s800
        // Predicated region
        $region117: #{bert_forward_pallas.1} parent=103 // pred_check
          %p802 = pneg %p334
        $region118: #{bert_forward_pallas.1} parent=103 // pred_check_branch
          %804 = sbr.rel (%p802) target = $region120
        $region119: #{bert_forward_pallas.1} parent=103 // pred_region
          %806 = dma.done %s798, 16384
        $region120: #{bert_forward_pallas.1} parent=103 // pred_fallthru
          _
        // Predicated region
        $region121: #{bert_forward_pallas.1} parent=103 // pred_check
          %p807 = pneg %p517
        $region122: #{bert_forward_pallas.1} parent=103 // pred_check_branch
          %809 = sbr.rel (%p807) target = $region124
        $region123: #{bert_forward_pallas.1} parent=103 // pred_region
          %811 = dma.done [#allocation10], 8192
        $region124: #{bert_forward_pallas.1} parent=103 // pred_fallthru
          _
        %p812 = pneg %p58
        %p813 = pneg %p55
        %p814 = pneg %p79
        %p815 = pneg %p76
        %p816 = pneg %p100
        %p817 = pneg %p97
        %s818 = sand.u32 %s113, 1
        %s819 = scalar_lea.sflag [#allocation4], %s818
        %s820 = sand.u32 %s113, 1
        %s821 = smul.addr %s820, 768
        %s822 = scalar_lea.vmem [#allocation3], %s821
        %p823 = pneg %p126
        %p824 = pneg %p123
        %p825 = scmp.lt.s32.totalorder %s42, 1
        %s826 = scalar_select %p825, %s42, 1
        %s827 = smul.addr %s826, 6
        %s828 = scalar_lea.vmem %s4, %s827
        %p829 = pneg %p152
        %p830 = pneg %p149
        %s831 = sand.u32 %s42, 1
        %s832 = scalar_lea.sflag [#allocation7], %s831
        %s833 = sand.u32 %s165, 1
        %s834 = smul.addr %s833, 256
        %s835 = scalar_lea.vmem [#allocation6], %s834
        %p836 = pneg %p178
        %p837 = pneg %p175
        %p838 = scmp.lt.s32.totalorder %s42, 1
        %s839 = scalar_select %p838, %s42, 1
        %s840 = smul.addr %s839, 2
        %s841 = scalar_lea.vmem %s6, %s840
        %p842 = pneg %p204
        %p843 = pneg %p201
        %p844 = scmp.lt.s32.totalorder %s42, 1
        %s845 = scalar_select %p844, %s42, 1
        %s846 = smul.addr %s845, 2
        %s847 = scalar_lea.vmem %s7, %s846
        %p848 = pneg %p230
        %p849 = pneg %p227
        %p850 = scmp.lt.s32.totalorder %s42, 1
        %s851 = scalar_select %p850, %s42, 1
        %s852 = smul.addr %s851, 2
        %s853 = scalar_lea.vmem %s8, %s852
        %p854 = pneg %p256
        %p855 = pneg %p253
        %s856 = sand.u32 %s42, 1
        %s857 = scalar_lea.sflag [#allocation7], %s856
        %s858 = sand.u32 %s269, 1
        %s859 = smul.addr %s858, 1024
        %s860 = scalar_lea.vmem [#allocation8], %s859
        %p861 = pneg %p282
        %p862 = pneg %p279
        %p863 = scmp.lt.s32.totalorder %s42, 1
        %s864 = scalar_select %p863, %s42, 1
        %s865 = smul.addr %s864, 8
        %s866 = scalar_lea.vmem %s10, %s865
        %p867 = pneg %p308
        %p868 = pneg %p305
        %s869 = sand.u32 %s42, 1
        %s870 = scalar_lea.sflag [#allocation10], %s869
        %s871 = sand.u32 %s321, 1
        %s872 = smul.addr %s871, 1024
        %s873 = scalar_lea.vmem [#allocation9], %s872
        %p874 = pneg %p334
        %p875 = pneg %p331
        %p876 = scmp.lt.s32.totalorder %s42, 1
        %s877 = scalar_select %p876, %s42, 1
        %s878 = smul.addr %s877, 2
        %s879 = scalar_lea.vmem %s12, %s878
        %p880 = pneg %p360
        %p881 = pneg %p357
        %p882 = scmp.lt.s32.totalorder %s42, 1
        %s883 = scalar_select %p882, %s42, 1
        %s884 = smul.addr %s883, 2
        %s885 = scalar_lea.vmem %s13, %s884
        %p886 = pneg %p386
        %p887 = pneg %p383
        %p888 = scmp.lt.s32.totalorder %s42, 1
        %s889 = scalar_select %p888, %s42, 1
        %s890 = smul.addr %s889, 2
        %s891 = scalar_lea.vmem %s14, %s890
        %p892 = pneg %p412
        %p893 = pneg %p409
        %p894 = pneg %p433
        %p895 = pneg %p430
        %p896 = pneg %p454
        %p897 = pneg %p451
        %p898 = pneg %p475
        %p899 = pneg %p472
        %p900 = pneg %p496
        %p901 = pneg %p493
        %p902 = pneg %p517
        %p903 = pneg %p514
        %p904 = pneg %p538
        %p905 = pneg %p535
        %p906 = pneg %p559
        %p907 = pneg %p556
        %p908 = scmp.lt.s32.totalorder %s42, 1
        %s909 = scalar_select %p908, %s42, 1
        %s910 = smul.addr %s909, 6
        %s911 = scalar_lea.vmem %s4, %s910
        %p912 = scmp.lt.s32.totalorder %s42, 1
        %s913 = scalar_select %p912, %s42, 1
        %s914 = smul.addr %s913, 2
        %s915 = scalar_lea.vmem %s6, %s914
        %p916 = scmp.lt.s32.totalorder %s42, 1
        %s917 = scalar_select %p916, %s42, 1
        %s918 = smul.addr %s917, 2
        %s919 = scalar_lea.vmem %s7, %s918
        %p920 = scmp.lt.s32.totalorder %s42, 1
        %s921 = scalar_select %p920, %s42, 1
        %s922 = smul.addr %s921, 2
        %s923 = scalar_lea.vmem %s8, %s922
        %p924 = scmp.lt.s32.totalorder %s42, 1
        %s925 = scalar_select %p924, %s42, 1
        %s926 = smul.addr %s925, 8
        %s927 = scalar_lea.vmem %s10, %s926
        %p928 = scmp.lt.s32.totalorder %s42, 1
        %s929 = scalar_select %p928, %s42, 1
        %s930 = smul.addr %s929, 2
        %s931 = scalar_lea.vmem %s12, %s930
        %p932 = scmp.lt.s32.totalorder %s42, 1
        %s933 = scalar_select %p932, %s42, 1
        %s934 = smul.addr %s933, 2
        %s935 = scalar_lea.vmem %s13, %s934
        %p936 = scmp.lt.s32.totalorder %s42, 1
        %s937 = scalar_select %p936, %s42, 1
        %s938 = smul.addr %s937, 2
        %s939 = scalar_lea.vmem %s14, %s938
        %p941 = scmp.eq.s32.totalorder %s42, 0
        // Predicated region
        $region125: #{bert_forward_pallas.1} parent=103 // pred_check
          %p942 = pneg %p941
        $region126: #{bert_forward_pallas.1} parent=103 // pred_check_branch
          %944 = sbr.rel (%p942) target = $region128
        $region127: #{bert_forward_pallas.1} parent=103 // pred_region
          %v945 = vld [vmem:[%s0] sm:$0xff]
          %v946 = vld [vmem:[%s0 + $0x8] sm:$0xff]
          %v947 = vld [vmem:[%s0 + $0x10] sm:$0xff]
          %v948 = vld [vmem:[%s0 + $0x18] sm:$0xff]
          %v949 = vld [vmem:[%s1] sm:$0x3]
          %v950 = vld [vmem:[%s2] sm:$0x3]
          %v951 = vadd.f32 %v945, %v946
          %952 = vadd.xlane.f32.xlu0 %v951
          %v953 = vpop.xlane.xlu0 %952
          %v954 = vadd.f32 %v947, %v948
          %955 = vadd.xlane.f32.xlu0 %v954
          %v956 = vpop.xlane.xlu0 %955
          %v957 = vrcp.pop 256.0
          %v958 = vmul.f32 256.0, %v957
          %v959 = vsub.f32 1.0, %v958
          %v960 = vmul.f32 %v957, %v959
          %v961 = vadd.f32 %v957, %v960
          %vm962 = vweird.f32 %v957
          %v963 = vsel %vm962, %v957, %v961
          %v964 = vmul.f32 %v953, %v963
          %v965 = vmul.f32 %v956, %v963
          %v966 = vsub.f32 %v945, %v964
          %v967 = vsub.f32 %v946, %v964
          %v968 = vsub.f32 %v947, %v965
          %v969 = vsub.f32 %v948, %v965
          %v970 = vmul.f32 %v966, %v966
          %v971 = vmul.f32 %v967, %v967
          %v972 = vmul.f32 %v968, %v968
          %v973 = vmul.f32 %v969, %v969
          %v974 = vadd.f32 %v970, %v971
          %975 = vadd.xlane.f32.xlu0 %v974
          %v976 = vpop.xlane.xlu0 %975
          %v977 = vadd.f32 %v972, %v973
          %978 = vadd.xlane.f32.xlu0 %v977
          %v979 = vpop.xlane.xlu0 %978
          %v980 = vmul.f32 %v976, %v963
          %v981 = vmul.f32 %v979, %v963
          %v982 = vadd.f32 %v980, 1e-12
          %v983 = vadd.f32 %v981, 1e-12
          %v984 = vrsqrt.pop %v982
          %v985 = vmul.f32 %v984, %v982
          %v986 = vmul.f32 %v985, %v984
          %v987 = vmul.f32 0.5, %v986
          %v988 = vsub.f32 1.5, %v987
          %v989 = vmul.f32 %v984, %v988
          %vm990 = vweird.f32 %v982
          %vm991 = vweird.f32 %v984
          %vm992 = vmor %vm990, %vm991
          %v993 = vsel %vm992, %v984, %v989
          %v994 = vrsqrt.pop %v983
          %v995 = vmul.f32 %v994, %v983
          %v996 = vmul.f32 %v995, %v994
          %v997 = vmul.f32 0.5, %v996
          %v998 = vsub.f32 1.5, %v997
          %v999 = vmul.f32 %v994, %v998
          %vm1000 = vweird.f32 %v983
          %vm1001 = vweird.f32 %v994
          %vm1002 = vmor %vm1000, %vm1001
          %v1003 = vsel %vm1002, %v994, %v999
          %v1004 = vmul.f32 %v966, %v993
          %v1005 = vmul.f32 %v967, %v993
          %v1006 = vmul.f32 %v968, %v1003
          %v1007 = vmul.f32 %v969, %v1003
          %v1009 = vperm.slane %v949, 0
          %v1010 = vperm.slane %v949, 1
          %v1013 = vmul.f32 %v1004, %v1009
          %v1014 = vmul.f32 %v1005, %v1010
          %v1015 = vmul.f32 %v1006, %v1009
          %v1016 = vmul.f32 %v1007, %v1010
          %v1018 = vperm.slane %v950, 0
          %v1019 = vperm.slane %v950, 1
          %v1022 = vadd.f32 %v1013, %v1018
          %v1023 = vadd.f32 %v1014, %v1019
          %v1024 = vadd.f32 %v1015, %v1018
          %v1025 = vadd.f32 %v1016, %v1019
          %1026 = vst [vmem:[#allocation2] sm:$0xff] %v1022
          %1027 = vst [vmem:[#allocation2 + $0x8] sm:$0xff] %v1023
          %1028 = vst [vmem:[#allocation2 + $0x10] sm:$0xff] %v1024
          %1029 = vst [vmem:[#allocation2 + $0x18] sm:$0xff] %v1025
        $region128: #{bert_forward_pallas.1} parent=103 // pred_fallthru
          _
        %v1030 = vld [vmem:[#allocation2] sm:$0xff]
        %v1031 = vld [vmem:[#allocation2 + $0x8] sm:$0xff]
        %v1032 = vld [vmem:[#allocation2 + $0x10] sm:$0xff]
        %v1033 = vld [vmem:[#allocation2 + $0x18] sm:$0xff]
        %v1034 = vpack.c.bf16 %v1032, %v1030
        %v1035 = vpack.c.bf16 %v1033, %v1031
        %v1036 = vld [vmem:[%s771] sm:$0xff]
        %v1037 = vld [vmem:[%s771 + $0x8] sm:$0xff]
        %v1038 = vld [vmem:[%s771 + $0x10] sm:$0xff]
        %v1039 = vld [vmem:[%s771 + $0x18] sm:$0xff]
        %v1040 = vld [vmem:[%s771 + $0x20] sm:$0xff]
        %v1041 = vld [vmem:[%s771 + $0x28] sm:$0xff]
        %v1042 = vld [vmem:[%s771 + $0x30] sm:$0xff]
        %v1043 = vld [vmem:[%s771 + $0x38] sm:$0xff]
        %v1044 = vld [vmem:[%s771 + $0x40] sm:$0xff]
        %v1045 = vld [vmem:[%s771 + $0x48] sm:$0xff]
        %v1046 = vld [vmem:[%s771 + $0x50] sm:$0xff]
        %v1047 = vld [vmem:[%s771 + $0x58] sm:$0xff]
        %v1048 = vld [vmem:[%s771 + $0x60] sm:$0xff]
        %v1049 = vld [vmem:[%s771 + $0x68] sm:$0xff]
        %v1050 = vld [vmem:[%s771 + $0x70] sm:$0xff]
        %v1051 = vld [vmem:[%s771 + $0x78] sm:$0xff]
        %v1052 = vld [vmem:[%s771 + $0x80] sm:$0xff]
        %v1053 = vld [vmem:[%s771 + $0x88] sm:$0xff]
        %v1054 = vld [vmem:[%s771 + $0x90] sm:$0xff]
        %v1055 = vld [vmem:[%s771 + $0x98] sm:$0xff]
        %v1056 = vld [vmem:[%s771 + $0xa0] sm:$0xff]
        %v1057 = vld [vmem:[%s771 + $0xa8] sm:$0xff]
        %v1058 = vld [vmem:[%s771 + $0xb0] sm:$0xff]
        %v1059 = vld [vmem:[%s771 + $0xb8] sm:$0xff]
        %v1060 = vld [vmem:[%s771 + $0xc0] sm:$0xff]
        %v1061 = vld [vmem:[%s771 + $0xc8] sm:$0xff]
        %v1062 = vld [vmem:[%s771 + $0xd0] sm:$0xff]
        %v1063 = vld [vmem:[%s771 + $0xd8] sm:$0xff]
        %v1064 = vld [vmem:[%s771 + $0xe0] sm:$0xff]
        %v1065 = vld [vmem:[%s771 + $0xe8] sm:$0xff]
        %v1066 = vld [vmem:[%s771 + $0xf0] sm:$0xff]
        %v1067 = vld [vmem:[%s771 + $0xf8] sm:$0xff]
        %v1068 = vld [vmem:[%s771 + $0x100] sm:$0xff]
        %v1069 = vld [vmem:[%s771 + $0x108] sm:$0xff]
        %v1070 = vld [vmem:[%s771 + $0x110] sm:$0xff]
        %v1071 = vld [vmem:[%s771 + $0x118] sm:$0xff]
        %v1072 = vld [vmem:[%s771 + $0x120] sm:$0xff]
        %v1073 = vld [vmem:[%s771 + $0x128] sm:$0xff]
        %v1074 = vld [vmem:[%s771 + $0x130] sm:$0xff]
        %v1075 = vld [vmem:[%s771 + $0x138] sm:$0xff]
        %v1076 = vld [vmem:[%s771 + $0x140] sm:$0xff]
        %v1077 = vld [vmem:[%s771 + $0x148] sm:$0xff]
        %v1078 = vld [vmem:[%s771 + $0x150] sm:$0xff]
        %v1079 = vld [vmem:[%s771 + $0x158] sm:$0xff]
        %v1080 = vld [vmem:[%s771 + $0x160] sm:$0xff]
        %v1081 = vld [vmem:[%s771 + $0x168] sm:$0xff]
        %v1082 = vld [vmem:[%s771 + $0x170] sm:$0xff]
        %v1083 = vld [vmem:[%s771 + $0x178] sm:$0xff]
        %v1084 = vld [vmem:[%s771 + $0x180] sm:$0xff]
        %v1085 = vld [vmem:[%s771 + $0x188] sm:$0xff]
        %v1086 = vld [vmem:[%s771 + $0x190] sm:$0xff]
        %v1087 = vld [vmem:[%s771 + $0x198] sm:$0xff]
        %v1088 = vld [vmem:[%s771 + $0x1a0] sm:$0xff]
        %v1089 = vld [vmem:[%s771 + $0x1a8] sm:$0xff]
        %v1090 = vld [vmem:[%s771 + $0x1b0] sm:$0xff]
        %v1091 = vld [vmem:[%s771 + $0x1b8] sm:$0xff]
        %v1092 = vld [vmem:[%s771 + $0x1c0] sm:$0xff]
        %v1093 = vld [vmem:[%s771 + $0x1c8] sm:$0xff]
        %v1094 = vld [vmem:[%s771 + $0x1d0] sm:$0xff]
        %v1095 = vld [vmem:[%s771 + $0x1d8] sm:$0xff]
        %v1096 = vld [vmem:[%s771 + $0x1e0] sm:$0xff]
        %v1097 = vld [vmem:[%s771 + $0x1e8] sm:$0xff]
        %v1098 = vld [vmem:[%s771 + $0x1f0] sm:$0xff]
        %v1099 = vld [vmem:[%s771 + $0x1f8] sm:$0xff]
        %v1100 = vld [vmem:[%s771 + $0x200] sm:$0xff]
        %v1101 = vld [vmem:[%s771 + $0x208] sm:$0xff]
        %v1102 = vld [vmem:[%s771 + $0x210] sm:$0xff]
        %v1103 = vld [vmem:[%s771 + $0x218] sm:$0xff]
        %v1104 = vld [vmem:[%s771 + $0x220] sm:$0xff]
        %v1105 = vld [vmem:[%s771 + $0x228] sm:$0xff]
        %v1106 = vld [vmem:[%s771 + $0x230] sm:$0xff]
        %v1107 = vld [vmem:[%s771 + $0x238] sm:$0xff]
        %v1108 = vld [vmem:[%s771 + $0x240] sm:$0xff]
        %v1109 = vld [vmem:[%s771 + $0x248] sm:$0xff]
        %v1110 = vld [vmem:[%s771 + $0x250] sm:$0xff]
        %v1111 = vld [vmem:[%s771 + $0x258] sm:$0xff]
        %v1112 = vld [vmem:[%s771 + $0x260] sm:$0xff]
        %v1113 = vld [vmem:[%s771 + $0x268] sm:$0xff]
        %v1114 = vld [vmem:[%s771 + $0x270] sm:$0xff]
        %v1115 = vld [vmem:[%s771 + $0x278] sm:$0xff]
        %v1116 = vld [vmem:[%s771 + $0x280] sm:$0xff]
        %v1117 = vld [vmem:[%s771 + $0x288] sm:$0xff]
        %v1118 = vld [vmem:[%s771 + $0x290] sm:$0xff]
        %v1119 = vld [vmem:[%s771 + $0x298] sm:$0xff]
        %v1120 = vld [vmem:[%s771 + $0x2a0] sm:$0xff]
        %v1121 = vld [vmem:[%s771 + $0x2a8] sm:$0xff]
        %v1122 = vld [vmem:[%s771 + $0x2b0] sm:$0xff]
        %v1123 = vld [vmem:[%s771 + $0x2b8] sm:$0xff]
        %v1124 = vld [vmem:[%s771 + $0x2c0] sm:$0xff]
        %v1125 = vld [vmem:[%s771 + $0x2c8] sm:$0xff]
        %v1126 = vld [vmem:[%s771 + $0x2d0] sm:$0xff]
        %v1127 = vld [vmem:[%s771 + $0x2d8] sm:$0xff]
        %v1128 = vld [vmem:[%s771 + $0x2e0] sm:$0xff]
        %v1129 = vld [vmem:[%s771 + $0x2e8] sm:$0xff]
        %v1130 = vld [vmem:[%s771 + $0x2f0] sm:$0xff]
        %v1131 = vld [vmem:[%s771 + $0x2f8] sm:$0xff]
        %v1132 = vld [vmem:[%s911] sm:$0x3f]
        %v1134 = vperm.slane %v1132, 0
        %v1135 = vperm.slane %v1132, 1
        %v1136 = vperm.slane %v1132, 2
        %v1137 = vperm.slane %v1132, 3
        %v1138 = vperm.slane %v1132, 4
        %v1139 = vperm.slane %v1132, 5
        %v1242 = vunpack.c.l.b16 %v1036
        %v1243 = vunpack.c.h.b16 %v1036
        %v1244 = vunpack.c.l.b16 %v1037
        %v1245 = vunpack.c.h.b16 %v1037
        %v1246 = vunpack.c.l.b16 %v1038
        %v1247 = vunpack.c.h.b16 %v1038
        %v1248 = vunpack.c.l.b16 %v1039
        %v1249 = vunpack.c.h.b16 %v1039
        %v1250 = vunpack.c.l.b16 %v1040
        %v1251 = vunpack.c.h.b16 %v1040
        %v1252 = vunpack.c.l.b16 %v1041
        %v1253 = vunpack.c.h.b16 %v1041
        %v1254 = vunpack.c.l.b16 %v1042
        %v1255 = vunpack.c.h.b16 %v1042
        %v1256 = vunpack.c.l.b16 %v1043
        %v1257 = vunpack.c.h.b16 %v1043
        %v1258 = vunpack.c.l.b16 %v1044
        %v1259 = vunpack.c.h.b16 %v1044
        %v1260 = vunpack.c.l.b16 %v1045
        %v1261 = vunpack.c.h.b16 %v1045
        %v1262 = vunpack.c.l.b16 %v1046
        %v1263 = vunpack.c.h.b16 %v1046
        %v1264 = vunpack.c.l.b16 %v1047
        %v1265 = vunpack.c.h.b16 %v1047
        %v1266 = vunpack.c.l.b16 %v1048
        %v1267 = vunpack.c.h.b16 %v1048
        %v1268 = vunpack.c.l.b16 %v1049
        %v1269 = vunpack.c.h.b16 %v1049
        %v1270 = vunpack.c.l.b16 %v1050
        %v1271 = vunpack.c.h.b16 %v1050
        %v1272 = vunpack.c.l.b16 %v1051
        %v1273 = vunpack.c.h.b16 %v1051
        %v1274 = vunpack.c.l.b16 %v1052
        %v1275 = vunpack.c.h.b16 %v1052
        %v1276 = vunpack.c.l.b16 %v1053
        %v1277 = vunpack.c.h.b16 %v1053
        %v1278 = vunpack.c.l.b16 %v1054
        %v1279 = vunpack.c.h.b16 %v1054
        %v1280 = vunpack.c.l.b16 %v1055
        %v1281 = vunpack.c.h.b16 %v1055
        %v1282 = vunpack.c.l.b16 %v1056
        %v1283 = vunpack.c.h.b16 %v1056
        %v1284 = vunpack.c.l.b16 %v1057
        %v1285 = vunpack.c.h.b16 %v1057
        %v1286 = vunpack.c.l.b16 %v1058
        %v1287 = vunpack.c.h.b16 %v1058
        %v1288 = vunpack.c.l.b16 %v1059
        %v1289 = vunpack.c.h.b16 %v1059
        %v1290 = vunpack.c.l.b16 %v1060
        %v1291 = vunpack.c.h.b16 %v1060
        %v1292 = vunpack.c.l.b16 %v1061
        %v1293 = vunpack.c.h.b16 %v1061
        %v1294 = vunpack.c.l.b16 %v1062
        %v1295 = vunpack.c.h.b16 %v1062
        %v1296 = vunpack.c.l.b16 %v1063
        %v1297 = vunpack.c.h.b16 %v1063
        %v1298 = vunpack.c.l.b16 %v1064
        %v1299 = vunpack.c.h.b16 %v1064
        %v1300 = vunpack.c.l.b16 %v1065
        %v1301 = vunpack.c.h.b16 %v1065
        %v1302 = vunpack.c.l.b16 %v1066
        %v1303 = vunpack.c.h.b16 %v1066
        %v1304 = vunpack.c.l.b16 %v1067
        %v1305 = vunpack.c.h.b16 %v1067
        %v1306 = vunpack.c.l.b16 %v1068
        %v1307 = vunpack.c.h.b16 %v1068
        %v1308 = vunpack.c.l.b16 %v1069
        %v1309 = vunpack.c.h.b16 %v1069
        %v1310 = vunpack.c.l.b16 %v1070
        %v1311 = vunpack.c.h.b16 %v1070
        %v1312 = vunpack.c.l.b16 %v1071
        %v1313 = vunpack.c.h.b16 %v1071
        %v1314 = vunpack.c.l.b16 %v1072
        %v1315 = vunpack.c.h.b16 %v1072
        %v1316 = vunpack.c.l.b16 %v1073
        %v1317 = vunpack.c.h.b16 %v1073
        %v1318 = vunpack.c.l.b16 %v1074
        %v1319 = vunpack.c.h.b16 %v1074
        %v1320 = vunpack.c.l.b16 %v1075
        %v1321 = vunpack.c.h.b16 %v1075
        %v1322 = vunpack.c.l.b16 %v1076
        %v1323 = vunpack.c.h.b16 %v1076
        %v1324 = vunpack.c.l.b16 %v1077
        %v1325 = vunpack.c.h.b16 %v1077
        %v1326 = vunpack.c.l.b16 %v1078
        %v1327 = vunpack.c.h.b16 %v1078
        %v1328 = vunpack.c.l.b16 %v1079
        %v1329 = vunpack.c.h.b16 %v1079
        %v1330 = vunpack.c.l.b16 %v1080
        %v1331 = vunpack.c.h.b16 %v1080
        %v1332 = vunpack.c.l.b16 %v1081
        %v1333 = vunpack.c.h.b16 %v1081
        %v1334 = vunpack.c.l.b16 %v1082
        %v1335 = vunpack.c.h.b16 %v1082
        %v1336 = vunpack.c.l.b16 %v1083
        %v1337 = vunpack.c.h.b16 %v1083
        %v1338 = vunpack.c.l.b16 %v1084
        %v1339 = vunpack.c.h.b16 %v1084
        %v1340 = vunpack.c.l.b16 %v1085
        %v1341 = vunpack.c.h.b16 %v1085
        %v1342 = vunpack.c.l.b16 %v1086
        %v1343 = vunpack.c.h.b16 %v1086
        %v1344 = vunpack.c.l.b16 %v1087
        %v1345 = vunpack.c.h.b16 %v1087
        %v1346 = vunpack.c.l.b16 %v1088
        %v1347 = vunpack.c.h.b16 %v1088
        %v1348 = vunpack.c.l.b16 %v1089
        %v1349 = vunpack.c.h.b16 %v1089
        %v1350 = vunpack.c.l.b16 %v1090
        %v1351 = vunpack.c.h.b16 %v1090
        %v1352 = vunpack.c.l.b16 %v1091
        %v1353 = vunpack.c.h.b16 %v1091
        %v1354 = vunpack.c.l.b16 %v1092
        %v1355 = vunpack.c.h.b16 %v1092
        %v1356 = vunpack.c.l.b16 %v1093
        %v1357 = vunpack.c.h.b16 %v1093
        %v1358 = vunpack.c.l.b16 %v1094
        %v1359 = vunpack.c.h.b16 %v1094
        %v1360 = vunpack.c.l.b16 %v1095
        %v1361 = vunpack.c.h.b16 %v1095
        %v1362 = vunpack.c.l.b16 %v1096
        %v1363 = vunpack.c.h.b16 %v1096
        %v1364 = vunpack.c.l.b16 %v1097
        %v1365 = vunpack.c.h.b16 %v1097
        %v1366 = vunpack.c.l.b16 %v1098
        %v1367 = vunpack.c.h.b16 %v1098
        %v1368 = vunpack.c.l.b16 %v1099
        %v1369 = vunpack.c.h.b16 %v1099
        %v1370 = vunpack.c.l.b16 %v1100
        %v1371 = vunpack.c.h.b16 %v1100
        %v1372 = vunpack.c.l.b16 %v1101
        %v1373 = vunpack.c.h.b16 %v1101
        %v1374 = vunpack.c.l.b16 %v1102
        %v1375 = vunpack.c.h.b16 %v1102
        %v1376 = vunpack.c.l.b16 %v1103
        %v1377 = vunpack.c.h.b16 %v1103
        %v1378 = vunpack.c.l.b16 %v1104
        %v1379 = vunpack.c.h.b16 %v1104
        %v1380 = vunpack.c.l.b16 %v1105
        %v1381 = vunpack.c.h.b16 %v1105
        %v1382 = vunpack.c.l.b16 %v1106
        %v1383 = vunpack.c.h.b16 %v1106
        %v1384 = vunpack.c.l.b16 %v1107
        %v1385 = vunpack.c.h.b16 %v1107
        %v1386 = vunpack.c.l.b16 %v1108
        %v1387 = vunpack.c.h.b16 %v1108
        %v1388 = vunpack.c.l.b16 %v1109
        %v1389 = vunpack.c.h.b16 %v1109
        %v1390 = vunpack.c.l.b16 %v1110
        %v1391 = vunpack.c.h.b16 %v1110
        %v1392 = vunpack.c.l.b16 %v1111
        %v1393 = vunpack.c.h.b16 %v1111
        %v1394 = vunpack.c.l.b16 %v1112
        %v1395 = vunpack.c.h.b16 %v1112
        %v1396 = vunpack.c.l.b16 %v1113
        %v1397 = vunpack.c.h.b16 %v1113
        %v1398 = vunpack.c.l.b16 %v1114
        %v1399 = vunpack.c.h.b16 %v1114
        %v1400 = vunpack.c.l.b16 %v1115
        %v1401 = vunpack.c.h.b16 %v1115
        %v1402 = vunpack.c.l.b16 %v1116
        %v1403 = vunpack.c.h.b16 %v1116
        %v1404 = vunpack.c.l.b16 %v1117
        %v1405 = vunpack.c.h.b16 %v1117
        %v1406 = vunpack.c.l.b16 %v1118
        %v1407 = vunpack.c.h.b16 %v1118
        %v1408 = vunpack.c.l.b16 %v1119
        %v1409 = vunpack.c.h.b16 %v1119
        %v1410 = vunpack.c.l.b16 %v1120
        %v1411 = vunpack.c.h.b16 %v1120
        %v1412 = vunpack.c.l.b16 %v1121
        %v1413 = vunpack.c.h.b16 %v1121
        %v1414 = vunpack.c.l.b16 %v1122
        %v1415 = vunpack.c.h.b16 %v1122
        %v1416 = vunpack.c.l.b16 %v1123
        %v1417 = vunpack.c.h.b16 %v1123
        %v1418 = vunpack.c.l.b16 %v1124
        %v1419 = vunpack.c.h.b16 %v1124
        %v1420 = vunpack.c.l.b16 %v1125
        %v1421 = vunpack.c.h.b16 %v1125
        %v1422 = vunpack.c.l.b16 %v1126
        %v1423 = vunpack.c.h.b16 %v1126
        %v1424 = vunpack.c.l.b16 %v1127
        %v1425 = vunpack.c.h.b16 %v1127
        %v1426 = vunpack.c.l.b16 %v1128
        %v1427 = vunpack.c.h.b16 %v1128
        %v1428 = vunpack.c.l.b16 %v1129
        %v1429 = vunpack.c.h.b16 %v1129
        %v1430 = vunpack.c.l.b16 %v1130
        %v1431 = vunpack.c.h.b16 %v1130
        %v1432 = vunpack.c.l.b16 %v1131
        %v1433 = vunpack.c.h.b16 %v1131
        %v1434 = vpack.c.b16 %v1248, %v1242
        %v1435 = vpack.c.b16 %v1249, %v1243
        %v1436 = vpack.c.b16 %v1250, %v1244
        %v1437 = vpack.c.b16 %v1251, %v1245
        %v1438 = vpack.c.b16 %v1252, %v1246
        %v1439 = vpack.c.b16 %v1253, %v1247
        %v1440 = vpack.c.b16 %v1260, %v1254
        %v1441 = vpack.c.b16 %v1261, %v1255
        %v1442 = vpack.c.b16 %v1262, %v1256
        %v1443 = vpack.c.b16 %v1263, %v1257
        %v1444 = vpack.c.b16 %v1264, %v1258
        %v1445 = vpack.c.b16 %v1265, %v1259
        %v1446 = vpack.c.b16 %v1272, %v1266
        %v1447 = vpack.c.b16 %v1273, %v1267
        %v1448 = vpack.c.b16 %v1274, %v1268
        %v1449 = vpack.c.b16 %v1275, %v1269
        %v1450 = vpack.c.b16 %v1276, %v1270
        %v1451 = vpack.c.b16 %v1277, %v1271
        %v1452 = vpack.c.b16 %v1284, %v1278
        %v1453 = vpack.c.b16 %v1285, %v1279
        %v1454 = vpack.c.b16 %v1286, %v1280
        %v1455 = vpack.c.b16 %v1287, %v1281
        %v1456 = vpack.c.b16 %v1288, %v1282
        %v1457 = vpack.c.b16 %v1289, %v1283
        %v1458 = vpack.c.b16 %v1296, %v1290
        %v1459 = vpack.c.b16 %v1297, %v1291
        %v1460 = vpack.c.b16 %v1298, %v1292
        %v1461 = vpack.c.b16 %v1299, %v1293
        %v1462 = vpack.c.b16 %v1300, %v1294
        %v1463 = vpack.c.b16 %v1301, %v1295
        %v1464 = vpack.c.b16 %v1308, %v1302
        %v1465 = vpack.c.b16 %v1309, %v1303
        %v1466 = vpack.c.b16 %v1310, %v1304
        %v1467 = vpack.c.b16 %v1311, %v1305
        %v1468 = vpack.c.b16 %v1312, %v1306
        %v1469 = vpack.c.b16 %v1313, %v1307
        %v1470 = vpack.c.b16 %v1320, %v1314
        %v1471 = vpack.c.b16 %v1321, %v1315
        %v1472 = vpack.c.b16 %v1322, %v1316
        %v1473 = vpack.c.b16 %v1323, %v1317
        %v1474 = vpack.c.b16 %v1324, %v1318
        %v1475 = vpack.c.b16 %v1325, %v1319
        %v1476 = vpack.c.b16 %v1332, %v1326
        %v1477 = vpack.c.b16 %v1333, %v1327
        %v1478 = vpack.c.b16 %v1334, %v1328
        %v1479 = vpack.c.b16 %v1335, %v1329
        %v1480 = vpack.c.b16 %v1336, %v1330
        %v1481 = vpack.c.b16 %v1337, %v1331
        %v1482 = vpack.c.b16 %v1344, %v1338
        %v1483 = vpack.c.b16 %v1345, %v1339
        %v1484 = vpack.c.b16 %v1346, %v1340
        %v1485 = vpack.c.b16 %v1347, %v1341
        %v1486 = vpack.c.b16 %v1348, %v1342
        %v1487 = vpack.c.b16 %v1349, %v1343
        %v1488 = vpack.c.b16 %v1356, %v1350
        %v1489 = vpack.c.b16 %v1357, %v1351
        %v1490 = vpack.c.b16 %v1358, %v1352
        %v1491 = vpack.c.b16 %v1359, %v1353
        %v1492 = vpack.c.b16 %v1360, %v1354
        %v1493 = vpack.c.b16 %v1361, %v1355
        %v1494 = vpack.c.b16 %v1368, %v1362
        %v1495 = vpack.c.b16 %v1369, %v1363
        %v1496 = vpack.c.b16 %v1370, %v1364
        %v1497 = vpack.c.b16 %v1371, %v1365
        %v1498 = vpack.c.b16 %v1372, %v1366
        %v1499 = vpack.c.b16 %v1373, %v1367
        %v1500 = vpack.c.b16 %v1380, %v1374
        %v1501 = vpack.c.b16 %v1381, %v1375
        %v1502 = vpack.c.b16 %v1382, %v1376
        %v1503 = vpack.c.b16 %v1383, %v1377
        %v1504 = vpack.c.b16 %v1384, %v1378
        %v1505 = vpack.c.b16 %v1385, %v1379
        %v1506 = vpack.c.b16 %v1392, %v1386
        %v1507 = vpack.c.b16 %v1393, %v1387
        %v1508 = vpack.c.b16 %v1394, %v1388
        %v1509 = vpack.c.b16 %v1395, %v1389
        %v1510 = vpack.c.b16 %v1396, %v1390
        %v1511 = vpack.c.b16 %v1397, %v1391
        %v1512 = vpack.c.b16 %v1404, %v1398
        %v1513 = vpack.c.b16 %v1405, %v1399
        %v1514 = vpack.c.b16 %v1406, %v1400
        %v1515 = vpack.c.b16 %v1407, %v1401
        %v1516 = vpack.c.b16 %v1408, %v1402
        %v1517 = vpack.c.b16 %v1409, %v1403
        %v1518 = vpack.c.b16 %v1416, %v1410
        %v1519 = vpack.c.b16 %v1417, %v1411
        %v1520 = vpack.c.b16 %v1418, %v1412
        %v1521 = vpack.c.b16 %v1419, %v1413
        %v1522 = vpack.c.b16 %v1420, %v1414
        %v1523 = vpack.c.b16 %v1421, %v1415
        %v1524 = vpack.c.b16 %v1428, %v1422
        %v1525 = vpack.c.b16 %v1429, %v1423
        %v1526 = vpack.c.b16 %v1430, %v1424
        %v1527 = vpack.c.b16 %v1431, %v1425
        %v1528 = vpack.c.b16 %v1432, %v1426
        %v1529 = vpack.c.b16 %v1433, %v1427
        %1626 = vmatpush.bf16.msra.mxu0 %v1476
        %1627 = vmatpush.bf16.msra.mxu0 %v1470
        %1628 = vmatpush.bf16.msra.mxu0 %v1464
        %1629 = vmatpush.bf16.msra.mxu0 %v1458
        %1630 = vmatpush.bf16.msra.mxu0 %v1452
        %1631 = vmatpush.bf16.msra.mxu0 %v1446
        %1632 = vmatpush.bf16.msra.mxu0 %v1440
        %1633 = vmatpush.bf16.msra.mxu0 %v1434
        %1634 = vmatmul.bf16.gmra.mxu0 %v1034
        %v1635 = vpop.f32.mrf.mxu0
        %v1636 = vadd.f32 %v1134, %v1635
        %v1637 = vpop.f32.mrf.mxu0
        %v1638 = vadd.f32 %v1134, %v1637
        %1639 = vdwg.mxu0
        %1640 = vmatpush.bf16.msra.mxu0 %v1524
        %1641 = vmatpush.bf16.msra.mxu0 %v1518
        %1642 = vmatpush.bf16.msra.mxu0 %v1512
        %1643 = vmatpush.bf16.msra.mxu0 %v1506
        %1644 = vmatpush.bf16.msra.mxu0 %v1500
        %1645 = vmatpush.bf16.msra.mxu0 %v1494
        %1646 = vmatpush.bf16.msra.mxu0 %v1488
        %1647 = vmatpush.bf16.msra.mxu0 %v1482
        %1648 = vmatmul.bf16.gmra.mxu0 %v1035
        %v1649 = vpop.f32.mrf.mxu0
        %v1650 = vadd.f32 %v1636, %v1649
        %v1651 = vpop.f32.mrf.mxu0
        %v1652 = vadd.f32 %v1638, %v1651
        %1653 = vdwg.mxu0
        %1654 = vmatpush.bf16.msra.mxu0 %v1477
        %1655 = vmatpush.bf16.msra.mxu0 %v1471
        %1656 = vmatpush.bf16.msra.mxu0 %v1465
        %1657 = vmatpush.bf16.msra.mxu0 %v1459
        %1658 = vmatpush.bf16.msra.mxu0 %v1453
        %1659 = vmatpush.bf16.msra.mxu0 %v1447
        %1660 = vmatpush.bf16.msra.mxu0 %v1441
        %1661 = vmatpush.bf16.msra.mxu0 %v1435
        %1662 = vmatmul.bf16.gmra.mxu0 %v1034
        %v1663 = vpop.f32.mrf.mxu0
        %v1664 = vadd.f32 %v1135, %v1663
        %v1665 = vpop.f32.mrf.mxu0
        %v1666 = vadd.f32 %v1135, %v1665
        %1667 = vdwg.mxu0
        %1668 = vmatpush.bf16.msra.mxu0 %v1525
        %1669 = vmatpush.bf16.msra.mxu0 %v1519
        %1670 = vmatpush.bf16.msra.mxu0 %v1513
        %1671 = vmatpush.bf16.msra.mxu0 %v1507
        %1672 = vmatpush.bf16.msra.mxu0 %v1501
        %1673 = vmatpush.bf16.msra.mxu0 %v1495
        %1674 = vmatpush.bf16.msra.mxu0 %v1489
        %1675 = vmatpush.bf16.msra.mxu0 %v1483
        %1676 = vmatmul.bf16.gmra.mxu0 %v1035
        %v1677 = vpop.f32.mrf.mxu0
        %v1678 = vadd.f32 %v1664, %v1677
        %v1679 = vpop.f32.mrf.mxu0
        %v1680 = vadd.f32 %v1666, %v1679
        %1681 = vdwg.mxu0
        %1682 = vmatpush.bf16.msra.mxu0 %v1478
        %1683 = vmatpush.bf16.msra.mxu0 %v1472
        %1684 = vmatpush.bf16.msra.mxu0 %v1466
        %1685 = vmatpush.bf16.msra.mxu0 %v1460
        %1686 = vmatpush.bf16.msra.mxu0 %v1454
        %1687 = vmatpush.bf16.msra.mxu0 %v1448
        %1688 = vmatpush.bf16.msra.mxu0 %v1442
        %1689 = vmatpush.bf16.msra.mxu0 %v1436
        %1690 = vmatmul.bf16.gmra.mxu0 %v1034
        %v1691 = vpop.f32.mrf.mxu0
        %v1692 = vadd.f32 %v1136, %v1691
        %v1693 = vpop.f32.mrf.mxu0
        %v1694 = vadd.f32 %v1136, %v1693
        %1695 = vdwg.mxu0
        %1696 = vmatpush.bf16.msra.mxu0 %v1526
        %1697 = vmatpush.bf16.msra.mxu0 %v1520
        %1698 = vmatpush.bf16.msra.mxu0 %v1514
        %1699 = vmatpush.bf16.msra.mxu0 %v1508
        %1700 = vmatpush.bf16.msra.mxu0 %v1502
        %1701 = vmatpush.bf16.msra.mxu0 %v1496
        %1702 = vmatpush.bf16.msra.mxu0 %v1490
        %1703 = vmatpush.bf16.msra.mxu0 %v1484
        %1704 = vmatmul.bf16.gmra.mxu0 %v1035
        %v1705 = vpop.f32.mrf.mxu0
        %v1706 = vadd.f32 %v1692, %v1705
        %v1707 = vpop.f32.mrf.mxu0
        %v1708 = vadd.f32 %v1694, %v1707
        %1709 = vdwg.mxu0
        %1710 = vmatpush.bf16.msra.mxu0 %v1479
        %1711 = vmatpush.bf16.msra.mxu0 %v1473
        %1712 = vmatpush.bf16.msra.mxu0 %v1467
        %1713 = vmatpush.bf16.msra.mxu0 %v1461
        %1714 = vmatpush.bf16.msra.mxu0 %v1455
        %1715 = vmatpush.bf16.msra.mxu0 %v1449
        %1716 = vmatpush.bf16.msra.mxu0 %v1443
        %1717 = vmatpush.bf16.msra.mxu0 %v1437
        %1718 = vmatmul.bf16.gmra.mxu0 %v1034
        %v1719 = vpop.f32.mrf.mxu0
        %v1720 = vadd.f32 %v1137, %v1719
        %v1721 = vpop.f32.mrf.mxu0
        %v1722 = vadd.f32 %v1137, %v1721
        %1723 = vdwg.mxu0
        %1724 = vmatpush.bf16.msra.mxu0 %v1527
        %1725 = vmatpush.bf16.msra.mxu0 %v1521
        %1726 = vmatpush.bf16.msra.mxu0 %v1515
        %1727 = vmatpush.bf16.msra.mxu0 %v1509
        %1728 = vmatpush.bf16.msra.mxu0 %v1503
        %1729 = vmatpush.bf16.msra.mxu0 %v1497
        %1730 = vmatpush.bf16.msra.mxu0 %v1491
        %1731 = vmatpush.bf16.msra.mxu0 %v1485
        %1732 = vmatmul.bf16.gmra.mxu0 %v1035
        %v1733 = vpop.f32.mrf.mxu0
        %v1734 = vadd.f32 %v1720, %v1733
        %v1735 = vpop.f32.mrf.mxu0
        %v1736 = vadd.f32 %v1722, %v1735
        %1737 = vdwg.mxu0
        %1738 = vmatpush.bf16.msra.mxu0 %v1480
        %1739 = vmatpush.bf16.msra.mxu0 %v1474
        %1740 = vmatpush.bf16.msra.mxu0 %v1468
        %1741 = vmatpush.bf16.msra.mxu0 %v1462
        %1742 = vmatpush.bf16.msra.mxu0 %v1456
        %1743 = vmatpush.bf16.msra.mxu0 %v1450
        %1744 = vmatpush.bf16.msra.mxu0 %v1444
        %1745 = vmatpush.bf16.msra.mxu0 %v1438
        %1746 = vmatmul.bf16.gmra.mxu0 %v1034
        %v1747 = vpop.f32.mrf.mxu0
        %v1748 = vadd.f32 %v1138, %v1747
        %v1749 = vpop.f32.mrf.mxu0
        %v1750 = vadd.f32 %v1138, %v1749
        %1751 = vdwg.mxu0
        %1752 = vmatpush.bf16.msra.mxu0 %v1528
        %1753 = vmatpush.bf16.msra.mxu0 %v1522
        %1754 = vmatpush.bf16.msra.mxu0 %v1516
        %1755 = vmatpush.bf16.msra.mxu0 %v1510
        %1756 = vmatpush.bf16.msra.mxu0 %v1504
        %1757 = vmatpush.bf16.msra.mxu0 %v1498
        %1758 = vmatpush.bf16.msra.mxu0 %v1492
        %1759 = vmatpush.bf16.msra.mxu0 %v1486
        %1760 = vmatmul.bf16.gmra.mxu0 %v1035
        %v1761 = vpop.f32.mrf.mxu0
        %v1762 = vadd.f32 %v1748, %v1761
        %v1763 = vpop.f32.mrf.mxu0
        %v1764 = vadd.f32 %v1750, %v1763
        %1765 = vdwg.mxu0
        %1766 = vmatpush.bf16.msra.mxu0 %v1481
        %1767 = vmatpush.bf16.msra.mxu0 %v1475
        %1768 = vmatpush.bf16.msra.mxu0 %v1469
        %1769 = vmatpush.bf16.msra.mxu0 %v1463
        %1770 = vmatpush.bf16.msra.mxu0 %v1457
        %1771 = vmatpush.bf16.msra.mxu0 %v1451
        %1772 = vmatpush.bf16.msra.mxu0 %v1445
        %1773 = vmatpush.bf16.msra.mxu0 %v1439
        %1774 = vmatmul.bf16.gmra.mxu0 %v1034
        %v1775 = vpop.f32.mrf.mxu0
        %v1776 = vadd.f32 %v1139, %v1775
        %v1777 = vpop.f32.mrf.mxu0
        %v1778 = vadd.f32 %v1139, %v1777
        %1779 = vdwg.mxu0
        %1780 = vmatpush.bf16.msra.mxu0 %v1529
        %1781 = vmatpush.bf16.msra.mxu0 %v1523
        %1782 = vmatpush.bf16.msra.mxu0 %v1517
        %1783 = vmatpush.bf16.msra.mxu0 %v1511
        %1784 = vmatpush.bf16.msra.mxu0 %v1505
        %1785 = vmatpush.bf16.msra.mxu0 %v1499
        %1786 = vmatpush.bf16.msra.mxu0 %v1493
        %1787 = vmatpush.bf16.msra.mxu0 %v1487
        %1788 = vmatmul.bf16.gmra.mxu0 %v1035
        %v1789 = vpop.f32.mrf.mxu0
        %v1790 = vadd.f32 %v1776, %v1789
        %v1791 = vpop.f32.mrf.mxu0
        %v1792 = vadd.f32 %v1778, %v1791
        %1793 = vdwg.mxu0
        %v1794 = vpack.c.bf16 %v1650, %v1650
        %v1795 = vpack.c.bf16 %v1706, %v1706
        %v1796 = vpack.c.bf16 %v1762, %v1762
        %1797 = vmatpush.bf16.xpose.msra.mxu0 0
        %1798 = vmatpush.bf16.xpose.msra.mxu0 0
        %1799 = vmatpush.bf16.xpose.msra.mxu0 0
        %1800 = vmatpush.bf16.xpose.msra.mxu0 0
        %1801 = vmatpush.bf16.xpose.msra.mxu0 0
        %1802 = vmatpush.bf16.xpose.msra.mxu0 0
        %1803 = vmatpush.bf16.xpose.msra.mxu0 0
        %1804 = vmatpush.bf16.xpose.msra.mxu0 %v1795
        %1805 = vmatmul.bf16.gmra.mxu0 %v1794
        %v1806 = vpop.f32.mrf.mxu0
        %v1807 = vadd.f32 0.0, %v1806
        %v1808 = vpop.f32.mrf.mxu0
        %1809 = vdwg.mxu0
        %v1810 = vmul.f32 %v1807, 0.088388346
        %vm1811 = vcmask 64512
        %v1812 = vsel %vm1811, %v1810, -inf
        %1813 = vmax.xlane.f32.xlu0 %v1812
        %v1814 = vpop.xlane.xlu0 %1813
        %v1815 = vsub.f32 %v1810, %v1814
        %v1816 = vmul.f32 %v1815, 1.442695
        %v1817 = vpow.pop %v1816
        %v1818 = vsel %vm1811, %v1817, 0.0
        %1819 = vadd.xlane.f32.xlu0 %v1818
        %v1820 = vpop.xlane.xlu0 %1819
        %v1821 = vrcp.pop %v1820
        %v1822 = vmul.f32 %v1817, %v1821
        %v1823 = vpack.c.bf16 %v1822, %v1822
        %v1825 = vsel %vm1811, %v1823, 0
        %vm1827 = vcmask 1043456
        %v1829 = vsel %vm1827, %v1796, 0
        %1831 = vmatpush.bf16.msra.mxu0 0
        %1832 = vmatpush.bf16.msra.mxu0 0
        %1833 = vmatpush.bf16.msra.mxu0 0
        %1834 = vmatpush.bf16.msra.mxu0 0
        %1835 = vmatpush.bf16.msra.mxu0 0
        %1836 = vmatpush.bf16.msra.mxu0 0
        %1837 = vmatpush.bf16.msra.mxu0 0
        %1838 = vmatpush.bf16.msra.mxu0 %v1829
        %1839 = vmatmul.bf16.gmra.mxu0 %v1825
        %v1840 = vpop.f32.mrf.mxu0
        %v1841 = vadd.f32 0.0, %v1840
        %v1842 = vpop.f32.mrf.mxu0
        %1843 = vdwg.mxu0
        %v1844 = vpack.c.bf16 %v1678, %v1678
        %v1845 = vpack.c.bf16 %v1734, %v1734
        %v1846 = vpack.c.bf16 %v1790, %v1790
        %1847 = vmatpush.bf16.xpose.msra.mxu0 0
        %1848 = vmatpush.bf16.xpose.msra.mxu0 0
        %1849 = vmatpush.bf16.xpose.msra.mxu0 0
        %1850 = vmatpush.bf16.xpose.msra.mxu0 0
        %1851 = vmatpush.bf16.xpose.msra.mxu0 0
        %1852 = vmatpush.bf16.xpose.msra.mxu0 0
        %1853 = vmatpush.bf16.xpose.msra.mxu0 0
        %1854 = vmatpush.bf16.xpose.msra.mxu0 %v1845
        %1855 = vmatmul.bf16.gmra.mxu0 %v1844
        %v1856 = vpop.f32.mrf.mxu0
        %v1857 = vadd.f32 0.0, %v1856
        %v1858 = vpop.f32.mrf.mxu0
        %1859 = vdwg.mxu0
        %v1860 = vmul.f32 %v1857, 0.088388346
        %v1861 = vsel %vm1811, %v1860, -inf
        %1862 = vmax.xlane.f32.xlu0 %v1861
        %v1863 = vpop.xlane.xlu0 %1862
        %v1864 = vsub.f32 %v1860, %v1863
        %v1865 = vmul.f32 %v1864, 1.442695
        %v1866 = vpow.pop %v1865
        %v1867 = vsel %vm1811, %v1866, 0.0
        %1868 = vadd.xlane.f32.xlu0 %v1867
        %v1869 = vpop.xlane.xlu0 %1868
        %v1870 = vrcp.pop %v1869
        %v1871 = vmul.f32 %v1866, %v1870
        %v1872 = vpack.c.bf16 %v1871, %v1871
        %v1874 = vsel %vm1811, %v1872, 0
        %v1877 = vsel %vm1827, %v1846, 0
        %1879 = vmatpush.bf16.msra.mxu0 0
        %1880 = vmatpush.bf16.msra.mxu0 0
        %1881 = vmatpush.bf16.msra.mxu0 0
        %1882 = vmatpush.bf16.msra.mxu0 0
        %1883 = vmatpush.bf16.msra.mxu0 0
        %1884 = vmatpush.bf16.msra.mxu0 0
        %1885 = vmatpush.bf16.msra.mxu0 0
        %1886 = vmatpush.bf16.msra.mxu0 %v1877
        %1887 = vmatmul.bf16.gmra.mxu0 %v1874
        %v1888 = vpop.f32.mrf.mxu0
        %v1889 = vadd.f32 0.0, %v1888
        %v1890 = vpop.f32.mrf.mxu0
        %1891 = vdwg.mxu0
        %v1892 = vpack.c.bf16 %v1652, %v1652
        %v1893 = vpack.c.bf16 %v1708, %v1708
        %v1894 = vpack.c.bf16 %v1764, %v1764
        %1895 = vmatpush.bf16.xpose.msra.mxu0 0
        %1896 = vmatpush.bf16.xpose.msra.mxu0 0
        %1897 = vmatpush.bf16.xpose.msra.mxu0 0
        %1898 = vmatpush.bf16.xpose.msra.mxu0 0
        %1899 = vmatpush.bf16.xpose.msra.mxu0 0
        %1900 = vmatpush.bf16.xpose.msra.mxu0 0
        %1901 = vmatpush.bf16.xpose.msra.mxu0 0
        %1902 = vmatpush.bf16.xpose.msra.mxu0 %v1893
        %1903 = vmatmul.bf16.gmra.mxu0 %v1892
        %v1904 = vpop.f32.mrf.mxu0
        %v1905 = vadd.f32 0.0, %v1904
        %v1906 = vpop.f32.mrf.mxu0
        %1907 = vdwg.mxu0
        %v1908 = vmul.f32 %v1905, 0.088388346
        %v1909 = vsel %vm1811, %v1908, -inf
        %1910 = vmax.xlane.f32.xlu0 %v1909
        %v1911 = vpop.xlane.xlu0 %1910
        %v1912 = vsub.f32 %v1908, %v1911
        %v1913 = vmul.f32 %v1912, 1.442695
        %v1914 = vpow.pop %v1913
        %v1915 = vsel %vm1811, %v1914, 0.0
        %1916 = vadd.xlane.f32.xlu0 %v1915
        %v1917 = vpop.xlane.xlu0 %1916
        %v1918 = vrcp.pop %v1917
        %v1919 = vmul.f32 %v1914, %v1918
        %v1920 = vpack.c.bf16 %v1919, %v1919
        %v1922 = vsel %vm1811, %v1920, 0
        %v1925 = vsel %vm1827, %v1894, 0
        %1927 = vmatpush.bf16.msra.mxu0 0
        %1928 = vmatpush.bf16.msra.mxu0 0
        %1929 = vmatpush.bf16.msra.mxu0 0
        %1930 = vmatpush.bf16.msra.mxu0 0
        %1931 = vmatpush.bf16.msra.mxu0 0
        %1932 = vmatpush.bf16.msra.mxu0 0
        %1933 = vmatpush.bf16.msra.mxu0 0
        %1934 = vmatpush.bf16.msra.mxu0 %v1925
        %1935 = vmatmul.bf16.gmra.mxu0 %v1922
        %v1936 = vpop.f32.mrf.mxu0
        %v1937 = vadd.f32 0.0, %v1936
        %v1938 = vpop.f32.mrf.mxu0
        %1939 = vdwg.mxu0
        %v1940 = vpack.c.bf16 %v1680, %v1680
        %v1941 = vpack.c.bf16 %v1736, %v1736
        %v1942 = vpack.c.bf16 %v1792, %v1792
        %1943 = vmatpush.bf16.xpose.msra.mxu0 0
        %1944 = vmatpush.bf16.xpose.msra.mxu0 0
        %1945 = vmatpush.bf16.xpose.msra.mxu0 0
        %1946 = vmatpush.bf16.xpose.msra.mxu0 0
        %1947 = vmatpush.bf16.xpose.msra.mxu0 0
        %1948 = vmatpush.bf16.xpose.msra.mxu0 0
        %1949 = vmatpush.bf16.xpose.msra.mxu0 0
        %1950 = vmatpush.bf16.xpose.msra.mxu0 %v1941
        %1951 = vmatmul.bf16.gmra.mxu0 %v1940
        %v1952 = vpop.f32.mrf.mxu0
        %v1953 = vadd.f32 0.0, %v1952
        %v1954 = vpop.f32.mrf.mxu0
        %1955 = vdwg.mxu0
        %v1956 = vmul.f32 %v1953, 0.088388346
        %v1957 = vsel %vm1811, %v1956, -inf
        %1958 = vmax.xlane.f32.xlu0 %v1957
        %v1959 = vpop.xlane.xlu0 %1958
        %v1960 = vsub.f32 %v1956, %v1959
        %v1961 = vmul.f32 %v1960, 1.442695
        %v1962 = vpow.pop %v1961
        %v1963 = vsel %vm1811, %v1962, 0.0
        %1964 = vadd.xlane.f32.xlu0 %v1963
        %v1965 = vpop.xlane.xlu0 %1964
        %v1966 = vrcp.pop %v1965
        %v1967 = vmul.f32 %v1962, %v1966
        %v1968 = vpack.c.bf16 %v1967, %v1967
        %v1970 = vsel %vm1811, %v1968, 0
        %v1973 = vsel %vm1827, %v1942, 0
        %1975 = vmatpush.bf16.msra.mxu0 0
        %1976 = vmatpush.bf16.msra.mxu0 0
        %1977 = vmatpush.bf16.msra.mxu0 0
        %1978 = vmatpush.bf16.msra.mxu0 0
        %1979 = vmatpush.bf16.msra.mxu0 0
        %1980 = vmatpush.bf16.msra.mxu0 0
        %1981 = vmatpush.bf16.msra.mxu0 0
        %1982 = vmatpush.bf16.msra.mxu0 %v1973
        %1983 = vmatmul.bf16.gmra.mxu0 %v1970
        %v1984 = vpop.f32.mrf.mxu0
        %v1985 = vadd.f32 0.0, %v1984
        %v1986 = vpop.f32.mrf.mxu0
        %1987 = vdwg.mxu0
        %v1988 = vpack.c.bf16 %v1937, %v1841
        %v1989 = vpack.c.bf16 %v1985, %v1889
        %v1990 = vld [vmem:[%s781] sm:$0xff]
        %v1991 = vld [vmem:[%s781 + $0x8] sm:$0xff]
        %v1992 = vld [vmem:[%s781 + $0x10] sm:$0xff]
        %v1993 = vld [vmem:[%s781 + $0x18] sm:$0xff]
        %v1994 = vld [vmem:[%s781 + $0x20] sm:$0xff]
        %v1995 = vld [vmem:[%s781 + $0x28] sm:$0xff]
        %v1996 = vld [vmem:[%s781 + $0x30] sm:$0xff]
        %v1997 = vld [vmem:[%s781 + $0x38] sm:$0xff]
        %v1998 = vld [vmem:[%s781 + $0x40] sm:$0xff]
        %v1999 = vld [vmem:[%s781 + $0x48] sm:$0xff]
        %v2000 = vld [vmem:[%s781 + $0x50] sm:$0xff]
        %v2001 = vld [vmem:[%s781 + $0x58] sm:$0xff]
        %v2002 = vld [vmem:[%s781 + $0x60] sm:$0xff]
        %v2003 = vld [vmem:[%s781 + $0x68] sm:$0xff]
        %v2004 = vld [vmem:[%s781 + $0x70] sm:$0xff]
        %v2005 = vld [vmem:[%s781 + $0x78] sm:$0xff]
        %v2006 = vld [vmem:[%s781 + $0x80] sm:$0xff]
        %v2007 = vld [vmem:[%s781 + $0x88] sm:$0xff]
        %v2008 = vld [vmem:[%s781 + $0x90] sm:$0xff]
        %v2009 = vld [vmem:[%s781 + $0x98] sm:$0xff]
        %v2010 = vld [vmem:[%s781 + $0xa0] sm:$0xff]
        %v2011 = vld [vmem:[%s781 + $0xa8] sm:$0xff]
        %v2012 = vld [vmem:[%s781 + $0xb0] sm:$0xff]
        %v2013 = vld [vmem:[%s781 + $0xb8] sm:$0xff]
        %v2014 = vld [vmem:[%s781 + $0xc0] sm:$0xff]
        %v2015 = vld [vmem:[%s781 + $0xc8] sm:$0xff]
        %v2016 = vld [vmem:[%s781 + $0xd0] sm:$0xff]
        %v2017 = vld [vmem:[%s781 + $0xd8] sm:$0xff]
        %v2018 = vld [vmem:[%s781 + $0xe0] sm:$0xff]
        %v2019 = vld [vmem:[%s781 + $0xe8] sm:$0xff]
        %v2020 = vld [vmem:[%s781 + $0xf0] sm:$0xff]
        %v2021 = vld [vmem:[%s781 + $0xf8] sm:$0xff]
        %v2022 = vld [vmem:[%s915] sm:$0x3]
        %v2024 = vperm.slane %v2022, 0
        %v2025 = vperm.slane %v2022, 1
        %v2060 = vunpack.c.l.b16 %v1990
        %v2061 = vunpack.c.h.b16 %v1990
        %v2062 = vunpack.c.l.b16 %v1991
        %v2063 = vunpack.c.h.b16 %v1991
        %v2064 = vunpack.c.l.b16 %v1992
        %v2065 = vunpack.c.h.b16 %v1992
        %v2066 = vunpack.c.l.b16 %v1993
        %v2067 = vunpack.c.h.b16 %v1993
        %v2068 = vunpack.c.l.b16 %v1994
        %v2069 = vunpack.c.h.b16 %v1994
        %v2070 = vunpack.c.l.b16 %v1995
        %v2071 = vunpack.c.h.b16 %v1995
        %v2072 = vunpack.c.l.b16 %v1996
        %v2073 = vunpack.c.h.b16 %v1996
        %v2074 = vunpack.c.l.b16 %v1997
        %v2075 = vunpack.c.h.b16 %v1997
        %v2076 = vunpack.c.l.b16 %v1998
        %v2077 = vunpack.c.h.b16 %v1998
        %v2078 = vunpack.c.l.b16 %v1999
        %v2079 = vunpack.c.h.b16 %v1999
        %v2080 = vunpack.c.l.b16 %v2000
        %v2081 = vunpack.c.h.b16 %v2000
        %v2082 = vunpack.c.l.b16 %v2001
        %v2083 = vunpack.c.h.b16 %v2001
        %v2084 = vunpack.c.l.b16 %v2002
        %v2085 = vunpack.c.h.b16 %v2002
        %v2086 = vunpack.c.l.b16 %v2003
        %v2087 = vunpack.c.h.b16 %v2003
        %v2088 = vunpack.c.l.b16 %v2004
        %v2089 = vunpack.c.h.b16 %v2004
        %v2090 = vunpack.c.l.b16 %v2005
        %v2091 = vunpack.c.h.b16 %v2005
        %v2092 = vunpack.c.l.b16 %v2006
        %v2093 = vunpack.c.h.b16 %v2006
        %v2094 = vunpack.c.l.b16 %v2007
        %v2095 = vunpack.c.h.b16 %v2007
        %v2096 = vunpack.c.l.b16 %v2008
        %v2097 = vunpack.c.h.b16 %v2008
        %v2098 = vunpack.c.l.b16 %v2009
        %v2099 = vunpack.c.h.b16 %v2009
        %v2100 = vunpack.c.l.b16 %v2010
        %v2101 = vunpack.c.h.b16 %v2010
        %v2102 = vunpack.c.l.b16 %v2011
        %v2103 = vunpack.c.h.b16 %v2011
        %v2104 = vunpack.c.l.b16 %v2012
        %v2105 = vunpack.c.h.b16 %v2012
        %v2106 = vunpack.c.l.b16 %v2013
        %v2107 = vunpack.c.h.b16 %v2013
        %v2108 = vunpack.c.l.b16 %v2014
        %v2109 = vunpack.c.h.b16 %v2014
        %v2110 = vunpack.c.l.b16 %v2015
        %v2111 = vunpack.c.h.b16 %v2015
        %v2112 = vunpack.c.l.b16 %v2016
        %v2113 = vunpack.c.h.b16 %v2016
        %v2114 = vunpack.c.l.b16 %v2017
        %v2115 = vunpack.c.h.b16 %v2017
        %v2116 = vunpack.c.l.b16 %v2018
        %v2117 = vunpack.c.h.b16 %v2018
        %v2118 = vunpack.c.l.b16 %v2019
        %v2119 = vunpack.c.h.b16 %v2019
        %v2120 = vunpack.c.l.b16 %v2020
        %v2121 = vunpack.c.h.b16 %v2020
        %v2122 = vunpack.c.l.b16 %v2021
        %v2123 = vunpack.c.h.b16 %v2021
        %v2124 = vpack.c.b16 %v2062, %v2060
        %v2125 = vpack.c.b16 %v2063, %v2061
        %v2126 = vpack.c.b16 %v2066, %v2064
        %v2127 = vpack.c.b16 %v2067, %v2065
        %v2128 = vpack.c.b16 %v2070, %v2068
        %v2129 = vpack.c.b16 %v2071, %v2069
        %v2130 = vpack.c.b16 %v2074, %v2072
        %v2131 = vpack.c.b16 %v2075, %v2073
        %v2132 = vpack.c.b16 %v2078, %v2076
        %v2133 = vpack.c.b16 %v2079, %v2077
        %v2134 = vpack.c.b16 %v2082, %v2080
        %v2135 = vpack.c.b16 %v2083, %v2081
        %v2136 = vpack.c.b16 %v2086, %v2084
        %v2137 = vpack.c.b16 %v2087, %v2085
        %v2138 = vpack.c.b16 %v2090, %v2088
        %v2139 = vpack.c.b16 %v2091, %v2089
        %v2140 = vpack.c.b16 %v2094, %v2092
        %v2141 = vpack.c.b16 %v2095, %v2093
        %v2142 = vpack.c.b16 %v2098, %v2096
        %v2143 = vpack.c.b16 %v2099, %v2097
        %v2144 = vpack.c.b16 %v2102, %v2100
        %v2145 = vpack.c.b16 %v2103, %v2101
        %v2146 = vpack.c.b16 %v2106, %v2104
        %v2147 = vpack.c.b16 %v2107, %v2105
        %v2148 = vpack.c.b16 %v2110, %v2108
        %v2149 = vpack.c.b16 %v2111, %v2109
        %v2150 = vpack.c.b16 %v2114, %v2112
        %v2151 = vpack.c.b16 %v2115, %v2113
        %v2152 = vpack.c.b16 %v2118, %v2116
        %v2153 = vpack.c.b16 %v2119, %v2117
        %v2154 = vpack.c.b16 %v2122, %v2120
        %v2155 = vpack.c.b16 %v2123, %v2121
        %2188 = vmatpush.bf16.msra.mxu0 %v2138
        %2189 = vmatpush.bf16.msra.mxu0 %v2136
        %2190 = vmatpush.bf16.msra.mxu0 %v2134
        %2191 = vmatpush.bf16.msra.mxu0 %v2132
        %2192 = vmatpush.bf16.msra.mxu0 %v2130
        %2193 = vmatpush.bf16.msra.mxu0 %v2128
        %2194 = vmatpush.bf16.msra.mxu0 %v2126
        %2195 = vmatpush.bf16.msra.mxu0 %v2124
        %2196 = vmatmul.bf16.gmra.mxu0 %v1988
        %v2197 = vpop.f32.mrf.mxu0
        %v2198 = vadd.f32 %v2024, %v2197
        %v2199 = vpop.f32.mrf.mxu0
        %v2200 = vadd.f32 %v2024, %v2199
        %2201 = vdwg.mxu0
        %2202 = vmatpush.bf16.msra.mxu0 %v2154
        %2203 = vmatpush.bf16.msra.mxu0 %v2152
        %2204 = vmatpush.bf16.msra.mxu0 %v2150
        %2205 = vmatpush.bf16.msra.mxu0 %v2148
        %2206 = vmatpush.bf16.msra.mxu0 %v2146
        %2207 = vmatpush.bf16.msra.mxu0 %v2144
        %2208 = vmatpush.bf16.msra.mxu0 %v2142
        %2209 = vmatpush.bf16.msra.mxu0 %v2140
        %2210 = vmatmul.bf16.gmra.mxu0 %v1989
        %v2211 = vpop.f32.mrf.mxu0
        %v2212 = vadd.f32 %v2198, %v2211
        %v2213 = vpop.f32.mrf.mxu0
        %v2214 = vadd.f32 %v2200, %v2213
        %2215 = vdwg.mxu0
        %2216 = vmatpush.bf16.msra.mxu0 %v2139
        %2217 = vmatpush.bf16.msra.mxu0 %v2137
        %2218 = vmatpush.bf16.msra.mxu0 %v2135
        %2219 = vmatpush.bf16.msra.mxu0 %v2133
        %2220 = vmatpush.bf16.msra.mxu0 %v2131
        %2221 = vmatpush.bf16.msra.mxu0 %v2129
        %2222 = vmatpush.bf16.msra.mxu0 %v2127
        %2223 = vmatpush.bf16.msra.mxu0 %v2125
        %2224 = vmatmul.bf16.gmra.mxu0 %v1988
        %v2225 = vpop.f32.mrf.mxu0
        %v2226 = vadd.f32 %v2025, %v2225
        %v2227 = vpop.f32.mrf.mxu0
        %v2228 = vadd.f32 %v2025, %v2227
        %2229 = vdwg.mxu0
        %2230 = vmatpush.bf16.msra.mxu0 %v2155
        %2231 = vmatpush.bf16.msra.mxu0 %v2153
        %2232 = vmatpush.bf16.msra.mxu0 %v2151
        %2233 = vmatpush.bf16.msra.mxu0 %v2149
        %2234 = vmatpush.bf16.msra.mxu0 %v2147
        %2235 = vmatpush.bf16.msra.mxu0 %v2145
        %2236 = vmatpush.bf16.msra.mxu0 %v2143
        %2237 = vmatpush.bf16.msra.mxu0 %v2141
        %2238 = vmatmul.bf16.gmra.mxu0 %v1989
        %v2239 = vpop.f32.mrf.mxu0
        %v2240 = vadd.f32 %v2226, %v2239
        %v2241 = vpop.f32.mrf.mxu0
        %v2242 = vadd.f32 %v2228, %v2241
        %2243 = vdwg.mxu0
        %v2244 = vadd.f32 %v2212, %v1030
        %v2245 = vadd.f32 %v2240, %v1031
        %v2246 = vadd.f32 %v2214, %v1032
        %v2247 = vadd.f32 %v2242, %v1033
        %v2248 = vld [vmem:[%s919] sm:$0x3]
        %v2249 = vld [vmem:[%s923] sm:$0x3]
        %v2250 = vadd.f32 %v2244, %v2245
        %2251 = vadd.xlane.f32.xlu0 %v2250
        %v2252 = vpop.xlane.xlu0 %2251
        %v2253 = vadd.f32 %v2246, %v2247
        %2254 = vadd.xlane.f32.xlu0 %v2253
        %v2255 = vpop.xlane.xlu0 %2254
        %v2256 = vrcp.pop 256.0
        %v2257 = vmul.f32 256.0, %v2256
        %v2258 = vsub.f32 1.0, %v2257
        %v2259 = vmul.f32 %v2256, %v2258
        %v2260 = vadd.f32 %v2256, %v2259
        %vm2261 = vweird.f32 %v2256
        %v2262 = vsel %vm2261, %v2256, %v2260
        %v2263 = vmul.f32 %v2252, %v2262
        %v2264 = vmul.f32 %v2255, %v2262
        %v2265 = vsub.f32 %v2244, %v2263
        %v2266 = vsub.f32 %v2245, %v2263
        %v2267 = vsub.f32 %v2246, %v2264
        %v2268 = vsub.f32 %v2247, %v2264
        %v2269 = vmul.f32 %v2265, %v2265
        %v2270 = vmul.f32 %v2266, %v2266
        %v2271 = vmul.f32 %v2267, %v2267
        %v2272 = vmul.f32 %v2268, %v2268
        %v2273 = vadd.f32 %v2269, %v2270
        %2274 = vadd.xlane.f32.xlu0 %v2273
        %v2275 = vpop.xlane.xlu0 %2274
        %v2276 = vadd.f32 %v2271, %v2272
        %2277 = vadd.xlane.f32.xlu0 %v2276
        %v2278 = vpop.xlane.xlu0 %2277
        %v2279 = vmul.f32 %v2275, %v2262
        %v2280 = vmul.f32 %v2278, %v2262
        %v2281 = vadd.f32 %v2279, 1e-12
        %v2282 = vadd.f32 %v2280, 1e-12
        %v2283 = vrsqrt.pop %v2281
        %v2284 = vmul.f32 %v2283, %v2281
        %v2285 = vmul.f32 %v2284, %v2283
        %v2286 = vmul.f32 0.5, %v2285
        %v2287 = vsub.f32 1.5, %v2286
        %v2288 = vmul.f32 %v2283, %v2287
        %vm2289 = vweird.f32 %v2281
        %vm2290 = vweird.f32 %v2283
        %vm2291 = vmor %vm2289, %vm2290
        %v2292 = vsel %vm2291, %v2283, %v2288
        %v2293 = vrsqrt.pop %v2282
        %v2294 = vmul.f32 %v2293, %v2282
        %v2295 = vmul.f32 %v2294, %v2293
        %v2296 = vmul.f32 0.5, %v2295
        %v2297 = vsub.f32 1.5, %v2296
        %v2298 = vmul.f32 %v2293, %v2297
        %vm2299 = vweird.f32 %v2282
        %vm2300 = vweird.f32 %v2293
        %vm2301 = vmor %vm2299, %vm2300
        %v2302 = vsel %vm2301, %v2293, %v2298
        %v2303 = vmul.f32 %v2265, %v2292
        %v2304 = vmul.f32 %v2266, %v2292
        %v2305 = vmul.f32 %v2267, %v2302
        %v2306 = vmul.f32 %v2268, %v2302
        %v2308 = vperm.slane %v2248, 0
        %v2309 = vperm.slane %v2248, 1
        %v2312 = vmul.f32 %v2303, %v2308
        %v2313 = vmul.f32 %v2304, %v2309
        %v2314 = vmul.f32 %v2305, %v2308
        %v2315 = vmul.f32 %v2306, %v2309
        %v2317 = vperm.slane %v2249, 0
        %v2318 = vperm.slane %v2249, 1
        %v2321 = vadd.f32 %v2312, %v2317
        %v2322 = vadd.f32 %v2313, %v2318
        %v2323 = vadd.f32 %v2314, %v2317
        %v2324 = vadd.f32 %v2315, %v2318
        %v2325 = vpack.c.bf16 %v2323, %v2321
        %v2326 = vpack.c.bf16 %v2324, %v2322
        %v2327 = vld [vmem:[%s791] sm:$0xff]
        %v2328 = vld [vmem:[%s791 + $0x8] sm:$0xff]
        %v2329 = vld [vmem:[%s791 + $0x10] sm:$0xff]
        %v2330 = vld [vmem:[%s791 + $0x18] sm:$0xff]
        %v2331 = vld [vmem:[%s791 + $0x20] sm:$0xff]
        %v2332 = vld [vmem:[%s791 + $0x28] sm:$0xff]
        %v2333 = vld [vmem:[%s791 + $0x30] sm:$0xff]
        %v2334 = vld [vmem:[%s791 + $0x38] sm:$0xff]
        %v2335 = vld [vmem:[%s791 + $0x40] sm:$0xff]
        %v2336 = vld [vmem:[%s791 + $0x48] sm:$0xff]
        %v2337 = vld [vmem:[%s791 + $0x50] sm:$0xff]
        %v2338 = vld [vmem:[%s791 + $0x58] sm:$0xff]
        %v2339 = vld [vmem:[%s791 + $0x60] sm:$0xff]
        %v2340 = vld [vmem:[%s791 + $0x68] sm:$0xff]
        %v2341 = vld [vmem:[%s791 + $0x70] sm:$0xff]
        %v2342 = vld [vmem:[%s791 + $0x78] sm:$0xff]
        %v2343 = vld [vmem:[%s791 + $0x80] sm:$0xff]
        %v2344 = vld [vmem:[%s791 + $0x88] sm:$0xff]
        %v2345 = vld [vmem:[%s791 + $0x90] sm:$0xff]
        %v2346 = vld [vmem:[%s791 + $0x98] sm:$0xff]
        %v2347 = vld [vmem:[%s791 + $0xa0] sm:$0xff]
        %v2348 = vld [vmem:[%s791 + $0xa8] sm:$0xff]
        %v2349 = vld [vmem:[%s791 + $0xb0] sm:$0xff]
        %v2350 = vld [vmem:[%s791 + $0xb8] sm:$0xff]
        %v2351 = vld [vmem:[%s791 + $0xc0] sm:$0xff]
        %v2352 = vld [vmem:[%s791 + $0xc8] sm:$0xff]
        %v2353 = vld [vmem:[%s791 + $0xd0] sm:$0xff]
        %v2354 = vld [vmem:[%s791 + $0xd8] sm:$0xff]
        %v2355 = vld [vmem:[%s791 + $0xe0] sm:$0xff]
        %v2356 = vld [vmem:[%s791 + $0xe8] sm:$0xff]
        %v2357 = vld [vmem:[%s791 + $0xf0] sm:$0xff]
        %v2358 = vld [vmem:[%s791 + $0xf8] sm:$0xff]
        %v2359 = vld [vmem:[%s791 + $0x100] sm:$0xff]
        %v2360 = vld [vmem:[%s791 + $0x108] sm:$0xff]
        %v2361 = vld [vmem:[%s791 + $0x110] sm:$0xff]
        %v2362 = vld [vmem:[%s791 + $0x118] sm:$0xff]
        %v2363 = vld [vmem:[%s791 + $0x120] sm:$0xff]
        %v2364 = vld [vmem:[%s791 + $0x128] sm:$0xff]
        %v2365 = vld [vmem:[%s791 + $0x130] sm:$0xff]
        %v2366 = vld [vmem:[%s791 + $0x138] sm:$0xff]
        %v2367 = vld [vmem:[%s791 + $0x140] sm:$0xff]
        %v2368 = vld [vmem:[%s791 + $0x148] sm:$0xff]
        %v2369 = vld [vmem:[%s791 + $0x150] sm:$0xff]
        %v2370 = vld [vmem:[%s791 + $0x158] sm:$0xff]
        %v2371 = vld [vmem:[%s791 + $0x160] sm:$0xff]
        %v2372 = vld [vmem:[%s791 + $0x168] sm:$0xff]
        %v2373 = vld [vmem:[%s791 + $0x170] sm:$0xff]
        %v2374 = vld [vmem:[%s791 + $0x178] sm:$0xff]
        %v2375 = vld [vmem:[%s791 + $0x180] sm:$0xff]
        %v2376 = vld [vmem:[%s791 + $0x188] sm:$0xff]
        %v2377 = vld [vmem:[%s791 + $0x190] sm:$0xff]
        %v2378 = vld [vmem:[%s791 + $0x198] sm:$0xff]
        %v2379 = vld [vmem:[%s791 + $0x1a0] sm:$0xff]
        %v2380 = vld [vmem:[%s791 + $0x1a8] sm:$0xff]
        %v2381 = vld [vmem:[%s791 + $0x1b0] sm:$0xff]
        %v2382 = vld [vmem:[%s791 + $0x1b8] sm:$0xff]
        %v2383 = vld [vmem:[%s791 + $0x1c0] sm:$0xff]
        %v2384 = vld [vmem:[%s791 + $0x1c8] sm:$0xff]
        %v2385 = vld [vmem:[%s791 + $0x1d0] sm:$0xff]
        %v2386 = vld [vmem:[%s791 + $0x1d8] sm:$0xff]
        %v2387 = vld [vmem:[%s791 + $0x1e0] sm:$0xff]
        %v2388 = vld [vmem:[%s791 + $0x1e8] sm:$0xff]
        %v2389 = vld [vmem:[%s791 + $0x1f0] sm:$0xff]
        %v2390 = vld [vmem:[%s791 + $0x1f8] sm:$0xff]
        %v2391 = vld [vmem:[%s791 + $0x200] sm:$0xff]
        %v2392 = vld [vmem:[%s791 + $0x208] sm:$0xff]
        %v2393 = vld [vmem:[%s791 + $0x210] sm:$0xff]
        %v2394 = vld [vmem:[%s791 + $0x218] sm:$0xff]
        %v2395 = vld [vmem:[%s791 + $0x220] sm:$0xff]
        %v2396 = vld [vmem:[%s791 + $0x228] sm:$0xff]
        %v2397 = vld [vmem:[%s791 + $0x230] sm:$0xff]
        %v2398 = vld [vmem:[%s791 + $0x238] sm:$0xff]
        %v2399 = vld [vmem:[%s791 + $0x240] sm:$0xff]
        %v2400 = vld [vmem:[%s791 + $0x248] sm:$0xff]
        %v2401 = vld [vmem:[%s791 + $0x250] sm:$0xff]
        %v2402 = vld [vmem:[%s791 + $0x258] sm:$0xff]
        %v2403 = vld [vmem:[%s791 + $0x260] sm:$0xff]
        %v2404 = vld [vmem:[%s791 + $0x268] sm:$0xff]
        %v2405 = vld [vmem:[%s791 + $0x270] sm:$0xff]
        %v2406 = vld [vmem:[%s791 + $0x278] sm:$0xff]
        %v2407 = vld [vmem:[%s791 + $0x280] sm:$0xff]
        %v2408 = vld [vmem:[%s791 + $0x288] sm:$0xff]
        %v2409 = vld [vmem:[%s791 + $0x290] sm:$0xff]
        %v2410 = vld [vmem:[%s791 + $0x298] sm:$0xff]
        %v2411 = vld [vmem:[%s791 + $0x2a0] sm:$0xff]
        %v2412 = vld [vmem:[%s791 + $0x2a8] sm:$0xff]
        %v2413 = vld [vmem:[%s791 + $0x2b0] sm:$0xff]
        %v2414 = vld [vmem:[%s791 + $0x2b8] sm:$0xff]
        %v2415 = vld [vmem:[%s791 + $0x2c0] sm:$0xff]
        %v2416 = vld [vmem:[%s791 + $0x2c8] sm:$0xff]
        %v2417 = vld [vmem:[%s791 + $0x2d0] sm:$0xff]
        %v2418 = vld [vmem:[%s791 + $0x2d8] sm:$0xff]
        %v2419 = vld [vmem:[%s791 + $0x2e0] sm:$0xff]
        %v2420 = vld [vmem:[%s791 + $0x2e8] sm:$0xff]
        %v2421 = vld [vmem:[%s791 + $0x2f0] sm:$0xff]
        %v2422 = vld [vmem:[%s791 + $0x2f8] sm:$0xff]
        %v2423 = vld [vmem:[%s791 + $0x300] sm:$0xff]
        %v2424 = vld [vmem:[%s791 + $0x308] sm:$0xff]
        %v2425 = vld [vmem:[%s791 + $0x310] sm:$0xff]
        %v2426 = vld [vmem:[%s791 + $0x318] sm:$0xff]
        %v2427 = vld [vmem:[%s791 + $0x320] sm:$0xff]
        %v2428 = vld [vmem:[%s791 + $0x328] sm:$0xff]
        %v2429 = vld [vmem:[%s791 + $0x330] sm:$0xff]
        %v2430 = vld [vmem:[%s791 + $0x338] sm:$0xff]
        %v2431 = vld [vmem:[%s791 + $0x340] sm:$0xff]
        %v2432 = vld [vmem:[%s791 + $0x348] sm:$0xff]
        %v2433 = vld [vmem:[%s791 + $0x350] sm:$0xff]
        %v2434 = vld [vmem:[%s791 + $0x358] sm:$0xff]
        %v2435 = vld [vmem:[%s791 + $0x360] sm:$0xff]
        %v2436 = vld [vmem:[%s791 + $0x368] sm:$0xff]
        %v2437 = vld [vmem:[%s791 + $0x370] sm:$0xff]
        %v2438 = vld [vmem:[%s791 + $0x378] sm:$0xff]
        %v2439 = vld [vmem:[%s791 + $0x380] sm:$0xff]
        %v2440 = vld [vmem:[%s791 + $0x388] sm:$0xff]
        %v2441 = vld [vmem:[%s791 + $0x390] sm:$0xff]
        %v2442 = vld [vmem:[%s791 + $0x398] sm:$0xff]
        %v2443 = vld [vmem:[%s791 + $0x3a0] sm:$0xff]
        %v2444 = vld [vmem:[%s791 + $0x3a8] sm:$0xff]
        %v2445 = vld [vmem:[%s791 + $0x3b0] sm:$0xff]
        %v2446 = vld [vmem:[%s791 + $0x3b8] sm:$0xff]
        %v2447 = vld [vmem:[%s791 + $0x3c0] sm:$0xff]
        %v2448 = vld [vmem:[%s791 + $0x3c8] sm:$0xff]
        %v2449 = vld [vmem:[%s791 + $0x3d0] sm:$0xff]
        %v2450 = vld [vmem:[%s791 + $0x3d8] sm:$0xff]
        %v2451 = vld [vmem:[%s791 + $0x3e0] sm:$0xff]
        %v2452 = vld [vmem:[%s791 + $0x3e8] sm:$0xff]
        %v2453 = vld [vmem:[%s791 + $0x3f0] sm:$0xff]
        %v2454 = vld [vmem:[%s791 + $0x3f8] sm:$0xff]
        %v2455 = vld [vmem:[%s927] sm:$0xff]
        %v2457 = vperm.slane %v2455, 0
        %v2458 = vperm.slane %v2455, 1
        %v2459 = vperm.slane %v2455, 2
        %v2460 = vperm.slane %v2455, 3
        %v2461 = vperm.slane %v2455, 4
        %v2462 = vperm.slane %v2455, 5
        %v2463 = vperm.slane %v2455, 6
        %v2464 = vperm.slane %v2455, 7
        %v2601 = vunpack.c.l.b16 %v2327
        %v2602 = vunpack.c.h.b16 %v2327
        %v2603 = vunpack.c.l.b16 %v2328
        %v2604 = vunpack.c.h.b16 %v2328
        %v2605 = vunpack.c.l.b16 %v2329
        %v2606 = vunpack.c.h.b16 %v2329
        %v2607 = vunpack.c.l.b16 %v2330
        %v2608 = vunpack.c.h.b16 %v2330
        %v2609 = vunpack.c.l.b16 %v2331
        %v2610 = vunpack.c.h.b16 %v2331
        %v2611 = vunpack.c.l.b16 %v2332
        %v2612 = vunpack.c.h.b16 %v2332
        %v2613 = vunpack.c.l.b16 %v2333
        %v2614 = vunpack.c.h.b16 %v2333
        %v2615 = vunpack.c.l.b16 %v2334
        %v2616 = vunpack.c.h.b16 %v2334
        %v2617 = vunpack.c.l.b16 %v2335
        %v2618 = vunpack.c.h.b16 %v2335
        %v2619 = vunpack.c.l.b16 %v2336
        %v2620 = vunpack.c.h.b16 %v2336
        %v2621 = vunpack.c.l.b16 %v2337
        %v2622 = vunpack.c.h.b16 %v2337
        %v2623 = vunpack.c.l.b16 %v2338
        %v2624 = vunpack.c.h.b16 %v2338
        %v2625 = vunpack.c.l.b16 %v2339
        %v2626 = vunpack.c.h.b16 %v2339
        %v2627 = vunpack.c.l.b16 %v2340
        %v2628 = vunpack.c.h.b16 %v2340
        %v2629 = vunpack.c.l.b16 %v2341
        %v2630 = vunpack.c.h.b16 %v2341
        %v2631 = vunpack.c.l.b16 %v2342
        %v2632 = vunpack.c.h.b16 %v2342
        %v2633 = vunpack.c.l.b16 %v2343
        %v2634 = vunpack.c.h.b16 %v2343
        %v2635 = vunpack.c.l.b16 %v2344
        %v2636 = vunpack.c.h.b16 %v2344
        %v2637 = vunpack.c.l.b16 %v2345
        %v2638 = vunpack.c.h.b16 %v2345
        %v2639 = vunpack.c.l.b16 %v2346
        %v2640 = vunpack.c.h.b16 %v2346
        %v2641 = vunpack.c.l.b16 %v2347
        %v2642 = vunpack.c.h.b16 %v2347
        %v2643 = vunpack.c.l.b16 %v2348
        %v2644 = vunpack.c.h.b16 %v2348
        %v2645 = vunpack.c.l.b16 %v2349
        %v2646 = vunpack.c.h.b16 %v2349
        %v2647 = vunpack.c.l.b16 %v2350
        %v2648 = vunpack.c.h.b16 %v2350
        %v2649 = vunpack.c.l.b16 %v2351
        %v2650 = vunpack.c.h.b16 %v2351
        %v2651 = vunpack.c.l.b16 %v2352
        %v2652 = vunpack.c.h.b16 %v2352
        %v2653 = vunpack.c.l.b16 %v2353
        %v2654 = vunpack.c.h.b16 %v2353
        %v2655 = vunpack.c.l.b16 %v2354
        %v2656 = vunpack.c.h.b16 %v2354
        %v2657 = vunpack.c.l.b16 %v2355
        %v2658 = vunpack.c.h.b16 %v2355
        %v2659 = vunpack.c.l.b16 %v2356
        %v2660 = vunpack.c.h.b16 %v2356
        %v2661 = vunpack.c.l.b16 %v2357
        %v2662 = vunpack.c.h.b16 %v2357
        %v2663 = vunpack.c.l.b16 %v2358
        %v2664 = vunpack.c.h.b16 %v2358
        %v2665 = vunpack.c.l.b16 %v2359
        %v2666 = vunpack.c.h.b16 %v2359
        %v2667 = vunpack.c.l.b16 %v2360
        %v2668 = vunpack.c.h.b16 %v2360
        %v2669 = vunpack.c.l.b16 %v2361
        %v2670 = vunpack.c.h.b16 %v2361
        %v2671 = vunpack.c.l.b16 %v2362
        %v2672 = vunpack.c.h.b16 %v2362
        %v2673 = vunpack.c.l.b16 %v2363
        %v2674 = vunpack.c.h.b16 %v2363
        %v2675 = vunpack.c.l.b16 %v2364
        %v2676 = vunpack.c.h.b16 %v2364
        %v2677 = vunpack.c.l.b16 %v2365
        %v2678 = vunpack.c.h.b16 %v2365
        %v2679 = vunpack.c.l.b16 %v2366
        %v2680 = vunpack.c.h.b16 %v2366
        %v2681 = vunpack.c.l.b16 %v2367
        %v2682 = vunpack.c.h.b16 %v2367
        %v2683 = vunpack.c.l.b16 %v2368
        %v2684 = vunpack.c.h.b16 %v2368
        %v2685 = vunpack.c.l.b16 %v2369
        %v2686 = vunpack.c.h.b16 %v2369
        %v2687 = vunpack.c.l.b16 %v2370
        %v2688 = vunpack.c.h.b16 %v2370
        %v2689 = vunpack.c.l.b16 %v2371
        %v2690 = vunpack.c.h.b16 %v2371
        %v2691 = vunpack.c.l.b16 %v2372
        %v2692 = vunpack.c.h.b16 %v2372
        %v2693 = vunpack.c.l.b16 %v2373
        %v2694 = vunpack.c.h.b16 %v2373
        %v2695 = vunpack.c.l.b16 %v2374
        %v2696 = vunpack.c.h.b16 %v2374
        %v2697 = vunpack.c.l.b16 %v2375
        %v2698 = vunpack.c.h.b16 %v2375
        %v2699 = vunpack.c.l.b16 %v2376
        %v2700 = vunpack.c.h.b16 %v2376
        %v2701 = vunpack.c.l.b16 %v2377
        %v2702 = vunpack.c.h.b16 %v2377
        %v2703 = vunpack.c.l.b16 %v2378
        %v2704 = vunpack.c.h.b16 %v2378
        %v2705 = vunpack.c.l.b16 %v2379
        %v2706 = vunpack.c.h.b16 %v2379
        %v2707 = vunpack.c.l.b16 %v2380
        %v2708 = vunpack.c.h.b16 %v2380
        %v2709 = vunpack.c.l.b16 %v2381
        %v2710 = vunpack.c.h.b16 %v2381
        %v2711 = vunpack.c.l.b16 %v2382
        %v2712 = vunpack.c.h.b16 %v2382
        %v2713 = vunpack.c.l.b16 %v2383
        %v2714 = vunpack.c.h.b16 %v2383
        %v2715 = vunpack.c.l.b16 %v2384
        %v2716 = vunpack.c.h.b16 %v2384
        %v2717 = vunpack.c.l.b16 %v2385
        %v2718 = vunpack.c.h.b16 %v2385
        %v2719 = vunpack.c.l.b16 %v2386
        %v2720 = vunpack.c.h.b16 %v2386
        %v2721 = vunpack.c.l.b16 %v2387
        %v2722 = vunpack.c.h.b16 %v2387
        %v2723 = vunpack.c.l.b16 %v2388
        %v2724 = vunpack.c.h.b16 %v2388
        %v2725 = vunpack.c.l.b16 %v2389
        %v2726 = vunpack.c.h.b16 %v2389
        %v2727 = vunpack.c.l.b16 %v2390
        %v2728 = vunpack.c.h.b16 %v2390
        %v2729 = vunpack.c.l.b16 %v2391
        %v2730 = vunpack.c.h.b16 %v2391
        %v2731 = vunpack.c.l.b16 %v2392
        %v2732 = vunpack.c.h.b16 %v2392
        %v2733 = vunpack.c.l.b16 %v2393
        %v2734 = vunpack.c.h.b16 %v2393
        %v2735 = vunpack.c.l.b16 %v2394
        %v2736 = vunpack.c.h.b16 %v2394
        %v2737 = vunpack.c.l.b16 %v2395
        %v2738 = vunpack.c.h.b16 %v2395
        %v2739 = vunpack.c.l.b16 %v2396
        %v2740 = vunpack.c.h.b16 %v2396
        %v2741 = vunpack.c.l.b16 %v2397
        %v2742 = vunpack.c.h.b16 %v2397
        %v2743 = vunpack.c.l.b16 %v2398
        %v2744 = vunpack.c.h.b16 %v2398
        %v2745 = vunpack.c.l.b16 %v2399
        %v2746 = vunpack.c.h.b16 %v2399
        %v2747 = vunpack.c.l.b16 %v2400
        %v2748 = vunpack.c.h.b16 %v2400
        %v2749 = vunpack.c.l.b16 %v2401
        %v2750 = vunpack.c.h.b16 %v2401
        %v2751 = vunpack.c.l.b16 %v2402
        %v2752 = vunpack.c.h.b16 %v2402
        %v2753 = vunpack.c.l.b16 %v2403
        %v2754 = vunpack.c.h.b16 %v2403
        %v2755 = vunpack.c.l.b16 %v2404
        %v2756 = vunpack.c.h.b16 %v2404
        %v2757 = vunpack.c.l.b16 %v2405
        %v2758 = vunpack.c.h.b16 %v2405
        %v2759 = vunpack.c.l.b16 %v2406
        %v2760 = vunpack.c.h.b16 %v2406
        %v2761 = vunpack.c.l.b16 %v2407
        %v2762 = vunpack.c.h.b16 %v2407
        %v2763 = vunpack.c.l.b16 %v2408
        %v2764 = vunpack.c.h.b16 %v2408
        %v2765 = vunpack.c.l.b16 %v2409
        %v2766 = vunpack.c.h.b16 %v2409
        %v2767 = vunpack.c.l.b16 %v2410
        %v2768 = vunpack.c.h.b16 %v2410
        %v2769 = vunpack.c.l.b16 %v2411
        %v2770 = vunpack.c.h.b16 %v2411
        %v2771 = vunpack.c.l.b16 %v2412
        %v2772 = vunpack.c.h.b16 %v2412
        %v2773 = vunpack.c.l.b16 %v2413
        %v2774 = vunpack.c.h.b16 %v2413
        %v2775 = vunpack.c.l.b16 %v2414
        %v2776 = vunpack.c.h.b16 %v2414
        %v2777 = vunpack.c.l.b16 %v2415
        %v2778 = vunpack.c.h.b16 %v2415
        %v2779 = vunpack.c.l.b16 %v2416
        %v2780 = vunpack.c.h.b16 %v2416
        %v2781 = vunpack.c.l.b16 %v2417
        %v2782 = vunpack.c.h.b16 %v2417
        %v2783 = vunpack.c.l.b16 %v2418
        %v2784 = vunpack.c.h.b16 %v2418
        %v2785 = vunpack.c.l.b16 %v2419
        %v2786 = vunpack.c.h.b16 %v2419
        %v2787 = vunpack.c.l.b16 %v2420
        %v2788 = vunpack.c.h.b16 %v2420
        %v2789 = vunpack.c.l.b16 %v2421
        %v2790 = vunpack.c.h.b16 %v2421
        %v2791 = vunpack.c.l.b16 %v2422
        %v2792 = vunpack.c.h.b16 %v2422
        %v2793 = vunpack.c.l.b16 %v2423
        %v2794 = vunpack.c.h.b16 %v2423
        %v2795 = vunpack.c.l.b16 %v2424
        %v2796 = vunpack.c.h.b16 %v2424
        %v2797 = vunpack.c.l.b16 %v2425
        %v2798 = vunpack.c.h.b16 %v2425
        %v2799 = vunpack.c.l.b16 %v2426
        %v2800 = vunpack.c.h.b16 %v2426
        %v2801 = vunpack.c.l.b16 %v2427
        %v2802 = vunpack.c.h.b16 %v2427
        %v2803 = vunpack.c.l.b16 %v2428
        %v2804 = vunpack.c.h.b16 %v2428
        %v2805 = vunpack.c.l.b16 %v2429
        %v2806 = vunpack.c.h.b16 %v2429
        %v2807 = vunpack.c.l.b16 %v2430
        %v2808 = vunpack.c.h.b16 %v2430
        %v2809 = vunpack.c.l.b16 %v2431
        %v2810 = vunpack.c.h.b16 %v2431
        %v2811 = vunpack.c.l.b16 %v2432
        %v2812 = vunpack.c.h.b16 %v2432
        %v2813 = vunpack.c.l.b16 %v2433
        %v2814 = vunpack.c.h.b16 %v2433
        %v2815 = vunpack.c.l.b16 %v2434
        %v2816 = vunpack.c.h.b16 %v2434
        %v2817 = vunpack.c.l.b16 %v2435
        %v2818 = vunpack.c.h.b16 %v2435
        %v2819 = vunpack.c.l.b16 %v2436
        %v2820 = vunpack.c.h.b16 %v2436
        %v2821 = vunpack.c.l.b16 %v2437
        %v2822 = vunpack.c.h.b16 %v2437
        %v2823 = vunpack.c.l.b16 %v2438
        %v2824 = vunpack.c.h.b16 %v2438
        %v2825 = vunpack.c.l.b16 %v2439
        %v2826 = vunpack.c.h.b16 %v2439
        %v2827 = vunpack.c.l.b16 %v2440
        %v2828 = vunpack.c.h.b16 %v2440
        %v2829 = vunpack.c.l.b16 %v2441
        %v2830 = vunpack.c.h.b16 %v2441
        %v2831 = vunpack.c.l.b16 %v2442
        %v2832 = vunpack.c.h.b16 %v2442
        %v2833 = vunpack.c.l.b16 %v2443
        %v2834 = vunpack.c.h.b16 %v2443
        %v2835 = vunpack.c.l.b16 %v2444
        %v2836 = vunpack.c.h.b16 %v2444
        %v2837 = vunpack.c.l.b16 %v2445
        %v2838 = vunpack.c.h.b16 %v2445
        %v2839 = vunpack.c.l.b16 %v2446
        %v2840 = vunpack.c.h.b16 %v2446
        %v2841 = vunpack.c.l.b16 %v2447
        %v2842 = vunpack.c.h.b16 %v2447
        %v2843 = vunpack.c.l.b16 %v2448
        %v2844 = vunpack.c.h.b16 %v2448
        %v2845 = vunpack.c.l.b16 %v2449
        %v2846 = vunpack.c.h.b16 %v2449
        %v2847 = vunpack.c.l.b16 %v2450
        %v2848 = vunpack.c.h.b16 %v2450
        %v2849 = vunpack.c.l.b16 %v2451
        %v2850 = vunpack.c.h.b16 %v2451
        %v2851 = vunpack.c.l.b16 %v2452
        %v2852 = vunpack.c.h.b16 %v2452
        %v2853 = vunpack.c.l.b16 %v2453
        %v2854 = vunpack.c.h.b16 %v2453
        %v2855 = vunpack.c.l.b16 %v2454
        %v2856 = vunpack.c.h.b16 %v2454
        %v2857 = vpack.c.b16 %v2609, %v2601
        %v2858 = vpack.c.b16 %v2610, %v2602
        %v2859 = vpack.c.b16 %v2611, %v2603
        %v2860 = vpack.c.b16 %v2612, %v2604
        %v2861 = vpack.c.b16 %v2613, %v2605
        %v2862 = vpack.c.b16 %v2614, %v2606
        %v2863 = vpack.c.b16 %v2615, %v2607
        %v2864 = vpack.c.b16 %v2616, %v2608
        %v2865 = vpack.c.b16 %v2625, %v2617
        %v2866 = vpack.c.b16 %v2626, %v2618
        %v2867 = vpack.c.b16 %v2627, %v2619
        %v2868 = vpack.c.b16 %v2628, %v2620
        %v2869 = vpack.c.b16 %v2629, %v2621
        %v2870 = vpack.c.b16 %v2630, %v2622
        %v2871 = vpack.c.b16 %v2631, %v2623
        %v2872 = vpack.c.b16 %v2632, %v2624
        %v2873 = vpack.c.b16 %v2641, %v2633
        %v2874 = vpack.c.b16 %v2642, %v2634
        %v2875 = vpack.c.b16 %v2643, %v2635
        %v2876 = vpack.c.b16 %v2644, %v2636
        %v2877 = vpack.c.b16 %v2645, %v2637
        %v2878 = vpack.c.b16 %v2646, %v2638
        %v2879 = vpack.c.b16 %v2647, %v2639
        %v2880 = vpack.c.b16 %v2648, %v2640
        %v2881 = vpack.c.b16 %v2657, %v2649
        %v2882 = vpack.c.b16 %v2658, %v2650
        %v2883 = vpack.c.b16 %v2659, %v2651
        %v2884 = vpack.c.b16 %v2660, %v2652
        %v2885 = vpack.c.b16 %v2661, %v2653
        %v2886 = vpack.c.b16 %v2662, %v2654
        %v2887 = vpack.c.b16 %v2663, %v2655
        %v2888 = vpack.c.b16 %v2664, %v2656
        %v2889 = vpack.c.b16 %v2673, %v2665
        %v2890 = vpack.c.b16 %v2674, %v2666
        %v2891 = vpack.c.b16 %v2675, %v2667
        %v2892 = vpack.c.b16 %v2676, %v2668
        %v2893 = vpack.c.b16 %v2677, %v2669
        %v2894 = vpack.c.b16 %v2678, %v2670
        %v2895 = vpack.c.b16 %v2679, %v2671
        %v2896 = vpack.c.b16 %v2680, %v2672
        %v2897 = vpack.c.b16 %v2689, %v2681
        %v2898 = vpack.c.b16 %v2690, %v2682
        %v2899 = vpack.c.b16 %v2691, %v2683
        %v2900 = vpack.c.b16 %v2692, %v2684
        %v2901 = vpack.c.b16 %v2693, %v2685
        %v2902 = vpack.c.b16 %v2694, %v2686
        %v2903 = vpack.c.b16 %v2695, %v2687
        %v2904 = vpack.c.b16 %v2696, %v2688
        %v2905 = vpack.c.b16 %v2705, %v2697
        %v2906 = vpack.c.b16 %v2706, %v2698
        %v2907 = vpack.c.b16 %v2707, %v2699
        %v2908 = vpack.c.b16 %v2708, %v2700
        %v2909 = vpack.c.b16 %v2709, %v2701
        %v2910 = vpack.c.b16 %v2710, %v2702
        %v2911 = vpack.c.b16 %v2711, %v2703
        %v2912 = vpack.c.b16 %v2712, %v2704
        %v2913 = vpack.c.b16 %v2721, %v2713
        %v2914 = vpack.c.b16 %v2722, %v2714
        %v2915 = vpack.c.b16 %v2723, %v2715
        %v2916 = vpack.c.b16 %v2724, %v2716
        %v2917 = vpack.c.b16 %v2725, %v2717
        %v2918 = vpack.c.b16 %v2726, %v2718
        %v2919 = vpack.c.b16 %v2727, %v2719
        %v2920 = vpack.c.b16 %v2728, %v2720
        %v2921 = vpack.c.b16 %v2737, %v2729
        %v2922 = vpack.c.b16 %v2738, %v2730
        %v2923 = vpack.c.b16 %v2739, %v2731
        %v2924 = vpack.c.b16 %v2740, %v2732
        %v2925 = vpack.c.b16 %v2741, %v2733
        %v2926 = vpack.c.b16 %v2742, %v2734
        %v2927 = vpack.c.b16 %v2743, %v2735
        %v2928 = vpack.c.b16 %v2744, %v2736
        %v2929 = vpack.c.b16 %v2753, %v2745
        %v2930 = vpack.c.b16 %v2754, %v2746
        %v2931 = vpack.c.b16 %v2755, %v2747
        %v2932 = vpack.c.b16 %v2756, %v2748
        %v2933 = vpack.c.b16 %v2757, %v2749
        %v2934 = vpack.c.b16 %v2758, %v2750
        %v2935 = vpack.c.b16 %v2759, %v2751
        %v2936 = vpack.c.b16 %v2760, %v2752
        %v2937 = vpack.c.b16 %v2769, %v2761
        %v2938 = vpack.c.b16 %v2770, %v2762
        %v2939 = vpack.c.b16 %v2771, %v2763
        %v2940 = vpack.c.b16 %v2772, %v2764
        %v2941 = vpack.c.b16 %v2773, %v2765
        %v2942 = vpack.c.b16 %v2774, %v2766
        %v2943 = vpack.c.b16 %v2775, %v2767
        %v2944 = vpack.c.b16 %v2776, %v2768
        %v2945 = vpack.c.b16 %v2785, %v2777
        %v2946 = vpack.c.b16 %v2786, %v2778
        %v2947 = vpack.c.b16 %v2787, %v2779
        %v2948 = vpack.c.b16 %v2788, %v2780
        %v2949 = vpack.c.b16 %v2789, %v2781
        %v2950 = vpack.c.b16 %v2790, %v2782
        %v2951 = vpack.c.b16 %v2791, %v2783
        %v2952 = vpack.c.b16 %v2792, %v2784
        %v2953 = vpack.c.b16 %v2801, %v2793
        %v2954 = vpack.c.b16 %v2802, %v2794
        %v2955 = vpack.c.b16 %v2803, %v2795
        %v2956 = vpack.c.b16 %v2804, %v2796
        %v2957 = vpack.c.b16 %v2805, %v2797
        %v2958 = vpack.c.b16 %v2806, %v2798
        %v2959 = vpack.c.b16 %v2807, %v2799
        %v2960 = vpack.c.b16 %v2808, %v2800
        %v2961 = vpack.c.b16 %v2817, %v2809
        %v2962 = vpack.c.b16 %v2818, %v2810
        %v2963 = vpack.c.b16 %v2819, %v2811
        %v2964 = vpack.c.b16 %v2820, %v2812
        %v2965 = vpack.c.b16 %v2821, %v2813
        %v2966 = vpack.c.b16 %v2822, %v2814
        %v2967 = vpack.c.b16 %v2823, %v2815
        %v2968 = vpack.c.b16 %v2824, %v2816
        %v2969 = vpack.c.b16 %v2833, %v2825
        %v2970 = vpack.c.b16 %v2834, %v2826
        %v2971 = vpack.c.b16 %v2835, %v2827
        %v2972 = vpack.c.b16 %v2836, %v2828
        %v2973 = vpack.c.b16 %v2837, %v2829
        %v2974 = vpack.c.b16 %v2838, %v2830
        %v2975 = vpack.c.b16 %v2839, %v2831
        %v2976 = vpack.c.b16 %v2840, %v2832
        %v2977 = vpack.c.b16 %v2849, %v2841
        %v2978 = vpack.c.b16 %v2850, %v2842
        %v2979 = vpack.c.b16 %v2851, %v2843
        %v2980 = vpack.c.b16 %v2852, %v2844
        %v2981 = vpack.c.b16 %v2853, %v2845
        %v2982 = vpack.c.b16 %v2854, %v2846
        %v2983 = vpack.c.b16 %v2855, %v2847
        %v2984 = vpack.c.b16 %v2856, %v2848
        %3113 = vmatpush.bf16.msra.mxu0 %v2913
        %3114 = vmatpush.bf16.msra.mxu0 %v2905
        %3115 = vmatpush.bf16.msra.mxu0 %v2897
        %3116 = vmatpush.bf16.msra.mxu0 %v2889
        %3117 = vmatpush.bf16.msra.mxu0 %v2881
        %3118 = vmatpush.bf16.msra.mxu0 %v2873
        %3119 = vmatpush.bf16.msra.mxu0 %v2865
        %3120 = vmatpush.bf16.msra.mxu0 %v2857
        %3121 = vmatmul.bf16.gmra.mxu0 %v2325
        %v3122 = vpop.f32.mrf.mxu0
        %v3123 = vadd.f32 %v2457, %v3122
        %v3124 = vpop.f32.mrf.mxu0
        %v3125 = vadd.f32 %v2457, %v3124
        %3126 = vdwg.mxu0
        %3127 = vmatpush.bf16.msra.mxu0 %v2977
        %3128 = vmatpush.bf16.msra.mxu0 %v2969
        %3129 = vmatpush.bf16.msra.mxu0 %v2961
        %3130 = vmatpush.bf16.msra.mxu0 %v2953
        %3131 = vmatpush.bf16.msra.mxu0 %v2945
        %3132 = vmatpush.bf16.msra.mxu0 %v2937
        %3133 = vmatpush.bf16.msra.mxu0 %v2929
        %3134 = vmatpush.bf16.msra.mxu0 %v2921
        %3135 = vmatmul.bf16.gmra.mxu0 %v2326
        %v3136 = vpop.f32.mrf.mxu0
        %v3137 = vadd.f32 %v3123, %v3136
        %v3138 = vpop.f32.mrf.mxu0
        %v3139 = vadd.f32 %v3125, %v3138
        %3140 = vdwg.mxu0
        %3141 = vmatpush.bf16.msra.mxu0 %v2914
        %3142 = vmatpush.bf16.msra.mxu0 %v2906
        %3143 = vmatpush.bf16.msra.mxu0 %v2898
        %3144 = vmatpush.bf16.msra.mxu0 %v2890
        %3145 = vmatpush.bf16.msra.mxu0 %v2882
        %3146 = vmatpush.bf16.msra.mxu0 %v2874
        %3147 = vmatpush.bf16.msra.mxu0 %v2866
        %3148 = vmatpush.bf16.msra.mxu0 %v2858
        %3149 = vmatmul.bf16.gmra.mxu0 %v2325
        %v3150 = vpop.f32.mrf.mxu0
        %v3151 = vadd.f32 %v2458, %v3150
        %v3152 = vpop.f32.mrf.mxu0
        %v3153 = vadd.f32 %v2458, %v3152
        %3154 = vdwg.mxu0
        %3155 = vmatpush.bf16.msra.mxu0 %v2978
        %3156 = vmatpush.bf16.msra.mxu0 %v2970
        %3157 = vmatpush.bf16.msra.mxu0 %v2962
        %3158 = vmatpush.bf16.msra.mxu0 %v2954
        %3159 = vmatpush.bf16.msra.mxu0 %v2946
        %3160 = vmatpush.bf16.msra.mxu0 %v2938
        %3161 = vmatpush.bf16.msra.mxu0 %v2930
        %3162 = vmatpush.bf16.msra.mxu0 %v2922
        %3163 = vmatmul.bf16.gmra.mxu0 %v2326
        %v3164 = vpop.f32.mrf.mxu0
        %v3165 = vadd.f32 %v3151, %v3164
        %v3166 = vpop.f32.mrf.mxu0
        %v3167 = vadd.f32 %v3153, %v3166
        %3168 = vdwg.mxu0
        %3169 = vmatpush.bf16.msra.mxu0 %v2915
        %3170 = vmatpush.bf16.msra.mxu0 %v2907
        %3171 = vmatpush.bf16.msra.mxu0 %v2899
        %3172 = vmatpush.bf16.msra.mxu0 %v2891
        %3173 = vmatpush.bf16.msra.mxu0 %v2883
        %3174 = vmatpush.bf16.msra.mxu0 %v2875
        %3175 = vmatpush.bf16.msra.mxu0 %v2867
        %3176 = vmatpush.bf16.msra.mxu0 %v2859
        %3177 = vmatmul.bf16.gmra.mxu0 %v2325
        %v3178 = vpop.f32.mrf.mxu0
        %v3179 = vadd.f32 %v2459, %v3178
        %v3180 = vpop.f32.mrf.mxu0
        %v3181 = vadd.f32 %v2459, %v3180
        %3182 = vdwg.mxu0
        %3183 = vmatpush.bf16.msra.mxu0 %v2979
        %3184 = vmatpush.bf16.msra.mxu0 %v2971
        %3185 = vmatpush.bf16.msra.mxu0 %v2963
        %3186 = vmatpush.bf16.msra.mxu0 %v2955
        %3187 = vmatpush.bf16.msra.mxu0 %v2947
        %3188 = vmatpush.bf16.msra.mxu0 %v2939
        %3189 = vmatpush.bf16.msra.mxu0 %v2931
        %3190 = vmatpush.bf16.msra.mxu0 %v2923
        %3191 = vmatmul.bf16.gmra.mxu0 %v2326
        %v3192 = vpop.f32.mrf.mxu0
        %v3193 = vadd.f32 %v3179, %v3192
        %v3194 = vpop.f32.mrf.mxu0
        %v3195 = vadd.f32 %v3181, %v3194
        %3196 = vdwg.mxu0
        %3197 = vmatpush.bf16.msra.mxu0 %v2916
        %3198 = vmatpush.bf16.msra.mxu0 %v2908
        %3199 = vmatpush.bf16.msra.mxu0 %v2900
        %3200 = vmatpush.bf16.msra.mxu0 %v2892
        %3201 = vmatpush.bf16.msra.mxu0 %v2884
        %3202 = vmatpush.bf16.msra.mxu0 %v2876
        %3203 = vmatpush.bf16.msra.mxu0 %v2868
        %3204 = vmatpush.bf16.msra.mxu0 %v2860
        %3205 = vmatmul.bf16.gmra.mxu0 %v2325
        %v3206 = vpop.f32.mrf.mxu0
        %v3207 = vadd.f32 %v2460, %v3206
        %v3208 = vpop.f32.mrf.mxu0
        %v3209 = vadd.f32 %v2460, %v3208
        %3210 = vdwg.mxu0
        %3211 = vmatpush.bf16.msra.mxu0 %v2980
        %3212 = vmatpush.bf16.msra.mxu0 %v2972
        %3213 = vmatpush.bf16.msra.mxu0 %v2964
        %3214 = vmatpush.bf16.msra.mxu0 %v2956
        %3215 = vmatpush.bf16.msra.mxu0 %v2948
        %3216 = vmatpush.bf16.msra.mxu0 %v2940
        %3217 = vmatpush.bf16.msra.mxu0 %v2932
        %3218 = vmatpush.bf16.msra.mxu0 %v2924
        %3219 = vmatmul.bf16.gmra.mxu0 %v2326
        %v3220 = vpop.f32.mrf.mxu0
        %v3221 = vadd.f32 %v3207, %v3220
        %v3222 = vpop.f32.mrf.mxu0
        %v3223 = vadd.f32 %v3209, %v3222
        %3224 = vdwg.mxu0
        %3225 = vmatpush.bf16.msra.mxu0 %v2917
        %3226 = vmatpush.bf16.msra.mxu0 %v2909
        %3227 = vmatpush.bf16.msra.mxu0 %v2901
        %3228 = vmatpush.bf16.msra.mxu0 %v2893
        %3229 = vmatpush.bf16.msra.mxu0 %v2885
        %3230 = vmatpush.bf16.msra.mxu0 %v2877
        %3231 = vmatpush.bf16.msra.mxu0 %v2869
        %3232 = vmatpush.bf16.msra.mxu0 %v2861
        %3233 = vmatmul.bf16.gmra.mxu0 %v2325
        %v3234 = vpop.f32.mrf.mxu0
        %v3235 = vadd.f32 %v2461, %v3234
        %v3236 = vpop.f32.mrf.mxu0
        %v3237 = vadd.f32 %v2461, %v3236
        %3238 = vdwg.mxu0
        %3239 = vmatpush.bf16.msra.mxu0 %v2981
        %3240 = vmatpush.bf16.msra.mxu0 %v2973
        %3241 = vmatpush.bf16.msra.mxu0 %v2965
        %3242 = vmatpush.bf16.msra.mxu0 %v2957
        %3243 = vmatpush.bf16.msra.mxu0 %v2949
        %3244 = vmatpush.bf16.msra.mxu0 %v2941
        %3245 = vmatpush.bf16.msra.mxu0 %v2933
        %3246 = vmatpush.bf16.msra.mxu0 %v2925
        %3247 = vmatmul.bf16.gmra.mxu0 %v2326
        %v3248 = vpop.f32.mrf.mxu0
        %v3249 = vadd.f32 %v3235, %v3248
        %v3250 = vpop.f32.mrf.mxu0
        %v3251 = vadd.f32 %v3237, %v3250
        %3252 = vdwg.mxu0
        %3253 = vmatpush.bf16.msra.mxu0 %v2918
        %3254 = vmatpush.bf16.msra.mxu0 %v2910
        %3255 = vmatpush.bf16.msra.mxu0 %v2902
        %3256 = vmatpush.bf16.msra.mxu0 %v2894
        %3257 = vmatpush.bf16.msra.mxu0 %v2886
        %3258 = vmatpush.bf16.msra.mxu0 %v2878
        %3259 = vmatpush.bf16.msra.mxu0 %v2870
        %3260 = vmatpush.bf16.msra.mxu0 %v2862
        %3261 = vmatmul.bf16.gmra.mxu0 %v2325
        %v3262 = vpop.f32.mrf.mxu0
        %v3263 = vadd.f32 %v2462, %v3262
        %v3264 = vpop.f32.mrf.mxu0
        %v3265 = vadd.f32 %v2462, %v3264
        %3266 = vdwg.mxu0
        %3267 = vmatpush.bf16.msra.mxu0 %v2982
        %3268 = vmatpush.bf16.msra.mxu0 %v2974
        %3269 = vmatpush.bf16.msra.mxu0 %v2966
        %3270 = vmatpush.bf16.msra.mxu0 %v2958
        %3271 = vmatpush.bf16.msra.mxu0 %v2950
        %3272 = vmatpush.bf16.msra.mxu0 %v2942
        %3273 = vmatpush.bf16.msra.mxu0 %v2934
        %3274 = vmatpush.bf16.msra.mxu0 %v2926
        %3275 = vmatmul.bf16.gmra.mxu0 %v2326
        %v3276 = vpop.f32.mrf.mxu0
        %v3277 = vadd.f32 %v3263, %v3276
        %v3278 = vpop.f32.mrf.mxu0
        %v3279 = vadd.f32 %v3265, %v3278
        %3280 = vdwg.mxu0
        %3281 = vmatpush.bf16.msra.mxu0 %v2919
        %3282 = vmatpush.bf16.msra.mxu0 %v2911
        %3283 = vmatpush.bf16.msra.mxu0 %v2903
        %3284 = vmatpush.bf16.msra.mxu0 %v2895
        %3285 = vmatpush.bf16.msra.mxu0 %v2887
        %3286 = vmatpush.bf16.msra.mxu0 %v2879
        %3287 = vmatpush.bf16.msra.mxu0 %v2871
        %3288 = vmatpush.bf16.msra.mxu0 %v2863
        %3289 = vmatmul.bf16.gmra.mxu0 %v2325
        %v3290 = vpop.f32.mrf.mxu0
        %v3291 = vadd.f32 %v2463, %v3290
        %v3292 = vpop.f32.mrf.mxu0
        %v3293 = vadd.f32 %v2463, %v3292
        %3294 = vdwg.mxu0
        %3295 = vmatpush.bf16.msra.mxu0 %v2983
        %3296 = vmatpush.bf16.msra.mxu0 %v2975
        %3297 = vmatpush.bf16.msra.mxu0 %v2967
        %3298 = vmatpush.bf16.msra.mxu0 %v2959
        %3299 = vmatpush.bf16.msra.mxu0 %v2951
        %3300 = vmatpush.bf16.msra.mxu0 %v2943
        %3301 = vmatpush.bf16.msra.mxu0 %v2935
        %3302 = vmatpush.bf16.msra.mxu0 %v2927
        %3303 = vmatmul.bf16.gmra.mxu0 %v2326
        %v3304 = vpop.f32.mrf.mxu0
        %v3305 = vadd.f32 %v3291, %v3304
        %v3306 = vpop.f32.mrf.mxu0
        %v3307 = vadd.f32 %v3293, %v3306
        %3308 = vdwg.mxu0
        %3309 = vmatpush.bf16.msra.mxu0 %v2920
        %3310 = vmatpush.bf16.msra.mxu0 %v2912
        %3311 = vmatpush.bf16.msra.mxu0 %v2904
        %3312 = vmatpush.bf16.msra.mxu0 %v2896
        %3313 = vmatpush.bf16.msra.mxu0 %v2888
        %3314 = vmatpush.bf16.msra.mxu0 %v2880
        %3315 = vmatpush.bf16.msra.mxu0 %v2872
        %3316 = vmatpush.bf16.msra.mxu0 %v2864
        %3317 = vmatmul.bf16.gmra.mxu0 %v2325
        %v3318 = vpop.f32.mrf.mxu0
        %v3319 = vadd.f32 %v2464, %v3318
        %v3320 = vpop.f32.mrf.mxu0
        %v3321 = vadd.f32 %v2464, %v3320
        %3322 = vdwg.mxu0
        %3323 = vmatpush.bf16.msra.mxu0 %v2984
        %3324 = vmatpush.bf16.msra.mxu0 %v2976
        %3325 = vmatpush.bf16.msra.mxu0 %v2968
        %3326 = vmatpush.bf16.msra.mxu0 %v2960
        %3327 = vmatpush.bf16.msra.mxu0 %v2952
        %3328 = vmatpush.bf16.msra.mxu0 %v2944
        %3329 = vmatpush.bf16.msra.mxu0 %v2936
        %3330 = vmatpush.bf16.msra.mxu0 %v2928
        %3331 = vmatmul.bf16.gmra.mxu0 %v2326
        %v3332 = vpop.f32.mrf.mxu0
        %v3333 = vadd.f32 %v3319, %v3332
        %v3334 = vpop.f32.mrf.mxu0
        %v3335 = vadd.f32 %v3321, %v3334
        %3336 = vdwg.mxu0
        %v3337 = vmul.f32 %v3137, 0.5
        %v3338 = vmul.f32 %v3165, 0.5
        %v3339 = vmul.f32 %v3193, 0.5
        %v3340 = vmul.f32 %v3221, 0.5
        %v3341 = vmul.f32 %v3249, 0.5
        %v3342 = vmul.f32 %v3277, 0.5
        %v3343 = vmul.f32 %v3305, 0.5
        %v3344 = vmul.f32 %v3333, 0.5
        %v3345 = vmul.f32 %v3139, 0.5
        %v3346 = vmul.f32 %v3167, 0.5
        %v3347 = vmul.f32 %v3195, 0.5
        %v3348 = vmul.f32 %v3223, 0.5
        %v3349 = vmul.f32 %v3251, 0.5
        %v3350 = vmul.f32 %v3279, 0.5
        %v3351 = vmul.f32 %v3307, 0.5
        %v3352 = vmul.f32 %v3335, 0.5
        %v3353 = vmul.f32 %v3137, 0.044715
        %v3354 = vmul.f32 %v3165, 0.044715
        %v3355 = vmul.f32 %v3193, 0.044715
        %v3356 = vmul.f32 %v3221, 0.044715
        %v3357 = vmul.f32 %v3249, 0.044715
        %v3358 = vmul.f32 %v3277, 0.044715
        %v3359 = vmul.f32 %v3305, 0.044715
        %v3360 = vmul.f32 %v3333, 0.044715
        %v3361 = vmul.f32 %v3139, 0.044715
        %v3362 = vmul.f32 %v3167, 0.044715
        %v3363 = vmul.f32 %v3195, 0.044715
        %v3364 = vmul.f32 %v3223, 0.044715
        %v3365 = vmul.f32 %v3251, 0.044715
        %v3366 = vmul.f32 %v3279, 0.044715
        %v3367 = vmul.f32 %v3307, 0.044715
        %v3368 = vmul.f32 %v3335, 0.044715
        %v3369 = vmul.f32 %v3353, %v3137
        %v3370 = vmul.f32 %v3354, %v3165
        %v3371 = vmul.f32 %v3355, %v3193
        %v3372 = vmul.f32 %v3356, %v3221
        %v3373 = vmul.f32 %v3357, %v3249
        %v3374 = vmul.f32 %v3358, %v3277
        %v3375 = vmul.f32 %v3359, %v3305
        %v3376 = vmul.f32 %v3360, %v3333
        %v3377 = vmul.f32 %v3361, %v3139
        %v3378 = vmul.f32 %v3362, %v3167
        %v3379 = vmul.f32 %v3363, %v3195
        %v3380 = vmul.f32 %v3364, %v3223
        %v3381 = vmul.f32 %v3365, %v3251
        %v3382 = vmul.f32 %v3366, %v3279
        %v3383 = vmul.f32 %v3367, %v3307
        %v3384 = vmul.f32 %v3368, %v3335
        %v3385 = vmul.f32 %v3369, %v3137
        %v3386 = vmul.f32 %v3370, %v3165
        %v3387 = vmul.f32 %v3371, %v3193
        %v3388 = vmul.f32 %v3372, %v3221
        %v3389 = vmul.f32 %v3373, %v3249
        %v3390 = vmul.f32 %v3374, %v3277
        %v3391 = vmul.f32 %v3375, %v3305
        %v3392 = vmul.f32 %v3376, %v3333
        %v3393 = vmul.f32 %v3377, %v3139
        %v3394 = vmul.f32 %v3378, %v3167
        %v3395 = vmul.f32 %v3379, %v3195
        %v3396 = vmul.f32 %v3380, %v3223
        %v3397 = vmul.f32 %v3381, %v3251
        %v3398 = vmul.f32 %v3382, %v3279
        %v3399 = vmul.f32 %v3383, %v3307
        %v3400 = vmul.f32 %v3384, %v3335
        %v3401 = vadd.f32 %v3137, %v3385
        %v3402 = vadd.f32 %v3165, %v3386
        %v3403 = vadd.f32 %v3193, %v3387
        %v3404 = vadd.f32 %v3221, %v3388
        %v3405 = vadd.f32 %v3249, %v3389
        %v3406 = vadd.f32 %v3277, %v3390
        %v3407 = vadd.f32 %v3305, %v3391
        %v3408 = vadd.f32 %v3333, %v3392
        %v3409 = vadd.f32 %v3139, %v3393
        %v3410 = vadd.f32 %v3167, %v3394
        %v3411 = vadd.f32 %v3195, %v3395
        %v3412 = vadd.f32 %v3223, %v3396
        %v3413 = vadd.f32 %v3251, %v3397
        %v3414 = vadd.f32 %v3279, %v3398
        %v3415 = vadd.f32 %v3307, %v3399
        %v3416 = vadd.f32 %v3335, %v3400
        %v3417 = vmul.f32 %v3401, 0.7978846
        %v3418 = vmul.f32 %v3402, 0.7978846
        %v3419 = vmul.f32 %v3403, 0.7978846
        %v3420 = vmul.f32 %v3404, 0.7978846
        %v3421 = vmul.f32 %v3405, 0.7978846
        %v3422 = vmul.f32 %v3406, 0.7978846
        %v3423 = vmul.f32 %v3407, 0.7978846
        %v3424 = vmul.f32 %v3408, 0.7978846
        %v3425 = vmul.f32 %v3409, 0.7978846
        %v3426 = vmul.f32 %v3410, 0.7978846
        %v3427 = vmul.f32 %v3411, 0.7978846
        %v3428 = vmul.f32 %v3412, 0.7978846
        %v3429 = vmul.f32 %v3413, 0.7978846
        %v3430 = vmul.f32 %v3414, 0.7978846
        %v3431 = vmul.f32 %v3415, 0.7978846
        %v3432 = vmul.f32 %v3416, 0.7978846
        %v3433 = vtanh.pop %v3417
        %v3434 = vtanh.pop %v3418
        %v3435 = vtanh.pop %v3419
        %v3436 = vtanh.pop %v3420
        %v3437 = vtanh.pop %v3421
        %v3438 = vtanh.pop %v3422
        %v3439 = vtanh.pop %v3423
        %v3440 = vtanh.pop %v3424
        %v3441 = vtanh.pop %v3425
        %v3442 = vtanh.pop %v3426
        %v3443 = vtanh.pop %v3427
        %v3444 = vtanh.pop %v3428
        %v3445 = vtanh.pop %v3429
        %v3446 = vtanh.pop %v3430
        %v3447 = vtanh.pop %v3431
        %v3448 = vtanh.pop %v3432
        %v3449 = vadd.f32 %v3433, 1.0
        %v3450 = vadd.f32 %v3434, 1.0
        %v3451 = vadd.f32 %v3435, 1.0
        %v3452 = vadd.f32 %v3436, 1.0
        %v3453 = vadd.f32 %v3437, 1.0
        %v3454 = vadd.f32 %v3438, 1.0
        %v3455 = vadd.f32 %v3439, 1.0
        %v3456 = vadd.f32 %v3440, 1.0
        %v3457 = vadd.f32 %v3441, 1.0
        %v3458 = vadd.f32 %v3442, 1.0
        %v3459 = vadd.f32 %v3443, 1.0
        %v3460 = vadd.f32 %v3444, 1.0
        %v3461 = vadd.f32 %v3445, 1.0
        %v3462 = vadd.f32 %v3446, 1.0
        %v3463 = vadd.f32 %v3447, 1.0
        %v3464 = vadd.f32 %v3448, 1.0
        %v3465 = vmul.f32 %v3337, %v3449
        %v3466 = vmul.f32 %v3338, %v3450
        %v3467 = vmul.f32 %v3339, %v3451
        %v3468 = vmul.f32 %v3340, %v3452
        %v3469 = vmul.f32 %v3341, %v3453
        %v3470 = vmul.f32 %v3342, %v3454
        %v3471 = vmul.f32 %v3343, %v3455
        %v3472 = vmul.f32 %v3344, %v3456
        %v3473 = vmul.f32 %v3345, %v3457
        %v3474 = vmul.f32 %v3346, %v3458
        %v3475 = vmul.f32 %v3347, %v3459
        %v3476 = vmul.f32 %v3348, %v3460
        %v3477 = vmul.f32 %v3349, %v3461
        %v3478 = vmul.f32 %v3350, %v3462
        %v3479 = vmul.f32 %v3351, %v3463
        %v3480 = vmul.f32 %v3352, %v3464
        %v3481 = vpack.c.bf16 %v3473, %v3465
        %v3482 = vpack.c.bf16 %v3474, %v3466
        %v3483 = vpack.c.bf16 %v3475, %v3467
        %v3484 = vpack.c.bf16 %v3476, %v3468
        %v3485 = vpack.c.bf16 %v3477, %v3469
        %v3486 = vpack.c.bf16 %v3478, %v3470
        %v3487 = vpack.c.bf16 %v3479, %v3471
        %v3488 = vpack.c.bf16 %v3480, %v3472
        %v3489 = vld [vmem:[%s801] sm:$0xff]
        %v3490 = vld [vmem:[%s801 + $0x8] sm:$0xff]
        %v3491 = vld [vmem:[%s801 + $0x10] sm:$0xff]
        %v3492 = vld [vmem:[%s801 + $0x18] sm:$0xff]
        %v3493 = vld [vmem:[%s801 + $0x20] sm:$0xff]
        %v3494 = vld [vmem:[%s801 + $0x28] sm:$0xff]
        %v3495 = vld [vmem:[%s801 + $0x30] sm:$0xff]
        %v3496 = vld [vmem:[%s801 + $0x38] sm:$0xff]
        %v3497 = vld [vmem:[%s801 + $0x40] sm:$0xff]
        %v3498 = vld [vmem:[%s801 + $0x48] sm:$0xff]
        %v3499 = vld [vmem:[%s801 + $0x50] sm:$0xff]
        %v3500 = vld [vmem:[%s801 + $0x58] sm:$0xff]
        %v3501 = vld [vmem:[%s801 + $0x60] sm:$0xff]
        %v3502 = vld [vmem:[%s801 + $0x68] sm:$0xff]
        %v3503 = vld [vmem:[%s801 + $0x70] sm:$0xff]
        %v3504 = vld [vmem:[%s801 + $0x78] sm:$0xff]
        %v3505 = vld [vmem:[%s801 + $0x80] sm:$0xff]
        %v3506 = vld [vmem:[%s801 + $0x88] sm:$0xff]
        %v3507 = vld [vmem:[%s801 + $0x90] sm:$0xff]
        %v3508 = vld [vmem:[%s801 + $0x98] sm:$0xff]
        %v3509 = vld [vmem:[%s801 + $0xa0] sm:$0xff]
        %v3510 = vld [vmem:[%s801 + $0xa8] sm:$0xff]
        %v3511 = vld [vmem:[%s801 + $0xb0] sm:$0xff]
        %v3512 = vld [vmem:[%s801 + $0xb8] sm:$0xff]
        %v3513 = vld [vmem:[%s801 + $0xc0] sm:$0xff]
        %v3514 = vld [vmem:[%s801 + $0xc8] sm:$0xff]
        %v3515 = vld [vmem:[%s801 + $0xd0] sm:$0xff]
        %v3516 = vld [vmem:[%s801 + $0xd8] sm:$0xff]
        %v3517 = vld [vmem:[%s801 + $0xe0] sm:$0xff]
        %v3518 = vld [vmem:[%s801 + $0xe8] sm:$0xff]
        %v3519 = vld [vmem:[%s801 + $0xf0] sm:$0xff]
        %v3520 = vld [vmem:[%s801 + $0xf8] sm:$0xff]
        %v3521 = vld [vmem:[%s801 + $0x100] sm:$0xff]
        %v3522 = vld [vmem:[%s801 + $0x108] sm:$0xff]
        %v3523 = vld [vmem:[%s801 + $0x110] sm:$0xff]
        %v3524 = vld [vmem:[%s801 + $0x118] sm:$0xff]
        %v3525 = vld [vmem:[%s801 + $0x120] sm:$0xff]
        %v3526 = vld [vmem:[%s801 + $0x128] sm:$0xff]
        %v3527 = vld [vmem:[%s801 + $0x130] sm:$0xff]
        %v3528 = vld [vmem:[%s801 + $0x138] sm:$0xff]
        %v3529 = vld [vmem:[%s801 + $0x140] sm:$0xff]
        %v3530 = vld [vmem:[%s801 + $0x148] sm:$0xff]
        %v3531 = vld [vmem:[%s801 + $0x150] sm:$0xff]
        %v3532 = vld [vmem:[%s801 + $0x158] sm:$0xff]
        %v3533 = vld [vmem:[%s801 + $0x160] sm:$0xff]
        %v3534 = vld [vmem:[%s801 + $0x168] sm:$0xff]
        %v3535 = vld [vmem:[%s801 + $0x170] sm:$0xff]
        %v3536 = vld [vmem:[%s801 + $0x178] sm:$0xff]
        %v3537 = vld [vmem:[%s801 + $0x180] sm:$0xff]
        %v3538 = vld [vmem:[%s801 + $0x188] sm:$0xff]
        %v3539 = vld [vmem:[%s801 + $0x190] sm:$0xff]
        %v3540 = vld [vmem:[%s801 + $0x198] sm:$0xff]
        %v3541 = vld [vmem:[%s801 + $0x1a0] sm:$0xff]
        %v3542 = vld [vmem:[%s801 + $0x1a8] sm:$0xff]
        %v3543 = vld [vmem:[%s801 + $0x1b0] sm:$0xff]
        %v3544 = vld [vmem:[%s801 + $0x1b8] sm:$0xff]
        %v3545 = vld [vmem:[%s801 + $0x1c0] sm:$0xff]
        %v3546 = vld [vmem:[%s801 + $0x1c8] sm:$0xff]
        %v3547 = vld [vmem:[%s801 + $0x1d0] sm:$0xff]
        %v3548 = vld [vmem:[%s801 + $0x1d8] sm:$0xff]
        %v3549 = vld [vmem:[%s801 + $0x1e0] sm:$0xff]
        %v3550 = vld [vmem:[%s801 + $0x1e8] sm:$0xff]
        %v3551 = vld [vmem:[%s801 + $0x1f0] sm:$0xff]
        %v3552 = vld [vmem:[%s801 + $0x1f8] sm:$0xff]
        %v3553 = vld [vmem:[%s801 + $0x200] sm:$0xff]
        %v3554 = vld [vmem:[%s801 + $0x208] sm:$0xff]
        %v3555 = vld [vmem:[%s801 + $0x210] sm:$0xff]
        %v3556 = vld [vmem:[%s801 + $0x218] sm:$0xff]
        %v3557 = vld [vmem:[%s801 + $0x220] sm:$0xff]
        %v3558 = vld [vmem:[%s801 + $0x228] sm:$0xff]
        %v3559 = vld [vmem:[%s801 + $0x230] sm:$0xff]
        %v3560 = vld [vmem:[%s801 + $0x238] sm:$0xff]
        %v3561 = vld [vmem:[%s801 + $0x240] sm:$0xff]
        %v3562 = vld [vmem:[%s801 + $0x248] sm:$0xff]
        %v3563 = vld [vmem:[%s801 + $0x250] sm:$0xff]
        %v3564 = vld [vmem:[%s801 + $0x258] sm:$0xff]
        %v3565 = vld [vmem:[%s801 + $0x260] sm:$0xff]
        %v3566 = vld [vmem:[%s801 + $0x268] sm:$0xff]
        %v3567 = vld [vmem:[%s801 + $0x270] sm:$0xff]
        %v3568 = vld [vmem:[%s801 + $0x278] sm:$0xff]
        %v3569 = vld [vmem:[%s801 + $0x280] sm:$0xff]
        %v3570 = vld [vmem:[%s801 + $0x288] sm:$0xff]
        %v3571 = vld [vmem:[%s801 + $0x290] sm:$0xff]
        %v3572 = vld [vmem:[%s801 + $0x298] sm:$0xff]
        %v3573 = vld [vmem:[%s801 + $0x2a0] sm:$0xff]
        %v3574 = vld [vmem:[%s801 + $0x2a8] sm:$0xff]
        %v3575 = vld [vmem:[%s801 + $0x2b0] sm:$0xff]
        %v3576 = vld [vmem:[%s801 + $0x2b8] sm:$0xff]
        %v3577 = vld [vmem:[%s801 + $0x2c0] sm:$0xff]
        %v3578 = vld [vmem:[%s801 + $0x2c8] sm:$0xff]
        %v3579 = vld [vmem:[%s801 + $0x2d0] sm:$0xff]
        %v3580 = vld [vmem:[%s801 + $0x2d8] sm:$0xff]
        %v3581 = vld [vmem:[%s801 + $0x2e0] sm:$0xff]
        %v3582 = vld [vmem:[%s801 + $0x2e8] sm:$0xff]
        %v3583 = vld [vmem:[%s801 + $0x2f0] sm:$0xff]
        %v3584 = vld [vmem:[%s801 + $0x2f8] sm:$0xff]
        %v3585 = vld [vmem:[%s801 + $0x300] sm:$0xff]
        %v3586 = vld [vmem:[%s801 + $0x308] sm:$0xff]
        %v3587 = vld [vmem:[%s801 + $0x310] sm:$0xff]
        %v3588 = vld [vmem:[%s801 + $0x318] sm:$0xff]
        %v3589 = vld [vmem:[%s801 + $0x320] sm:$0xff]
        %v3590 = vld [vmem:[%s801 + $0x328] sm:$0xff]
        %v3591 = vld [vmem:[%s801 + $0x330] sm:$0xff]
        %v3592 = vld [vmem:[%s801 + $0x338] sm:$0xff]
        %v3593 = vld [vmem:[%s801 + $0x340] sm:$0xff]
        %v3594 = vld [vmem:[%s801 + $0x348] sm:$0xff]
        %v3595 = vld [vmem:[%s801 + $0x350] sm:$0xff]
        %v3596 = vld [vmem:[%s801 + $0x358] sm:$0xff]
        %v3597 = vld [vmem:[%s801 + $0x360] sm:$0xff]
        %v3598 = vld [vmem:[%s801 + $0x368] sm:$0xff]
        %v3599 = vld [vmem:[%s801 + $0x370] sm:$0xff]
        %v3600 = vld [vmem:[%s801 + $0x378] sm:$0xff]
        %v3601 = vld [vmem:[%s801 + $0x380] sm:$0xff]
        %v3602 = vld [vmem:[%s801 + $0x388] sm:$0xff]
        %v3603 = vld [vmem:[%s801 + $0x390] sm:$0xff]
        %v3604 = vld [vmem:[%s801 + $0x398] sm:$0xff]
        %v3605 = vld [vmem:[%s801 + $0x3a0] sm:$0xff]
        %v3606 = vld [vmem:[%s801 + $0x3a8] sm:$0xff]
        %v3607 = vld [vmem:[%s801 + $0x3b0] sm:$0xff]
        %v3608 = vld [vmem:[%s801 + $0x3b8] sm:$0xff]
        %v3609 = vld [vmem:[%s801 + $0x3c0] sm:$0xff]
        %v3610 = vld [vmem:[%s801 + $0x3c8] sm:$0xff]
        %v3611 = vld [vmem:[%s801 + $0x3d0] sm:$0xff]
        %v3612 = vld [vmem:[%s801 + $0x3d8] sm:$0xff]
        %v3613 = vld [vmem:[%s801 + $0x3e0] sm:$0xff]
        %v3614 = vld [vmem:[%s801 + $0x3e8] sm:$0xff]
        %v3615 = vld [vmem:[%s801 + $0x3f0] sm:$0xff]
        %v3616 = vld [vmem:[%s801 + $0x3f8] sm:$0xff]
        %v3617 = vld [vmem:[%s931] sm:$0x3]
        %v3619 = vperm.slane %v3617, 0
        %v3620 = vperm.slane %v3617, 1
        %v3751 = vunpack.c.l.b16 %v3489
        %v3752 = vunpack.c.h.b16 %v3489
        %v3753 = vunpack.c.l.b16 %v3490
        %v3754 = vunpack.c.h.b16 %v3490
        %v3755 = vunpack.c.l.b16 %v3491
        %v3756 = vunpack.c.h.b16 %v3491
        %v3757 = vunpack.c.l.b16 %v3492
        %v3758 = vunpack.c.h.b16 %v3492
        %v3759 = vunpack.c.l.b16 %v3493
        %v3760 = vunpack.c.h.b16 %v3493
        %v3761 = vunpack.c.l.b16 %v3494
        %v3762 = vunpack.c.h.b16 %v3494
        %v3763 = vunpack.c.l.b16 %v3495
        %v3764 = vunpack.c.h.b16 %v3495
        %v3765 = vunpack.c.l.b16 %v3496
        %v3766 = vunpack.c.h.b16 %v3496
        %v3767 = vunpack.c.l.b16 %v3497
        %v3768 = vunpack.c.h.b16 %v3497
        %v3769 = vunpack.c.l.b16 %v3498
        %v3770 = vunpack.c.h.b16 %v3498
        %v3771 = vunpack.c.l.b16 %v3499
        %v3772 = vunpack.c.h.b16 %v3499
        %v3773 = vunpack.c.l.b16 %v3500
        %v3774 = vunpack.c.h.b16 %v3500
        %v3775 = vunpack.c.l.b16 %v3501
        %v3776 = vunpack.c.h.b16 %v3501
        %v3777 = vunpack.c.l.b16 %v3502
        %v3778 = vunpack.c.h.b16 %v3502
        %v3779 = vunpack.c.l.b16 %v3503
        %v3780 = vunpack.c.h.b16 %v3503
        %v3781 = vunpack.c.l.b16 %v3504
        %v3782 = vunpack.c.h.b16 %v3504
        %v3783 = vunpack.c.l.b16 %v3505
        %v3784 = vunpack.c.h.b16 %v3505
        %v3785 = vunpack.c.l.b16 %v3506
        %v3786 = vunpack.c.h.b16 %v3506
        %v3787 = vunpack.c.l.b16 %v3507
        %v3788 = vunpack.c.h.b16 %v3507
        %v3789 = vunpack.c.l.b16 %v3508
        %v3790 = vunpack.c.h.b16 %v3508
        %v3791 = vunpack.c.l.b16 %v3509
        %v3792 = vunpack.c.h.b16 %v3509
        %v3793 = vunpack.c.l.b16 %v3510
        %v3794 = vunpack.c.h.b16 %v3510
        %v3795 = vunpack.c.l.b16 %v3511
        %v3796 = vunpack.c.h.b16 %v3511
        %v3797 = vunpack.c.l.b16 %v3512
        %v3798 = vunpack.c.h.b16 %v3512
        %v3799 = vunpack.c.l.b16 %v3513
        %v3800 = vunpack.c.h.b16 %v3513
        %v3801 = vunpack.c.l.b16 %v3514
        %v3802 = vunpack.c.h.b16 %v3514
        %v3803 = vunpack.c.l.b16 %v3515
        %v3804 = vunpack.c.h.b16 %v3515
        %v3805 = vunpack.c.l.b16 %v3516
        %v3806 = vunpack.c.h.b16 %v3516
        %v3807 = vunpack.c.l.b16 %v3517
        %v3808 = vunpack.c.h.b16 %v3517
        %v3809 = vunpack.c.l.b16 %v3518
        %v3810 = vunpack.c.h.b16 %v3518
        %v3811 = vunpack.c.l.b16 %v3519
        %v3812 = vunpack.c.h.b16 %v3519
        %v3813 = vunpack.c.l.b16 %v3520
        %v3814 = vunpack.c.h.b16 %v3520
        %v3815 = vunpack.c.l.b16 %v3521
        %v3816 = vunpack.c.h.b16 %v3521
        %v3817 = vunpack.c.l.b16 %v3522
        %v3818 = vunpack.c.h.b16 %v3522
        %v3819 = vunpack.c.l.b16 %v3523
        %v3820 = vunpack.c.h.b16 %v3523
        %v3821 = vunpack.c.l.b16 %v3524
        %v3822 = vunpack.c.h.b16 %v3524
        %v3823 = vunpack.c.l.b16 %v3525
        %v3824 = vunpack.c.h.b16 %v3525
        %v3825 = vunpack.c.l.b16 %v3526
        %v3826 = vunpack.c.h.b16 %v3526
        %v3827 = vunpack.c.l.b16 %v3527
        %v3828 = vunpack.c.h.b16 %v3527
        %v3829 = vunpack.c.l.b16 %v3528
        %v3830 = vunpack.c.h.b16 %v3528
        %v3831 = vunpack.c.l.b16 %v3529
        %v3832 = vunpack.c.h.b16 %v3529
        %v3833 = vunpack.c.l.b16 %v3530
        %v3834 = vunpack.c.h.b16 %v3530
        %v3835 = vunpack.c.l.b16 %v3531
        %v3836 = vunpack.c.h.b16 %v3531
        %v3837 = vunpack.c.l.b16 %v3532
        %v3838 = vunpack.c.h.b16 %v3532
        %v3839 = vunpack.c.l.b16 %v3533
        %v3840 = vunpack.c.h.b16 %v3533
        %v3841 = vunpack.c.l.b16 %v3534
        %v3842 = vunpack.c.h.b16 %v3534
        %v3843 = vunpack.c.l.b16 %v3535
        %v3844 = vunpack.c.h.b16 %v3535
        %v3845 = vunpack.c.l.b16 %v3536
        %v3846 = vunpack.c.h.b16 %v3536
        %v3847 = vunpack.c.l.b16 %v3537
        %v3848 = vunpack.c.h.b16 %v3537
        %v3849 = vunpack.c.l.b16 %v3538
        %v3850 = vunpack.c.h.b16 %v3538
        %v3851 = vunpack.c.l.b16 %v3539
        %v3852 = vunpack.c.h.b16 %v3539
        %v3853 = vunpack.c.l.b16 %v3540
        %v3854 = vunpack.c.h.b16 %v3540
        %v3855 = vunpack.c.l.b16 %v3541
        %v3856 = vunpack.c.h.b16 %v3541
        %v3857 = vunpack.c.l.b16 %v3542
        %v3858 = vunpack.c.h.b16 %v3542
        %v3859 = vunpack.c.l.b16 %v3543
        %v3860 = vunpack.c.h.b16 %v3543
        %v3861 = vunpack.c.l.b16 %v3544
        %v3862 = vunpack.c.h.b16 %v3544
        %v3863 = vunpack.c.l.b16 %v3545
        %v3864 = vunpack.c.h.b16 %v3545
        %v3865 = vunpack.c.l.b16 %v3546
        %v3866 = vunpack.c.h.b16 %v3546
        %v3867 = vunpack.c.l.b16 %v3547
        %v3868 = vunpack.c.h.b16 %v3547
        %v3869 = vunpack.c.l.b16 %v3548
        %v3870 = vunpack.c.h.b16 %v3548
        %v3871 = vunpack.c.l.b16 %v3549
        %v3872 = vunpack.c.h.b16 %v3549
        %v3873 = vunpack.c.l.b16 %v3550
        %v3874 = vunpack.c.h.b16 %v3550
        %v3875 = vunpack.c.l.b16 %v3551
        %v3876 = vunpack.c.h.b16 %v3551
        %v3877 = vunpack.c.l.b16 %v3552
        %v3878 = vunpack.c.h.b16 %v3552
        %v3879 = vunpack.c.l.b16 %v3553
        %v3880 = vunpack.c.h.b16 %v3553
        %v3881 = vunpack.c.l.b16 %v3554
        %v3882 = vunpack.c.h.b16 %v3554
        %v3883 = vunpack.c.l.b16 %v3555
        %v3884 = vunpack.c.h.b16 %v3555
        %v3885 = vunpack.c.l.b16 %v3556
        %v3886 = vunpack.c.h.b16 %v3556
        %v3887 = vunpack.c.l.b16 %v3557
        %v3888 = vunpack.c.h.b16 %v3557
        %v3889 = vunpack.c.l.b16 %v3558
        %v3890 = vunpack.c.h.b16 %v3558
        %v3891 = vunpack.c.l.b16 %v3559
        %v3892 = vunpack.c.h.b16 %v3559
        %v3893 = vunpack.c.l.b16 %v3560
        %v3894 = vunpack.c.h.b16 %v3560
        %v3895 = vunpack.c.l.b16 %v3561
        %v3896 = vunpack.c.h.b16 %v3561
        %v3897 = vunpack.c.l.b16 %v3562
        %v3898 = vunpack.c.h.b16 %v3562
        %v3899 = vunpack.c.l.b16 %v3563
        %v3900 = vunpack.c.h.b16 %v3563
        %v3901 = vunpack.c.l.b16 %v3564
        %v3902 = vunpack.c.h.b16 %v3564
        %v3903 = vunpack.c.l.b16 %v3565
        %v3904 = vunpack.c.h.b16 %v3565
        %v3905 = vunpack.c.l.b16 %v3566
        %v3906 = vunpack.c.h.b16 %v3566
        %v3907 = vunpack.c.l.b16 %v3567
        %v3908 = vunpack.c.h.b16 %v3567
        %v3909 = vunpack.c.l.b16 %v3568
        %v3910 = vunpack.c.h.b16 %v3568
        %v3911 = vunpack.c.l.b16 %v3569
        %v3912 = vunpack.c.h.b16 %v3569
        %v3913 = vunpack.c.l.b16 %v3570
        %v3914 = vunpack.c.h.b16 %v3570
        %v3915 = vunpack.c.l.b16 %v3571
        %v3916 = vunpack.c.h.b16 %v3571
        %v3917 = vunpack.c.l.b16 %v3572
        %v3918 = vunpack.c.h.b16 %v3572
        %v3919 = vunpack.c.l.b16 %v3573
        %v3920 = vunpack.c.h.b16 %v3573
        %v3921 = vunpack.c.l.b16 %v3574
        %v3922 = vunpack.c.h.b16 %v3574
        %v3923 = vunpack.c.l.b16 %v3575
        %v3924 = vunpack.c.h.b16 %v3575
        %v3925 = vunpack.c.l.b16 %v3576
        %v3926 = vunpack.c.h.b16 %v3576
        %v3927 = vunpack.c.l.b16 %v3577
        %v3928 = vunpack.c.h.b16 %v3577
        %v3929 = vunpack.c.l.b16 %v3578
        %v3930 = vunpack.c.h.b16 %v3578
        %v3931 = vunpack.c.l.b16 %v3579
        %v3932 = vunpack.c.h.b16 %v3579
        %v3933 = vunpack.c.l.b16 %v3580
        %v3934 = vunpack.c.h.b16 %v3580
        %v3935 = vunpack.c.l.b16 %v3581
        %v3936 = vunpack.c.h.b16 %v3581
        %v3937 = vunpack.c.l.b16 %v3582
        %v3938 = vunpack.c.h.b16 %v3582
        %v3939 = vunpack.c.l.b16 %v3583
        %v3940 = vunpack.c.h.b16 %v3583
        %v3941 = vunpack.c.l.b16 %v3584
        %v3942 = vunpack.c.h.b16 %v3584
        %v3943 = vunpack.c.l.b16 %v3585
        %v3944 = vunpack.c.h.b16 %v3585
        %v3945 = vunpack.c.l.b16 %v3586
        %v3946 = vunpack.c.h.b16 %v3586
        %v3947 = vunpack.c.l.b16 %v3587
        %v3948 = vunpack.c.h.b16 %v3587
        %v3949 = vunpack.c.l.b16 %v3588
        %v3950 = vunpack.c.h.b16 %v3588
        %v3951 = vunpack.c.l.b16 %v3589
        %v3952 = vunpack.c.h.b16 %v3589
        %v3953 = vunpack.c.l.b16 %v3590
        %v3954 = vunpack.c.h.b16 %v3590
        %v3955 = vunpack.c.l.b16 %v3591
        %v3956 = vunpack.c.h.b16 %v3591
        %v3957 = vunpack.c.l.b16 %v3592
        %v3958 = vunpack.c.h.b16 %v3592
        %v3959 = vunpack.c.l.b16 %v3593
        %v3960 = vunpack.c.h.b16 %v3593
        %v3961 = vunpack.c.l.b16 %v3594
        %v3962 = vunpack.c.h.b16 %v3594
        %v3963 = vunpack.c.l.b16 %v3595
        %v3964 = vunpack.c.h.b16 %v3595
        %v3965 = vunpack.c.l.b16 %v3596
        %v3966 = vunpack.c.h.b16 %v3596
        %v3967 = vunpack.c.l.b16 %v3597
        %v3968 = vunpack.c.h.b16 %v3597
        %v3969 = vunpack.c.l.b16 %v3598
        %v3970 = vunpack.c.h.b16 %v3598
        %v3971 = vunpack.c.l.b16 %v3599
        %v3972 = vunpack.c.h.b16 %v3599
        %v3973 = vunpack.c.l.b16 %v3600
        %v3974 = vunpack.c.h.b16 %v3600
        %v3975 = vunpack.c.l.b16 %v3601
        %v3976 = vunpack.c.h.b16 %v3601
        %v3977 = vunpack.c.l.b16 %v3602
        %v3978 = vunpack.c.h.b16 %v3602
        %v3979 = vunpack.c.l.b16 %v3603
        %v3980 = vunpack.c.h.b16 %v3603
        %v3981 = vunpack.c.l.b16 %v3604
        %v3982 = vunpack.c.h.b16 %v3604
        %v3983 = vunpack.c.l.b16 %v3605
        %v3984 = vunpack.c.h.b16 %v3605
        %v3985 = vunpack.c.l.b16 %v3606
        %v3986 = vunpack.c.h.b16 %v3606
        %v3987 = vunpack.c.l.b16 %v3607
        %v3988 = vunpack.c.h.b16 %v3607
        %v3989 = vunpack.c.l.b16 %v3608
        %v3990 = vunpack.c.h.b16 %v3608
        %v3991 = vunpack.c.l.b16 %v3609
        %v3992 = vunpack.c.h.b16 %v3609
        %v3993 = vunpack.c.l.b16 %v3610
        %v3994 = vunpack.c.h.b16 %v3610
        %v3995 = vunpack.c.l.b16 %v3611
        %v3996 = vunpack.c.h.b16 %v3611
        %v3997 = vunpack.c.l.b16 %v3612
        %v3998 = vunpack.c.h.b16 %v3612
        %v3999 = vunpack.c.l.b16 %v3613
        %v4000 = vunpack.c.h.b16 %v3613
        %v4001 = vunpack.c.l.b16 %v3614
        %v4002 = vunpack.c.h.b16 %v3614
        %v4003 = vunpack.c.l.b16 %v3615
        %v4004 = vunpack.c.h.b16 %v3615
        %v4005 = vunpack.c.l.b16 %v3616
        %v4006 = vunpack.c.h.b16 %v3616
        %v4007 = vpack.c.b16 %v3753, %v3751
        %v4008 = vpack.c.b16 %v3754, %v3752
        %v4009 = vpack.c.b16 %v3757, %v3755
        %v4010 = vpack.c.b16 %v3758, %v3756
        %v4011 = vpack.c.b16 %v3761, %v3759
        %v4012 = vpack.c.b16 %v3762, %v3760
        %v4013 = vpack.c.b16 %v3765, %v3763
        %v4014 = vpack.c.b16 %v3766, %v3764
        %v4015 = vpack.c.b16 %v3769, %v3767
        %v4016 = vpack.c.b16 %v3770, %v3768
        %v4017 = vpack.c.b16 %v3773, %v3771
        %v4018 = vpack.c.b16 %v3774, %v3772
        %v4019 = vpack.c.b16 %v3777, %v3775
        %v4020 = vpack.c.b16 %v3778, %v3776
        %v4021 = vpack.c.b16 %v3781, %v3779
        %v4022 = vpack.c.b16 %v3782, %v3780
        %v4023 = vpack.c.b16 %v3785, %v3783
        %v4024 = vpack.c.b16 %v3786, %v3784
        %v4025 = vpack.c.b16 %v3789, %v3787
        %v4026 = vpack.c.b16 %v3790, %v3788
        %v4027 = vpack.c.b16 %v3793, %v3791
        %v4028 = vpack.c.b16 %v3794, %v3792
        %v4029 = vpack.c.b16 %v3797, %v3795
        %v4030 = vpack.c.b16 %v3798, %v3796
        %v4031 = vpack.c.b16 %v3801, %v3799
        %v4032 = vpack.c.b16 %v3802, %v3800
        %v4033 = vpack.c.b16 %v3805, %v3803
        %v4034 = vpack.c.b16 %v3806, %v3804
        %v4035 = vpack.c.b16 %v3809, %v3807
        %v4036 = vpack.c.b16 %v3810, %v3808
        %v4037 = vpack.c.b16 %v3813, %v3811
        %v4038 = vpack.c.b16 %v3814, %v3812
        %v4039 = vpack.c.b16 %v3817, %v3815
        %v4040 = vpack.c.b16 %v3818, %v3816
        %v4041 = vpack.c.b16 %v3821, %v3819
        %v4042 = vpack.c.b16 %v3822, %v3820
        %v4043 = vpack.c.b16 %v3825, %v3823
        %v4044 = vpack.c.b16 %v3826, %v3824
        %v4045 = vpack.c.b16 %v3829, %v3827
        %v4046 = vpack.c.b16 %v3830, %v3828
        %v4047 = vpack.c.b16 %v3833, %v3831
        %v4048 = vpack.c.b16 %v3834, %v3832
        %v4049 = vpack.c.b16 %v3837, %v3835
        %v4050 = vpack.c.b16 %v3838, %v3836
        %v4051 = vpack.c.b16 %v3841, %v3839
        %v4052 = vpack.c.b16 %v3842, %v3840
        %v4053 = vpack.c.b16 %v3845, %v3843
        %v4054 = vpack.c.b16 %v3846, %v3844
        %v4055 = vpack.c.b16 %v3849, %v3847
        %v4056 = vpack.c.b16 %v3850, %v3848
        %v4057 = vpack.c.b16 %v3853, %v3851
        %v4058 = vpack.c.b16 %v3854, %v3852
        %v4059 = vpack.c.b16 %v3857, %v3855
        %v4060 = vpack.c.b16 %v3858, %v3856
        %v4061 = vpack.c.b16 %v3861, %v3859
        %v4062 = vpack.c.b16 %v3862, %v3860
        %v4063 = vpack.c.b16 %v3865, %v3863
        %v4064 = vpack.c.b16 %v3866, %v3864
        %v4065 = vpack.c.b16 %v3869, %v3867
        %v4066 = vpack.c.b16 %v3870, %v3868
        %v4067 = vpack.c.b16 %v3873, %v3871
        %v4068 = vpack.c.b16 %v3874, %v3872
        %v4069 = vpack.c.b16 %v3877, %v3875
        %v4070 = vpack.c.b16 %v3878, %v3876
        %v4071 = vpack.c.b16 %v3881, %v3879
        %v4072 = vpack.c.b16 %v3882, %v3880
        %v4073 = vpack.c.b16 %v3885, %v3883
        %v4074 = vpack.c.b16 %v3886, %v3884
        %v4075 = vpack.c.b16 %v3889, %v3887
        %v4076 = vpack.c.b16 %v3890, %v3888
        %v4077 = vpack.c.b16 %v3893, %v3891
        %v4078 = vpack.c.b16 %v3894, %v3892
        %v4079 = vpack.c.b16 %v3897, %v3895
        %v4080 = vpack.c.b16 %v3898, %v3896
        %v4081 = vpack.c.b16 %v3901, %v3899
        %v4082 = vpack.c.b16 %v3902, %v3900
        %v4083 = vpack.c.b16 %v3905, %v3903
        %v4084 = vpack.c.b16 %v3906, %v3904
        %v4085 = vpack.c.b16 %v3909, %v3907
        %v4086 = vpack.c.b16 %v3910, %v3908
        %v4087 = vpack.c.b16 %v3913, %v3911
        %v4088 = vpack.c.b16 %v3914, %v3912
        %v4089 = vpack.c.b16 %v3917, %v3915
        %v4090 = vpack.c.b16 %v3918, %v3916
        %v4091 = vpack.c.b16 %v3921, %v3919
        %v4092 = vpack.c.b16 %v3922, %v3920
        %v4093 = vpack.c.b16 %v3925, %v3923
        %v4094 = vpack.c.b16 %v3926, %v3924
        %v4095 = vpack.c.b16 %v3929, %v3927
        %v4096 = vpack.c.b16 %v3930, %v3928
        %v4097 = vpack.c.b16 %v3933, %v3931
        %v4098 = vpack.c.b16 %v3934, %v3932
        %v4099 = vpack.c.b16 %v3937, %v3935
        %v4100 = vpack.c.b16 %v3938, %v3936
        %v4101 = vpack.c.b16 %v3941, %v3939
        %v4102 = vpack.c.b16 %v3942, %v3940
        %v4103 = vpack.c.b16 %v3945, %v3943
        %v4104 = vpack.c.b16 %v3946, %v3944
        %v4105 = vpack.c.b16 %v3949, %v3947
        %v4106 = vpack.c.b16 %v3950, %v3948
        %v4107 = vpack.c.b16 %v3953, %v3951
        %v4108 = vpack.c.b16 %v3954, %v3952
        %v4109 = vpack.c.b16 %v3957, %v3955
        %v4110 = vpack.c.b16 %v3958, %v3956
        %v4111 = vpack.c.b16 %v3961, %v3959
        %v4112 = vpack.c.b16 %v3962, %v3960
        %v4113 = vpack.c.b16 %v3965, %v3963
        %v4114 = vpack.c.b16 %v3966, %v3964
        %v4115 = vpack.c.b16 %v3969, %v3967
        %v4116 = vpack.c.b16 %v3970, %v3968
        %v4117 = vpack.c.b16 %v3973, %v3971
        %v4118 = vpack.c.b16 %v3974, %v3972
        %v4119 = vpack.c.b16 %v3977, %v3975
        %v4120 = vpack.c.b16 %v3978, %v3976
        %v4121 = vpack.c.b16 %v3981, %v3979
        %v4122 = vpack.c.b16 %v3982, %v3980
        %v4123 = vpack.c.b16 %v3985, %v3983
        %v4124 = vpack.c.b16 %v3986, %v3984
        %v4125 = vpack.c.b16 %v3989, %v3987
        %v4126 = vpack.c.b16 %v3990, %v3988
        %v4127 = vpack.c.b16 %v3993, %v3991
        %v4128 = vpack.c.b16 %v3994, %v3992
        %v4129 = vpack.c.b16 %v3997, %v3995
        %v4130 = vpack.c.b16 %v3998, %v3996
        %v4131 = vpack.c.b16 %v4001, %v3999
        %v4132 = vpack.c.b16 %v4002, %v4000
        %v4133 = vpack.c.b16 %v4005, %v4003
        %v4134 = vpack.c.b16 %v4006, %v4004
        %4263 = vmatpush.bf16.msra.mxu0 %v4021
        %4264 = vmatpush.bf16.msra.mxu0 %v4019
        %4265 = vmatpush.bf16.msra.mxu0 %v4017
        %4266 = vmatpush.bf16.msra.mxu0 %v4015
        %4267 = vmatpush.bf16.msra.mxu0 %v4013
        %4268 = vmatpush.bf16.msra.mxu0 %v4011
        %4269 = vmatpush.bf16.msra.mxu0 %v4009
        %4270 = vmatpush.bf16.msra.mxu0 %v4007
        %4271 = vmatmul.bf16.gmra.mxu0 %v3481
        %v4272 = vpop.f32.mrf.mxu0
        %v4273 = vadd.f32 %v3619, %v4272
        %v4274 = vpop.f32.mrf.mxu0
        %v4275 = vadd.f32 %v3619, %v4274
        %4276 = vdwg.mxu0
        %4277 = vmatpush.bf16.msra.mxu0 %v4037
        %4278 = vmatpush.bf16.msra.mxu0 %v4035
        %4279 = vmatpush.bf16.msra.mxu0 %v4033
        %4280 = vmatpush.bf16.msra.mxu0 %v4031
        %4281 = vmatpush.bf16.msra.mxu0 %v4029
        %4282 = vmatpush.bf16.msra.mxu0 %v4027
        %4283 = vmatpush.bf16.msra.mxu0 %v4025
        %4284 = vmatpush.bf16.msra.mxu0 %v4023
        %4285 = vmatmul.bf16.gmra.mxu0 %v3482
        %v4286 = vpop.f32.mrf.mxu0
        %v4287 = vadd.f32 %v4273, %v4286
        %v4288 = vpop.f32.mrf.mxu0
        %v4289 = vadd.f32 %v4275, %v4288
        %4290 = vdwg.mxu0
        %4291 = vmatpush.bf16.msra.mxu0 %v4053
        %4292 = vmatpush.bf16.msra.mxu0 %v4051
        %4293 = vmatpush.bf16.msra.mxu0 %v4049
        %4294 = vmatpush.bf16.msra.mxu0 %v4047
        %4295 = vmatpush.bf16.msra.mxu0 %v4045
        %4296 = vmatpush.bf16.msra.mxu0 %v4043
        %4297 = vmatpush.bf16.msra.mxu0 %v4041
        %4298 = vmatpush.bf16.msra.mxu0 %v4039
        %4299 = vmatmul.bf16.gmra.mxu0 %v3483
        %v4300 = vpop.f32.mrf.mxu0
        %v4301 = vadd.f32 %v4287, %v4300
        %v4302 = vpop.f32.mrf.mxu0
        %v4303 = vadd.f32 %v4289, %v4302
        %4304 = vdwg.mxu0
        %4305 = vmatpush.bf16.msra.mxu0 %v4069
        %4306 = vmatpush.bf16.msra.mxu0 %v4067
        %4307 = vmatpush.bf16.msra.mxu0 %v4065
        %4308 = vmatpush.bf16.msra.mxu0 %v4063
        %4309 = vmatpush.bf16.msra.mxu0 %v4061
        %4310 = vmatpush.bf16.msra.mxu0 %v4059
        %4311 = vmatpush.bf16.msra.mxu0 %v4057
        %4312 = vmatpush.bf16.msra.mxu0 %v4055
        %4313 = vmatmul.bf16.gmra.mxu0 %v3484
        %v4314 = vpop.f32.mrf.mxu0
        %v4315 = vadd.f32 %v4301, %v4314
        %v4316 = vpop.f32.mrf.mxu0
        %v4317 = vadd.f32 %v4303, %v4316
        %4318 = vdwg.mxu0
        %4319 = vmatpush.bf16.msra.mxu0 %v4085
        %4320 = vmatpush.bf16.msra.mxu0 %v4083
        %4321 = vmatpush.bf16.msra.mxu0 %v4081
        %4322 = vmatpush.bf16.msra.mxu0 %v4079
        %4323 = vmatpush.bf16.msra.mxu0 %v4077
        %4324 = vmatpush.bf16.msra.mxu0 %v4075
        %4325 = vmatpush.bf16.msra.mxu0 %v4073
        %4326 = vmatpush.bf16.msra.mxu0 %v4071
        %4327 = vmatmul.bf16.gmra.mxu0 %v3485
        %v4328 = vpop.f32.mrf.mxu0
        %v4329 = vadd.f32 %v4315, %v4328
        %v4330 = vpop.f32.mrf.mxu0
        %v4331 = vadd.f32 %v4317, %v4330
        %4332 = vdwg.mxu0
        %4333 = vmatpush.bf16.msra.mxu0 %v4101
        %4334 = vmatpush.bf16.msra.mxu0 %v4099
        %4335 = vmatpush.bf16.msra.mxu0 %v4097
        %4336 = vmatpush.bf16.msra.mxu0 %v4095
        %4337 = vmatpush.bf16.msra.mxu0 %v4093
        %4338 = vmatpush.bf16.msra.mxu0 %v4091
        %4339 = vmatpush.bf16.msra.mxu0 %v4089
        %4340 = vmatpush.bf16.msra.mxu0 %v4087
        %4341 = vmatmul.bf16.gmra.mxu0 %v3486
        %v4342 = vpop.f32.mrf.mxu0
        %v4343 = vadd.f32 %v4329, %v4342
        %v4344 = vpop.f32.mrf.mxu0
        %v4345 = vadd.f32 %v4331, %v4344
        %4346 = vdwg.mxu0
        %4347 = vmatpush.bf16.msra.mxu0 %v4117
        %4348 = vmatpush.bf16.msra.mxu0 %v4115
        %4349 = vmatpush.bf16.msra.mxu0 %v4113
        %4350 = vmatpush.bf16.msra.mxu0 %v4111
        %4351 = vmatpush.bf16.msra.mxu0 %v4109
        %4352 = vmatpush.bf16.msra.mxu0 %v4107
        %4353 = vmatpush.bf16.msra.mxu0 %v4105
        %4354 = vmatpush.bf16.msra.mxu0 %v4103
        %4355 = vmatmul.bf16.gmra.mxu0 %v3487
        %v4356 = vpop.f32.mrf.mxu0
        %v4357 = vadd.f32 %v4343, %v4356
        %v4358 = vpop.f32.mrf.mxu0
        %v4359 = vadd.f32 %v4345, %v4358
        %4360 = vdwg.mxu0
        %4361 = vmatpush.bf16.msra.mxu0 %v4133
        %4362 = vmatpush.bf16.msra.mxu0 %v4131
        %4363 = vmatpush.bf16.msra.mxu0 %v4129
        %4364 = vmatpush.bf16.msra.mxu0 %v4127
        %4365 = vmatpush.bf16.msra.mxu0 %v4125
        %4366 = vmatpush.bf16.msra.mxu0 %v4123
        %4367 = vmatpush.bf16.msra.mxu0 %v4121
        %4368 = vmatpush.bf16.msra.mxu0 %v4119
        %4369 = vmatmul.bf16.gmra.mxu0 %v3488
        %v4370 = vpop.f32.mrf.mxu0
        %v4371 = vadd.f32 %v4357, %v4370
        %v4372 = vpop.f32.mrf.mxu0
        %v4373 = vadd.f32 %v4359, %v4372
        %4374 = vdwg.mxu0
        %4375 = vmatpush.bf16.msra.mxu0 %v4022
        %4376 = vmatpush.bf16.msra.mxu0 %v4020
        %4377 = vmatpush.bf16.msra.mxu0 %v4018
        %4378 = vmatpush.bf16.msra.mxu0 %v4016
        %4379 = vmatpush.bf16.msra.mxu0 %v4014
        %4380 = vmatpush.bf16.msra.mxu0 %v4012
        %4381 = vmatpush.bf16.msra.mxu0 %v4010
        %4382 = vmatpush.bf16.msra.mxu0 %v4008
        %4383 = vmatmul.bf16.gmra.mxu0 %v3481
        %v4384 = vpop.f32.mrf.mxu0
        %v4385 = vadd.f32 %v3620, %v4384
        %v4386 = vpop.f32.mrf.mxu0
        %v4387 = vadd.f32 %v3620, %v4386
        %4388 = vdwg.mxu0
        %4389 = vmatpush.bf16.msra.mxu0 %v4038
        %4390 = vmatpush.bf16.msra.mxu0 %v4036
        %4391 = vmatpush.bf16.msra.mxu0 %v4034
        %4392 = vmatpush.bf16.msra.mxu0 %v4032
        %4393 = vmatpush.bf16.msra.mxu0 %v4030
        %4394 = vmatpush.bf16.msra.mxu0 %v4028
        %4395 = vmatpush.bf16.msra.mxu0 %v4026
        %4396 = vmatpush.bf16.msra.mxu0 %v4024
        %4397 = vmatmul.bf16.gmra.mxu0 %v3482
        %v4398 = vpop.f32.mrf.mxu0
        %v4399 = vadd.f32 %v4385, %v4398
        %v4400 = vpop.f32.mrf.mxu0
        %v4401 = vadd.f32 %v4387, %v4400
        %4402 = vdwg.mxu0
        %4403 = vmatpush.bf16.msra.mxu0 %v4054
        %4404 = vmatpush.bf16.msra.mxu0 %v4052
        %4405 = vmatpush.bf16.msra.mxu0 %v4050
        %4406 = vmatpush.bf16.msra.mxu0 %v4048
        %4407 = vmatpush.bf16.msra.mxu0 %v4046
        %4408 = vmatpush.bf16.msra.mxu0 %v4044
        %4409 = vmatpush.bf16.msra.mxu0 %v4042
        %4410 = vmatpush.bf16.msra.mxu0 %v4040
        %4411 = vmatmul.bf16.gmra.mxu0 %v3483
        %v4412 = vpop.f32.mrf.mxu0
        %v4413 = vadd.f32 %v4399, %v4412
        %v4414 = vpop.f32.mrf.mxu0
        %v4415 = vadd.f32 %v4401, %v4414
        %4416 = vdwg.mxu0
        %4417 = vmatpush.bf16.msra.mxu0 %v4070
        %4418 = vmatpush.bf16.msra.mxu0 %v4068
        %4419 = vmatpush.bf16.msra.mxu0 %v4066
        %4420 = vmatpush.bf16.msra.mxu0 %v4064
        %4421 = vmatpush.bf16.msra.mxu0 %v4062
        %4422 = vmatpush.bf16.msra.mxu0 %v4060
        %4423 = vmatpush.bf16.msra.mxu0 %v4058
        %4424 = vmatpush.bf16.msra.mxu0 %v4056
        %4425 = vmatmul.bf16.gmra.mxu0 %v3484
        %v4426 = vpop.f32.mrf.mxu0
        %v4427 = vadd.f32 %v4413, %v4426
        %v4428 = vpop.f32.mrf.mxu0
        %v4429 = vadd.f32 %v4415, %v4428
        %4430 = vdwg.mxu0
        %4431 = vmatpush.bf16.msra.mxu0 %v4086
        %4432 = vmatpush.bf16.msra.mxu0 %v4084
        %4433 = vmatpush.bf16.msra.mxu0 %v4082
        %4434 = vmatpush.bf16.msra.mxu0 %v4080
        %4435 = vmatpush.bf16.msra.mxu0 %v4078
        %4436 = vmatpush.bf16.msra.mxu0 %v4076
        %4437 = vmatpush.bf16.msra.mxu0 %v4074
        %4438 = vmatpush.bf16.msra.mxu0 %v4072
        %4439 = vmatmul.bf16.gmra.mxu0 %v3485
        %v4440 = vpop.f32.mrf.mxu0
        %v4441 = vadd.f32 %v4427, %v4440
        %v4442 = vpop.f32.mrf.mxu0
        %v4443 = vadd.f32 %v4429, %v4442
        %4444 = vdwg.mxu0
        %4445 = vmatpush.bf16.msra.mxu0 %v4102
        %4446 = vmatpush.bf16.msra.mxu0 %v4100
        %4447 = vmatpush.bf16.msra.mxu0 %v4098
        %4448 = vmatpush.bf16.msra.mxu0 %v4096
        %4449 = vmatpush.bf16.msra.mxu0 %v4094
        %4450 = vmatpush.bf16.msra.mxu0 %v4092
        %4451 = vmatpush.bf16.msra.mxu0 %v4090
        %4452 = vmatpush.bf16.msra.mxu0 %v4088
        %4453 = vmatmul.bf16.gmra.mxu0 %v3486
        %v4454 = vpop.f32.mrf.mxu0
        %v4455 = vadd.f32 %v4441, %v4454
        %v4456 = vpop.f32.mrf.mxu0
        %v4457 = vadd.f32 %v4443, %v4456
        %4458 = vdwg.mxu0
        %4459 = vmatpush.bf16.msra.mxu0 %v4118
        %4460 = vmatpush.bf16.msra.mxu0 %v4116
        %4461 = vmatpush.bf16.msra.mxu0 %v4114
        %4462 = vmatpush.bf16.msra.mxu0 %v4112
        %4463 = vmatpush.bf16.msra.mxu0 %v4110
        %4464 = vmatpush.bf16.msra.mxu0 %v4108
        %4465 = vmatpush.bf16.msra.mxu0 %v4106
        %4466 = vmatpush.bf16.msra.mxu0 %v4104
        %4467 = vmatmul.bf16.gmra.mxu0 %v3487
        %v4468 = vpop.f32.mrf.mxu0
        %v4469 = vadd.f32 %v4455, %v4468
        %v4470 = vpop.f32.mrf.mxu0
        %v4471 = vadd.f32 %v4457, %v4470
        %4472 = vdwg.mxu0
        %4473 = vmatpush.bf16.msra.mxu0 %v4134
        %4474 = vmatpush.bf16.msra.mxu0 %v4132
        %4475 = vmatpush.bf16.msra.mxu0 %v4130
        %4476 = vmatpush.bf16.msra.mxu0 %v4128
        %4477 = vmatpush.bf16.msra.mxu0 %v4126
        %4478 = vmatpush.bf16.msra.mxu0 %v4124
        %4479 = vmatpush.bf16.msra.mxu0 %v4122
        %4480 = vmatpush.bf16.msra.mxu0 %v4120
        %4481 = vmatmul.bf16.gmra.mxu0 %v3488
        %v4482 = vpop.f32.mrf.mxu0
        %v4483 = vadd.f32 %v4469, %v4482
        %v4484 = vpop.f32.mrf.mxu0
        %v4485 = vadd.f32 %v4471, %v4484
        %4486 = vdwg.mxu0
        %v4487 = vadd.f32 %v4371, %v2321
        %v4488 = vadd.f32 %v4483, %v2322
        %v4489 = vadd.f32 %v4373, %v2323
        %v4490 = vadd.f32 %v4485, %v2324
        %v4491 = vld [vmem:[%s935] sm:$0x3]
        %v4492 = vld [vmem:[%s939] sm:$0x3]
        %v4493 = vadd.f32 %v4487, %v4488
        %4494 = vadd.xlane.f32.xlu0 %v4493
        %v4495 = vpop.xlane.xlu0 %4494
        %v4496 = vadd.f32 %v4489, %v4490
        %4497 = vadd.xlane.f32.xlu0 %v4496
        %v4498 = vpop.xlane.xlu0 %4497
        %v4499 = vmul.f32 %v4495, %v2262
        %v4500 = vmul.f32 %v4498, %v2262
        %v4501 = vsub.f32 %v4487, %v4499
        %v4502 = vsub.f32 %v4488, %v4499
        %v4503 = vsub.f32 %v4489, %v4500
        %v4504 = vsub.f32 %v4490, %v4500
        %v4505 = vmul.f32 %v4501, %v4501
        %v4506 = vmul.f32 %v4502, %v4502
        %v4507 = vmul.f32 %v4503, %v4503
        %v4508 = vmul.f32 %v4504, %v4504
        %v4509 = vadd.f32 %v4505, %v4506
        %4510 = vadd.xlane.f32.xlu0 %v4509
        %v4511 = vpop.xlane.xlu0 %4510
        %v4512 = vadd.f32 %v4507, %v4508
        %4513 = vadd.xlane.f32.xlu0 %v4512
        %v4514 = vpop.xlane.xlu0 %4513
        %v4515 = vmul.f32 %v4511, %v2262
        %v4516 = vmul.f32 %v4514, %v2262
        %v4517 = vadd.f32 %v4515, 1e-12
        %v4518 = vadd.f32 %v4516, 1e-12
        %v4519 = vrsqrt.pop %v4517
        %v4520 = vmul.f32 %v4519, %v4517
        %v4521 = vmul.f32 %v4520, %v4519
        %v4522 = vmul.f32 0.5, %v4521
        %v4523 = vsub.f32 1.5, %v4522
        %v4524 = vmul.f32 %v4519, %v4523
        %vm4525 = vweird.f32 %v4517
        %vm4526 = vweird.f32 %v4519
        %vm4527 = vmor %vm4525, %vm4526
        %v4528 = vsel %vm4527, %v4519, %v4524
        %v4529 = vrsqrt.pop %v4518
        %v4530 = vmul.f32 %v4529, %v4518
        %v4531 = vmul.f32 %v4530, %v4529
        %v4532 = vmul.f32 0.5, %v4531
        %v4533 = vsub.f32 1.5, %v4532
        %v4534 = vmul.f32 %v4529, %v4533
        %vm4535 = vweird.f32 %v4518
        %vm4536 = vweird.f32 %v4529
        %vm4537 = vmor %vm4535, %vm4536
        %v4538 = vsel %vm4537, %v4529, %v4534
        %v4539 = vmul.f32 %v4501, %v4528
        %v4540 = vmul.f32 %v4502, %v4528
        %v4541 = vmul.f32 %v4503, %v4538
        %v4542 = vmul.f32 %v4504, %v4538
        %v4544 = vperm.slane %v4491, 0
        %v4545 = vperm.slane %v4491, 1
        %v4548 = vmul.f32 %v4539, %v4544
        %v4549 = vmul.f32 %v4540, %v4545
        %v4550 = vmul.f32 %v4541, %v4544
        %v4551 = vmul.f32 %v4542, %v4545
        %v4553 = vperm.slane %v4492, 0
        %v4554 = vperm.slane %v4492, 1
        %v4557 = vadd.f32 %v4548, %v4553
        %v4558 = vadd.f32 %v4549, %v4554
        %v4559 = vadd.f32 %v4550, %v4553
        %v4560 = vadd.f32 %v4551, %v4554
        %4561 = vst [vmem:[#allocation2] sm:$0xff] %v4557
        %4562 = vst [vmem:[#allocation2 + $0x8] sm:$0xff] %v4558
        %4563 = vst [vmem:[#allocation2 + $0x10] sm:$0xff] %v4559
        %4564 = vst [vmem:[#allocation2 + $0x18] sm:$0xff] %v4560
        %p4565 = scmp.eq.s32.totalorder %s42, 1
        // Predicated region
        $region129: #{bert_forward_pallas.1} parent=103 // pred_check
          %p4566 = pneg %p4565
        $region130: #{bert_forward_pallas.1} parent=103 // pred_check_branch
          %4568 = sbr.rel (%p4566) target = $region132
        $region131: #{bert_forward_pallas.1} parent=103 // pred_region
          %v4569 = vpack.c.bf16 %v4559, %v4557
          %v4570 = vpack.c.bf16 %v4560, %v4558
          %v4571 = vld [vmem:[%s15] sm:$0xff]
          %v4572 = vld [vmem:[%s15 + $0x8] sm:$0xff]
          %v4573 = vld [vmem:[%s15 + $0x10] sm:$0xff]
          %v4574 = vld [vmem:[%s15 + $0x18] sm:$0xff]
          %v4575 = vld [vmem:[%s15 + $0x20] sm:$0xff]
          %v4576 = vld [vmem:[%s15 + $0x28] sm:$0xff]
          %v4577 = vld [vmem:[%s15 + $0x30] sm:$0xff]
          %v4578 = vld [vmem:[%s15 + $0x38] sm:$0xff]
          %v4579 = vld [vmem:[%s15 + $0x40] sm:$0xff]
          %v4580 = vld [vmem:[%s15 + $0x48] sm:$0xff]
          %v4581 = vld [vmem:[%s15 + $0x50] sm:$0xff]
          %v4582 = vld [vmem:[%s15 + $0x58] sm:$0xff]
          %v4583 = vld [vmem:[%s15 + $0x60] sm:$0xff]
          %v4584 = vld [vmem:[%s15 + $0x68] sm:$0xff]
          %v4585 = vld [vmem:[%s15 + $0x70] sm:$0xff]
          %v4586 = vld [vmem:[%s15 + $0x78] sm:$0xff]
          %v4587 = vld [vmem:[%s15 + $0x80] sm:$0xff]
          %v4588 = vld [vmem:[%s15 + $0x88] sm:$0xff]
          %v4589 = vld [vmem:[%s15 + $0x90] sm:$0xff]
          %v4590 = vld [vmem:[%s15 + $0x98] sm:$0xff]
          %v4591 = vld [vmem:[%s15 + $0xa0] sm:$0xff]
          %v4592 = vld [vmem:[%s15 + $0xa8] sm:$0xff]
          %v4593 = vld [vmem:[%s15 + $0xb0] sm:$0xff]
          %v4594 = vld [vmem:[%s15 + $0xb8] sm:$0xff]
          %v4595 = vld [vmem:[%s15 + $0xc0] sm:$0xff]
          %v4596 = vld [vmem:[%s15 + $0xc8] sm:$0xff]
          %v4597 = vld [vmem:[%s15 + $0xd0] sm:$0xff]
          %v4598 = vld [vmem:[%s15 + $0xd8] sm:$0xff]
          %v4599 = vld [vmem:[%s15 + $0xe0] sm:$0xff]
          %v4600 = vld [vmem:[%s15 + $0xe8] sm:$0xff]
          %v4601 = vld [vmem:[%s15 + $0xf0] sm:$0xff]
          %v4602 = vld [vmem:[%s15 + $0xf8] sm:$0xff]
          %v4603 = vld [vmem:[%s16] sm:$0x3]
          %v4605 = vperm.slane %v4603, 0
          %v4606 = vperm.slane %v4603, 1
          %v4641 = vunpack.c.l.b16 %v4571
          %v4642 = vunpack.c.h.b16 %v4571
          %v4643 = vunpack.c.l.b16 %v4572
          %v4644 = vunpack.c.h.b16 %v4572
          %v4645 = vunpack.c.l.b16 %v4573
          %v4646 = vunpack.c.h.b16 %v4573
          %v4647 = vunpack.c.l.b16 %v4574
          %v4648 = vunpack.c.h.b16 %v4574
          %v4649 = vunpack.c.l.b16 %v4575
          %v4650 = vunpack.c.h.b16 %v4575
          %v4651 = vunpack.c.l.b16 %v4576
          %v4652 = vunpack.c.h.b16 %v4576
          %v4653 = vunpack.c.l.b16 %v4577
          %v4654 = vunpack.c.h.b16 %v4577
          %v4655 = vunpack.c.l.b16 %v4578
          %v4656 = vunpack.c.h.b16 %v4578
          %v4657 = vunpack.c.l.b16 %v4579
          %v4658 = vunpack.c.h.b16 %v4579
          %v4659 = vunpack.c.l.b16 %v4580
          %v4660 = vunpack.c.h.b16 %v4580
          %v4661 = vunpack.c.l.b16 %v4581
          %v4662 = vunpack.c.h.b16 %v4581
          %v4663 = vunpack.c.l.b16 %v4582
          %v4664 = vunpack.c.h.b16 %v4582
          %v4665 = vunpack.c.l.b16 %v4583
          %v4666 = vunpack.c.h.b16 %v4583
          %v4667 = vunpack.c.l.b16 %v4584
          %v4668 = vunpack.c.h.b16 %v4584
          %v4669 = vunpack.c.l.b16 %v4585
          %v4670 = vunpack.c.h.b16 %v4585
          %v4671 = vunpack.c.l.b16 %v4586
          %v4672 = vunpack.c.h.b16 %v4586
          %v4673 = vunpack.c.l.b16 %v4587
          %v4674 = vunpack.c.h.b16 %v4587
          %v4675 = vunpack.c.l.b16 %v4588
          %v4676 = vunpack.c.h.b16 %v4588
          %v4677 = vunpack.c.l.b16 %v4589
          %v4678 = vunpack.c.h.b16 %v4589
          %v4679 = vunpack.c.l.b16 %v4590
          %v4680 = vunpack.c.h.b16 %v4590
          %v4681 = vunpack.c.l.b16 %v4591
          %v4682 = vunpack.c.h.b16 %v4591
          %v4683 = vunpack.c.l.b16 %v4592
          %v4684 = vunpack.c.h.b16 %v4592
          %v4685 = vunpack.c.l.b16 %v4593
          %v4686 = vunpack.c.h.b16 %v4593
          %v4687 = vunpack.c.l.b16 %v4594
          %v4688 = vunpack.c.h.b16 %v4594
          %v4689 = vunpack.c.l.b16 %v4595
          %v4690 = vunpack.c.h.b16 %v4595
          %v4691 = vunpack.c.l.b16 %v4596
          %v4692 = vunpack.c.h.b16 %v4596
          %v4693 = vunpack.c.l.b16 %v4597
          %v4694 = vunpack.c.h.b16 %v4597
          %v4695 = vunpack.c.l.b16 %v4598
          %v4696 = vunpack.c.h.b16 %v4598
          %v4697 = vunpack.c.l.b16 %v4599
          %v4698 = vunpack.c.h.b16 %v4599
          %v4699 = vunpack.c.l.b16 %v4600
          %v4700 = vunpack.c.h.b16 %v4600
          %v4701 = vunpack.c.l.b16 %v4601
          %v4702 = vunpack.c.h.b16 %v4601
          %v4703 = vunpack.c.l.b16 %v4602
          %v4704 = vunpack.c.h.b16 %v4602
          %v4705 = vpack.c.b16 %v4643, %v4641
          %v4706 = vpack.c.b16 %v4644, %v4642
          %v4707 = vpack.c.b16 %v4647, %v4645
          %v4708 = vpack.c.b16 %v4648, %v4646
          %v4709 = vpack.c.b16 %v4651, %v4649
          %v4710 = vpack.c.b16 %v4652, %v4650
          %v4711 = vpack.c.b16 %v4655, %v4653
          %v4712 = vpack.c.b16 %v4656, %v4654
          %v4713 = vpack.c.b16 %v4659, %v4657
          %v4714 = vpack.c.b16 %v4660, %v4658
          %v4715 = vpack.c.b16 %v4663, %v4661
          %v4716 = vpack.c.b16 %v4664, %v4662
          %v4717 = vpack.c.b16 %v4667, %v4665
          %v4718 = vpack.c.b16 %v4668, %v4666
          %v4719 = vpack.c.b16 %v4671, %v4669
          %v4720 = vpack.c.b16 %v4672, %v4670
          %v4721 = vpack.c.b16 %v4675, %v4673
          %v4722 = vpack.c.b16 %v4676, %v4674
          %v4723 = vpack.c.b16 %v4679, %v4677
          %v4724 = vpack.c.b16 %v4680, %v4678
          %v4725 = vpack.c.b16 %v4683, %v4681
          %v4726 = vpack.c.b16 %v4684, %v4682
          %v4727 = vpack.c.b16 %v4687, %v4685
          %v4728 = vpack.c.b16 %v4688, %v4686
          %v4729 = vpack.c.b16 %v4691, %v4689
          %v4730 = vpack.c.b16 %v4692, %v4690
          %v4731 = vpack.c.b16 %v4695, %v4693
          %v4732 = vpack.c.b16 %v4696, %v4694
          %v4733 = vpack.c.b16 %v4699, %v4697
          %v4734 = vpack.c.b16 %v4700, %v4698
          %v4735 = vpack.c.b16 %v4703, %v4701
          %v4736 = vpack.c.b16 %v4704, %v4702
          %4769 = vmatpush.bf16.msra.mxu0 %v4719
          %4770 = vmatpush.bf16.msra.mxu0 %v4717
          %4771 = vmatpush.bf16.msra.mxu0 %v4715
          %4772 = vmatpush.bf16.msra.mxu0 %v4713
          %4773 = vmatpush.bf16.msra.mxu0 %v4711
          %4774 = vmatpush.bf16.msra.mxu0 %v4709
          %4775 = vmatpush.bf16.msra.mxu0 %v4707
          %4776 = vmatpush.bf16.msra.mxu0 %v4705
          %4777 = vmatmul.bf16.gmra.mxu0 %v4569
          %v4778 = vpop.f32.mrf.mxu0
          %v4779 = vadd.f32 %v4605, %v4778
          %v4780 = vpop.f32.mrf.mxu0
          %v4781 = vadd.f32 %v4605, %v4780
          %4782 = vdwg.mxu0
          %4783 = vmatpush.bf16.msra.mxu0 %v4735
          %4784 = vmatpush.bf16.msra.mxu0 %v4733
          %4785 = vmatpush.bf16.msra.mxu0 %v4731
          %4786 = vmatpush.bf16.msra.mxu0 %v4729
          %4787 = vmatpush.bf16.msra.mxu0 %v4727
          %4788 = vmatpush.bf16.msra.mxu0 %v4725
          %4789 = vmatpush.bf16.msra.mxu0 %v4723
          %4790 = vmatpush.bf16.msra.mxu0 %v4721
          %4791 = vmatmul.bf16.gmra.mxu0 %v4570
          %v4792 = vpop.f32.mrf.mxu0
          %v4793 = vadd.f32 %v4779, %v4792
          %v4794 = vpop.f32.mrf.mxu0
          %v4795 = vadd.f32 %v4781, %v4794
          %4796 = vdwg.mxu0
          %4797 = vmatpush.bf16.msra.mxu0 %v4720
          %4798 = vmatpush.bf16.msra.mxu0 %v4718
          %4799 = vmatpush.bf16.msra.mxu0 %v4716
          %4800 = vmatpush.bf16.msra.mxu0 %v4714
          %4801 = vmatpush.bf16.msra.mxu0 %v4712
          %4802 = vmatpush.bf16.msra.mxu0 %v4710
          %4803 = vmatpush.bf16.msra.mxu0 %v4708
          %4804 = vmatpush.bf16.msra.mxu0 %v4706
          %4805 = vmatmul.bf16.gmra.mxu0 %v4569
          %v4806 = vpop.f32.mrf.mxu0
          %v4807 = vadd.f32 %v4606, %v4806
          %v4808 = vpop.f32.mrf.mxu0
          %v4809 = vadd.f32 %v4606, %v4808
          %4810 = vdwg.mxu0
          %4811 = vmatpush.bf16.msra.mxu0 %v4736
          %4812 = vmatpush.bf16.msra.mxu0 %v4734
          %4813 = vmatpush.bf16.msra.mxu0 %v4732
          %4814 = vmatpush.bf16.msra.mxu0 %v4730
          %4815 = vmatpush.bf16.msra.mxu0 %v4728
          %4816 = vmatpush.bf16.msra.mxu0 %v4726
          %4817 = vmatpush.bf16.msra.mxu0 %v4724
          %4818 = vmatpush.bf16.msra.mxu0 %v4722
          %4819 = vmatmul.bf16.gmra.mxu0 %v4570
          %v4820 = vpop.f32.mrf.mxu0
          %v4821 = vadd.f32 %v4807, %v4820
          %v4822 = vpop.f32.mrf.mxu0
          %v4823 = vadd.f32 %v4809, %v4822
          %4824 = vdwg.mxu0
          %v4825 = vmul.f32 %v4793, 0.5
          %v4826 = vmul.f32 %v4821, 0.5
          %v4827 = vmul.f32 %v4795, 0.5
          %v4828 = vmul.f32 %v4823, 0.5
          %v4829 = vmul.f32 %v4793, 0.044715
          %v4830 = vmul.f32 %v4821, 0.044715
          %v4831 = vmul.f32 %v4795, 0.044715
          %v4832 = vmul.f32 %v4823, 0.044715
          %v4833 = vmul.f32 %v4829, %v4793
          %v4834 = vmul.f32 %v4830, %v4821
          %v4835 = vmul.f32 %v4831, %v4795
          %v4836 = vmul.f32 %v4832, %v4823
          %v4837 = vmul.f32 %v4833, %v4793
          %v4838 = vmul.f32 %v4834, %v4821
          %v4839 = vmul.f32 %v4835, %v4795
          %v4840 = vmul.f32 %v4836, %v4823
          %v4841 = vadd.f32 %v4793, %v4837
          %v4842 = vadd.f32 %v4821, %v4838
          %v4843 = vadd.f32 %v4795, %v4839
          %v4844 = vadd.f32 %v4823, %v4840
          %v4845 = vmul.f32 %v4841, 0.7978846
          %v4846 = vmul.f32 %v4842, 0.7978846
          %v4847 = vmul.f32 %v4843, 0.7978846
          %v4848 = vmul.f32 %v4844, 0.7978846
          %v4849 = vtanh.pop %v4845
          %v4850 = vtanh.pop %v4846
          %v4851 = vtanh.pop %v4847
          %v4852 = vtanh.pop %v4848
          %v4853 = vadd.f32 %v4849, 1.0
          %v4854 = vadd.f32 %v4850, 1.0
          %v4855 = vadd.f32 %v4851, 1.0
          %v4856 = vadd.f32 %v4852, 1.0
          %v4857 = vmul.f32 %v4825, %v4853
          %v4858 = vmul.f32 %v4826, %v4854
          %v4859 = vmul.f32 %v4827, %v4855
          %v4860 = vmul.f32 %v4828, %v4856
          %v4861 = vld [vmem:[%s17] sm:$0x3]
          %v4862 = vld [vmem:[%s18] sm:$0x3]
          %v4863 = vadd.f32 %v4857, %v4858
          %4864 = vadd.xlane.f32.xlu0 %v4863
          %v4865 = vpop.xlane.xlu0 %4864
          %v4866 = vadd.f32 %v4859, %v4860
          %4867 = vadd.xlane.f32.xlu0 %v4866
          %v4868 = vpop.xlane.xlu0 %4867
          %v4869 = vmul.f32 %v4865, %v2262
          %v4870 = vmul.f32 %v4868, %v2262
          %v4871 = vsub.f32 %v4857, %v4869
          %v4872 = vsub.f32 %v4858, %v4869
          %v4873 = vsub.f32 %v4859, %v4870
          %v4874 = vsub.f32 %v4860, %v4870
          %v4875 = vmul.f32 %v4871, %v4871
          %v4876 = vmul.f32 %v4872, %v4872
          %v4877 = vmul.f32 %v4873, %v4873
          %v4878 = vmul.f32 %v4874, %v4874
          %v4879 = vadd.f32 %v4875, %v4876
          %4880 = vadd.xlane.f32.xlu0 %v4879
          %v4881 = vpop.xlane.xlu0 %4880
          %v4882 = vadd.f32 %v4877, %v4878
          %4883 = vadd.xlane.f32.xlu0 %v4882
          %v4884 = vpop.xlane.xlu0 %4883
          %v4885 = vmul.f32 %v4881, %v2262
          %v4886 = vmul.f32 %v4884, %v2262
          %v4887 = vadd.f32 %v4885, 1e-12
          %v4888 = vadd.f32 %v4886, 1e-12
          %v4889 = vrsqrt.pop %v4887
          %v4890 = vmul.f32 %v4889, %v4887
          %v4891 = vmul.f32 %v4890, %v4889
          %v4892 = vmul.f32 0.5, %v4891
          %v4893 = vsub.f32 1.5, %v4892
          %v4894 = vmul.f32 %v4889, %v4893
          %vm4895 = vweird.f32 %v4887
          %vm4896 = vweird.f32 %v4889
          %vm4897 = vmor %vm4895, %vm4896
          %v4898 = vsel %vm4897, %v4889, %v4894
          %v4899 = vrsqrt.pop %v4888
          %v4900 = vmul.f32 %v4899, %v4888
          %v4901 = vmul.f32 %v4900, %v4899
          %v4902 = vmul.f32 0.5, %v4901
          %v4903 = vsub.f32 1.5, %v4902
          %v4904 = vmul.f32 %v4899, %v4903
          %vm4905 = vweird.f32 %v4888
          %vm4906 = vweird.f32 %v4899
          %vm4907 = vmor %vm4905, %vm4906
          %v4908 = vsel %vm4907, %v4899, %v4904
          %v4909 = vmul.f32 %v4871, %v4898
          %v4910 = vmul.f32 %v4872, %v4898
          %v4911 = vmul.f32 %v4873, %v4908
          %v4912 = vmul.f32 %v4874, %v4908
          %v4914 = vperm.slane %v4861, 0
          %v4915 = vperm.slane %v4861, 1
          %v4918 = vmul.f32 %v4909, %v4914
          %v4919 = vmul.f32 %v4910, %v4915
          %v4920 = vmul.f32 %v4911, %v4914
          %v4921 = vmul.f32 %v4912, %v4915
          %v4923 = vperm.slane %v4862, 0
          %v4924 = vperm.slane %v4862, 1
          %v4927 = vadd.f32 %v4918, %v4923
          %v4928 = vadd.f32 %v4919, %v4924
          %v4929 = vadd.f32 %v4920, %v4923
          %v4930 = vadd.f32 %v4921, %v4924
          %v4931 = vpack.c.bf16 %v4929, %v4927
          %v4932 = vpack.c.bf16 %v4930, %v4928
          %v4933 = vld [vmem:[#allocation11] sm:$0xff]
          %v4934 = vld [vmem:[#allocation11 + $0x8] sm:$0xff]
          %v4935 = vld [vmem:[#allocation11 + $0x10] sm:$0xff]
          %v4936 = vld [vmem:[#allocation11 + $0x18] sm:$0xff]
          %v4937 = vld [vmem:[#allocation11 + $0x20] sm:$0xff]
          %v4938 = vld [vmem:[#allocation11 + $0x28] sm:$0xff]
          %v4939 = vld [vmem:[#allocation11 + $0x30] sm:$0xff]
          %v4940 = vld [vmem:[#allocation11 + $0x38] sm:$0xff]
          %v4941 = vld [vmem:[#allocation11 + $0x40] sm:$0xff]
          %v4942 = vld [vmem:[#allocation11 + $0x48] sm:$0xff]
          %v4943 = vld [vmem:[#allocation11 + $0x50] sm:$0xff]
          %v4944 = vld [vmem:[#allocation11 + $0x58] sm:$0xff]
          %v4945 = vld [vmem:[#allocation11 + $0x60] sm:$0xff]
          %v4946 = vld [vmem:[#allocation11 + $0x68] sm:$0xff]
          %v4947 = vld [vmem:[#allocation11 + $0x70] sm:$0xff]
          %v4948 = vld [vmem:[#allocation11 + $0x78] sm:$0xff]
          %v4949 = vld [vmem:[#allocation11 + $0x80] sm:$0xff]
          %v4950 = vld [vmem:[#allocation11 + $0x88] sm:$0xff]
          %v4951 = vld [vmem:[#allocation11 + $0x90] sm:$0xff]
          %v4952 = vld [vmem:[#allocation11 + $0x98] sm:$0xff]
          %v4953 = vld [vmem:[#allocation11 + $0xa0] sm:$0xff]
          %v4954 = vld [vmem:[#allocation11 + $0xa8] sm:$0xff]
          %v4955 = vld [vmem:[#allocation11 + $0xb0] sm:$0xff]
          %v4956 = vld [vmem:[#allocation11 + $0xb8] sm:$0xff]
          %v4957 = vld [vmem:[#allocation11 + $0xc0] sm:$0xff]
          %v4958 = vld [vmem:[#allocation11 + $0xc8] sm:$0xff]
          %v4959 = vld [vmem:[#allocation11 + $0xd0] sm:$0xff]
          %v4960 = vld [vmem:[#allocation11 + $0xd8] sm:$0xff]
          %v4961 = vld [vmem:[#allocation11 + $0xe0] sm:$0xff]
          %v4962 = vld [vmem:[#allocation11 + $0xe8] sm:$0xff]
          %v4963 = vld [vmem:[#allocation11 + $0xf0] sm:$0xff]
          %v4964 = vld [vmem:[#allocation11 + $0xf8] sm:$0xff]
          %v4965 = vld [vmem:[#allocation11 + $0x100] sm:$0xff]
          %v4966 = vld [vmem:[#allocation11 + $0x108] sm:$0xff]
          %v4967 = vld [vmem:[#allocation11 + $0x110] sm:$0xff]
          %v4968 = vld [vmem:[#allocation11 + $0x118] sm:$0xff]
          %v4969 = vld [vmem:[#allocation11 + $0x120] sm:$0xff]
          %v4970 = vld [vmem:[#allocation11 + $0x128] sm:$0xff]
          %v4971 = vld [vmem:[#allocation11 + $0x130] sm:$0xff]
          %v4972 = vld [vmem:[#allocation11 + $0x138] sm:$0xff]
          %v4973 = vld [vmem:[#allocation11 + $0x140] sm:$0xff]
          %v4974 = vld [vmem:[#allocation11 + $0x148] sm:$0xff]
          %v4975 = vld [vmem:[#allocation11 + $0x150] sm:$0xff]
          %v4976 = vld [vmem:[#allocation11 + $0x158] sm:$0xff]
          %v4977 = vld [vmem:[#allocation11 + $0x160] sm:$0xff]
          %v4978 = vld [vmem:[#allocation11 + $0x168] sm:$0xff]
          %v4979 = vld [vmem:[#allocation11 + $0x170] sm:$0xff]
          %v4980 = vld [vmem:[#allocation11 + $0x178] sm:$0xff]
          %v4981 = vld [vmem:[#allocation11 + $0x180] sm:$0xff]
          %v4982 = vld [vmem:[#allocation11 + $0x188] sm:$0xff]
          %v4983 = vld [vmem:[#allocation11 + $0x190] sm:$0xff]
          %v4984 = vld [vmem:[#allocation11 + $0x198] sm:$0xff]
          %v4985 = vld [vmem:[#allocation11 + $0x1a0] sm:$0xff]
          %v4986 = vld [vmem:[#allocation11 + $0x1a8] sm:$0xff]
          %v4987 = vld [vmem:[#allocation11 + $0x1b0] sm:$0xff]
          %v4988 = vld [vmem:[#allocation11 + $0x1b8] sm:$0xff]
          %v4989 = vld [vmem:[#allocation11 + $0x1c0] sm:$0xff]
          %v4990 = vld [vmem:[#allocation11 + $0x1c8] sm:$0xff]
          %v4991 = vld [vmem:[#allocation11 + $0x1d0] sm:$0xff]
          %v4992 = vld [vmem:[#allocation11 + $0x1d8] sm:$0xff]
          %v4993 = vld [vmem:[#allocation11 + $0x1e0] sm:$0xff]
          %v4994 = vld [vmem:[#allocation11 + $0x1e8] sm:$0xff]
          %v4995 = vld [vmem:[#allocation11 + $0x1f0] sm:$0xff]
          %v4996 = vld [vmem:[#allocation11 + $0x1f8] sm:$0xff]
          %v4997 = vld [vmem:[%s20] sm:$0xf]
          %v4999 = vperm.slane %v4997, 0
          %v5000 = vperm.slane %v4997, 1
          %v5001 = vperm.slane %v4997, 2
          %v5002 = vperm.slane %v4997, 3
          %v5071 = vunpack.c.l.b16 %v4933
          %v5072 = vunpack.c.h.b16 %v4933
          %v5073 = vunpack.c.l.b16 %v4934
          %v5074 = vunpack.c.h.b16 %v4934
          %v5075 = vunpack.c.l.b16 %v4935
          %v5076 = vunpack.c.h.b16 %v4935
          %v5077 = vunpack.c.l.b16 %v4936
          %v5078 = vunpack.c.h.b16 %v4936
          %v5079 = vunpack.c.l.b16 %v4937
          %v5080 = vunpack.c.h.b16 %v4937
          %v5081 = vunpack.c.l.b16 %v4938
          %v5082 = vunpack.c.h.b16 %v4938
          %v5083 = vunpack.c.l.b16 %v4939
          %v5084 = vunpack.c.h.b16 %v4939
          %v5085 = vunpack.c.l.b16 %v4940
          %v5086 = vunpack.c.h.b16 %v4940
          %v5087 = vunpack.c.l.b16 %v4941
          %v5088 = vunpack.c.h.b16 %v4941
          %v5089 = vunpack.c.l.b16 %v4942
          %v5090 = vunpack.c.h.b16 %v4942
          %v5091 = vunpack.c.l.b16 %v4943
          %v5092 = vunpack.c.h.b16 %v4943
          %v5093 = vunpack.c.l.b16 %v4944
          %v5094 = vunpack.c.h.b16 %v4944
          %v5095 = vunpack.c.l.b16 %v4945
          %v5096 = vunpack.c.h.b16 %v4945
          %v5097 = vunpack.c.l.b16 %v4946
          %v5098 = vunpack.c.h.b16 %v4946
          %v5099 = vunpack.c.l.b16 %v4947
          %v5100 = vunpack.c.h.b16 %v4947
          %v5101 = vunpack.c.l.b16 %v4948
          %v5102 = vunpack.c.h.b16 %v4948
          %v5103 = vunpack.c.l.b16 %v4949
          %v5104 = vunpack.c.h.b16 %v4949
          %v5105 = vunpack.c.l.b16 %v4950
          %v5106 = vunpack.c.h.b16 %v4950
          %v5107 = vunpack.c.l.b16 %v4951
          %v5108 = vunpack.c.h.b16 %v4951
          %v5109 = vunpack.c.l.b16 %v4952
          %v5110 = vunpack.c.h.b16 %v4952
          %v5111 = vunpack.c.l.b16 %v4953
          %v5112 = vunpack.c.h.b16 %v4953
          %v5113 = vunpack.c.l.b16 %v4954
          %v5114 = vunpack.c.h.b16 %v4954
          %v5115 = vunpack.c.l.b16 %v4955
          %v5116 = vunpack.c.h.b16 %v4955
          %v5117 = vunpack.c.l.b16 %v4956
          %v5118 = vunpack.c.h.b16 %v4956
          %v5119 = vunpack.c.l.b16 %v4957
          %v5120 = vunpack.c.h.b16 %v4957
          %v5121 = vunpack.c.l.b16 %v4958
          %v5122 = vunpack.c.h.b16 %v4958
          %v5123 = vunpack.c.l.b16 %v4959
          %v5124 = vunpack.c.h.b16 %v4959
          %v5125 = vunpack.c.l.b16 %v4960
          %v5126 = vunpack.c.h.b16 %v4960
          %v5127 = vunpack.c.l.b16 %v4961
          %v5128 = vunpack.c.h.b16 %v4961
          %v5129 = vunpack.c.l.b16 %v4962
          %v5130 = vunpack.c.h.b16 %v4962
          %v5131 = vunpack.c.l.b16 %v4963
          %v5132 = vunpack.c.h.b16 %v4963
          %v5133 = vunpack.c.l.b16 %v4964
          %v5134 = vunpack.c.h.b16 %v4964
          %v5135 = vunpack.c.l.b16 %v4965
          %v5136 = vunpack.c.h.b16 %v4965
          %v5137 = vunpack.c.l.b16 %v4966
          %v5138 = vunpack.c.h.b16 %v4966
          %v5139 = vunpack.c.l.b16 %v4967
          %v5140 = vunpack.c.h.b16 %v4967
          %v5141 = vunpack.c.l.b16 %v4968
          %v5142 = vunpack.c.h.b16 %v4968
          %v5143 = vunpack.c.l.b16 %v4969
          %v5144 = vunpack.c.h.b16 %v4969
          %v5145 = vunpack.c.l.b16 %v4970
          %v5146 = vunpack.c.h.b16 %v4970
          %v5147 = vunpack.c.l.b16 %v4971
          %v5148 = vunpack.c.h.b16 %v4971
          %v5149 = vunpack.c.l.b16 %v4972
          %v5150 = vunpack.c.h.b16 %v4972
          %v5151 = vunpack.c.l.b16 %v4973
          %v5152 = vunpack.c.h.b16 %v4973
          %v5153 = vunpack.c.l.b16 %v4974
          %v5154 = vunpack.c.h.b16 %v4974
          %v5155 = vunpack.c.l.b16 %v4975
          %v5156 = vunpack.c.h.b16 %v4975
          %v5157 = vunpack.c.l.b16 %v4976
          %v5158 = vunpack.c.h.b16 %v4976
          %v5159 = vunpack.c.l.b16 %v4977
          %v5160 = vunpack.c.h.b16 %v4977
          %v5161 = vunpack.c.l.b16 %v4978
          %v5162 = vunpack.c.h.b16 %v4978
          %v5163 = vunpack.c.l.b16 %v4979
          %v5164 = vunpack.c.h.b16 %v4979
          %v5165 = vunpack.c.l.b16 %v4980
          %v5166 = vunpack.c.h.b16 %v4980
          %v5167 = vunpack.c.l.b16 %v4981
          %v5168 = vunpack.c.h.b16 %v4981
          %v5169 = vunpack.c.l.b16 %v4982
          %v5170 = vunpack.c.h.b16 %v4982
          %v5171 = vunpack.c.l.b16 %v4983
          %v5172 = vunpack.c.h.b16 %v4983
          %v5173 = vunpack.c.l.b16 %v4984
          %v5174 = vunpack.c.h.b16 %v4984
          %v5175 = vunpack.c.l.b16 %v4985
          %v5176 = vunpack.c.h.b16 %v4985
          %v5177 = vunpack.c.l.b16 %v4986
          %v5178 = vunpack.c.h.b16 %v4986
          %v5179 = vunpack.c.l.b16 %v4987
          %v5180 = vunpack.c.h.b16 %v4987
          %v5181 = vunpack.c.l.b16 %v4988
          %v5182 = vunpack.c.h.b16 %v4988
          %v5183 = vunpack.c.l.b16 %v4989
          %v5184 = vunpack.c.h.b16 %v4989
          %v5185 = vunpack.c.l.b16 %v4990
          %v5186 = vunpack.c.h.b16 %v4990
          %v5187 = vunpack.c.l.b16 %v4991
          %v5188 = vunpack.c.h.b16 %v4991
          %v5189 = vunpack.c.l.b16 %v4992
          %v5190 = vunpack.c.h.b16 %v4992
          %v5191 = vunpack.c.l.b16 %v4993
          %v5192 = vunpack.c.h.b16 %v4993
          %v5193 = vunpack.c.l.b16 %v4994
          %v5194 = vunpack.c.h.b16 %v4994
          %v5195 = vunpack.c.l.b16 %v4995
          %v5196 = vunpack.c.h.b16 %v4995
          %v5197 = vunpack.c.l.b16 %v4996
          %v5198 = vunpack.c.h.b16 %v4996
          %v5199 = vpack.c.b16 %v5075, %v5071
          %v5200 = vpack.c.b16 %v5076, %v5072
          %v5201 = vpack.c.b16 %v5077, %v5073
          %v5202 = vpack.c.b16 %v5078, %v5074
          %v5203 = vpack.c.b16 %v5083, %v5079
          %v5204 = vpack.c.b16 %v5084, %v5080
          %v5205 = vpack.c.b16 %v5085, %v5081
          %v5206 = vpack.c.b16 %v5086, %v5082
          %v5207 = vpack.c.b16 %v5091, %v5087
          %v5208 = vpack.c.b16 %v5092, %v5088
          %v5209 = vpack.c.b16 %v5093, %v5089
          %v5210 = vpack.c.b16 %v5094, %v5090
          %v5211 = vpack.c.b16 %v5099, %v5095
          %v5212 = vpack.c.b16 %v5100, %v5096
          %v5213 = vpack.c.b16 %v5101, %v5097
          %v5214 = vpack.c.b16 %v5102, %v5098
          %v5215 = vpack.c.b16 %v5107, %v5103
          %v5216 = vpack.c.b16 %v5108, %v5104
          %v5217 = vpack.c.b16 %v5109, %v5105
          %v5218 = vpack.c.b16 %v5110, %v5106
          %v5219 = vpack.c.b16 %v5115, %v5111
          %v5220 = vpack.c.b16 %v5116, %v5112
          %v5221 = vpack.c.b16 %v5117, %v5113
          %v5222 = vpack.c.b16 %v5118, %v5114
          %v5223 = vpack.c.b16 %v5123, %v5119
          %v5224 = vpack.c.b16 %v5124, %v5120
          %v5225 = vpack.c.b16 %v5125, %v5121
          %v5226 = vpack.c.b16 %v5126, %v5122
          %v5227 = vpack.c.b16 %v5131, %v5127
          %v5228 = vpack.c.b16 %v5132, %v5128
          %v5229 = vpack.c.b16 %v5133, %v5129
          %v5230 = vpack.c.b16 %v5134, %v5130
          %v5231 = vpack.c.b16 %v5139, %v5135
          %v5232 = vpack.c.b16 %v5140, %v5136
          %v5233 = vpack.c.b16 %v5141, %v5137
          %v5234 = vpack.c.b16 %v5142, %v5138
          %v5235 = vpack.c.b16 %v5147, %v5143
          %v5236 = vpack.c.b16 %v5148, %v5144
          %v5237 = vpack.c.b16 %v5149, %v5145
          %v5238 = vpack.c.b16 %v5150, %v5146
          %v5239 = vpack.c.b16 %v5155, %v5151
          %v5240 = vpack.c.b16 %v5156, %v5152
          %v5241 = vpack.c.b16 %v5157, %v5153
          %v5242 = vpack.c.b16 %v5158, %v5154
          %v5243 = vpack.c.b16 %v5163, %v5159
          %v5244 = vpack.c.b16 %v5164, %v5160
          %v5245 = vpack.c.b16 %v5165, %v5161
          %v5246 = vpack.c.b16 %v5166, %v5162
          %v5247 = vpack.c.b16 %v5171, %v5167
          %v5248 = vpack.c.b16 %v5172, %v5168
          %v5249 = vpack.c.b16 %v5173, %v5169
          %v5250 = vpack.c.b16 %v5174, %v5170
          %v5251 = vpack.c.b16 %v5179, %v5175
          %v5252 = vpack.c.b16 %v5180, %v5176
          %v5253 = vpack.c.b16 %v5181, %v5177
          %v5254 = vpack.c.b16 %v5182, %v5178
          %v5255 = vpack.c.b16 %v5187, %v5183
          %v5256 = vpack.c.b16 %v5188, %v5184
          %v5257 = vpack.c.b16 %v5189, %v5185
          %v5258 = vpack.c.b16 %v5190, %v5186
          %v5259 = vpack.c.b16 %v5195, %v5191
          %v5260 = vpack.c.b16 %v5196, %v5192
          %v5261 = vpack.c.b16 %v5197, %v5193
          %v5262 = vpack.c.b16 %v5198, %v5194
          %5327 = vmatpush.bf16.msra.mxu0 %v5227
          %5328 = vmatpush.bf16.msra.mxu0 %v5223
          %5329 = vmatpush.bf16.msra.mxu0 %v5219
          %5330 = vmatpush.bf16.msra.mxu0 %v5215
          %5331 = vmatpush.bf16.msra.mxu0 %v5211
          %5332 = vmatpush.bf16.msra.mxu0 %v5207
          %5333 = vmatpush.bf16.msra.mxu0 %v5203
          %5334 = vmatpush.bf16.msra.mxu0 %v5199
          %5335 = vmatmul.bf16.gmra.mxu0 %v4931
          %v5336 = vpop.f32.mrf.mxu0
          %v5337 = vadd.f32 %v4999, %v5336
          %v5338 = vpop.f32.mrf.mxu0
          %v5339 = vadd.f32 %v4999, %v5338
          %5340 = vdwg.mxu0
          %5341 = vmatpush.bf16.msra.mxu0 %v5259
          %5342 = vmatpush.bf16.msra.mxu0 %v5255
          %5343 = vmatpush.bf16.msra.mxu0 %v5251
          %5344 = vmatpush.bf16.msra.mxu0 %v5247
          %5345 = vmatpush.bf16.msra.mxu0 %v5243
          %5346 = vmatpush.bf16.msra.mxu0 %v5239
          %5347 = vmatpush.bf16.msra.mxu0 %v5235
          %5348 = vmatpush.bf16.msra.mxu0 %v5231
          %5349 = vmatmul.bf16.gmra.mxu0 %v4932
          %v5350 = vpop.f32.mrf.mxu0
          %v5351 = vadd.f32 %v5337, %v5350
          %v5352 = vpop.f32.mrf.mxu0
          %v5353 = vadd.f32 %v5339, %v5352
          %5354 = vdwg.mxu0
          %5355 = vmatpush.bf16.msra.mxu0 %v5228
          %5356 = vmatpush.bf16.msra.mxu0 %v5224
          %5357 = vmatpush.bf16.msra.mxu0 %v5220
          %5358 = vmatpush.bf16.msra.mxu0 %v5216
          %5359 = vmatpush.bf16.msra.mxu0 %v5212
          %5360 = vmatpush.bf16.msra.mxu0 %v5208
          %5361 = vmatpush.bf16.msra.mxu0 %v5204
          %5362 = vmatpush.bf16.msra.mxu0 %v5200
          %5363 = vmatmul.bf16.gmra.mxu0 %v4931
          %v5364 = vpop.f32.mrf.mxu0
          %v5365 = vadd.f32 %v5000, %v5364
          %v5366 = vpop.f32.mrf.mxu0
          %v5367 = vadd.f32 %v5000, %v5366
          %5368 = vdwg.mxu0
          %5369 = vmatpush.bf16.msra.mxu0 %v5260
          %5370 = vmatpush.bf16.msra.mxu0 %v5256
          %5371 = vmatpush.bf16.msra.mxu0 %v5252
          %5372 = vmatpush.bf16.msra.mxu0 %v5248
          %5373 = vmatpush.bf16.msra.mxu0 %v5244
          %5374 = vmatpush.bf16.msra.mxu0 %v5240
          %5375 = vmatpush.bf16.msra.mxu0 %v5236
          %5376 = vmatpush.bf16.msra.mxu0 %v5232
          %5377 = vmatmul.bf16.gmra.mxu0 %v4932
          %v5378 = vpop.f32.mrf.mxu0
          %v5379 = vadd.f32 %v5365, %v5378
          %v5380 = vpop.f32.mrf.mxu0
          %v5381 = vadd.f32 %v5367, %v5380
          %5382 = vdwg.mxu0
          %5383 = vmatpush.bf16.msra.mxu0 %v5229
          %5384 = vmatpush.bf16.msra.mxu0 %v5225
          %5385 = vmatpush.bf16.msra.mxu0 %v5221
          %5386 = vmatpush.bf16.msra.mxu0 %v5217
          %5387 = vmatpush.bf16.msra.mxu0 %v5213
          %5388 = vmatpush.bf16.msra.mxu0 %v5209
          %5389 = vmatpush.bf16.msra.mxu0 %v5205
          %5390 = vmatpush.bf16.msra.mxu0 %v5201
          %5391 = vmatmul.bf16.gmra.mxu0 %v4931
          %v5392 = vpop.f32.mrf.mxu0
          %v5393 = vadd.f32 %v5001, %v5392
          %v5394 = vpop.f32.mrf.mxu0
          %v5395 = vadd.f32 %v5001, %v5394
          %5396 = vdwg.mxu0
          %5397 = vmatpush.bf16.msra.mxu0 %v5261
          %5398 = vmatpush.bf16.msra.mxu0 %v5257
          %5399 = vmatpush.bf16.msra.mxu0 %v5253
          %5400 = vmatpush.bf16.msra.mxu0 %v5249
          %5401 = vmatpush.bf16.msra.mxu0 %v5245
          %5402 = vmatpush.bf16.msra.mxu0 %v5241
          %5403 = vmatpush.bf16.msra.mxu0 %v5237
          %5404 = vmatpush.bf16.msra.mxu0 %v5233
          %5405 = vmatmul.bf16.gmra.mxu0 %v4932
          %v5406 = vpop.f32.mrf.mxu0
          %v5407 = vadd.f32 %v5393, %v5406
          %v5408 = vpop.f32.mrf.mxu0
          %v5409 = vadd.f32 %v5395, %v5408
          %5410 = vdwg.mxu0
          %5411 = vmatpush.bf16.msra.mxu0 %v5230
          %5412 = vmatpush.bf16.msra.mxu0 %v5226
          %5413 = vmatpush.bf16.msra.mxu0 %v5222
          %5414 = vmatpush.bf16.msra.mxu0 %v5218
          %5415 = vmatpush.bf16.msra.mxu0 %v5214
          %5416 = vmatpush.bf16.msra.mxu0 %v5210
          %5417 = vmatpush.bf16.msra.mxu0 %v5206
          %5418 = vmatpush.bf16.msra.mxu0 %v5202
          %5419 = vmatmul.bf16.gmra.mxu0 %v4931
          %v5420 = vpop.f32.mrf.mxu0
          %v5421 = vadd.f32 %v5002, %v5420
          %v5422 = vpop.f32.mrf.mxu0
          %v5423 = vadd.f32 %v5002, %v5422
          %5424 = vdwg.mxu0
          %5425 = vmatpush.bf16.msra.mxu0 %v5262
          %5426 = vmatpush.bf16.msra.mxu0 %v5258
          %5427 = vmatpush.bf16.msra.mxu0 %v5254
          %5428 = vmatpush.bf16.msra.mxu0 %v5250
          %5429 = vmatpush.bf16.msra.mxu0 %v5246
          %5430 = vmatpush.bf16.msra.mxu0 %v5242
          %5431 = vmatpush.bf16.msra.mxu0 %v5238
          %5432 = vmatpush.bf16.msra.mxu0 %v5234
          %5433 = vmatmul.bf16.gmra.mxu0 %v4932
          %v5434 = vpop.f32.mrf.mxu0
          %v5435 = vadd.f32 %v5421, %v5434
          %v5436 = vpop.f32.mrf.mxu0
          %v5437 = vadd.f32 %v5423, %v5436
          %5438 = vdwg.mxu0
          %5439 = vst [vmem:[#allocation12] sm:$0xff] %v5351
          %5440 = vst [vmem:[#allocation12 + $0x8] sm:$0xff] %v5379
          %5441 = vst [vmem:[#allocation12 + $0x10] sm:$0xff] %v5407
          %5442 = vst [vmem:[#allocation12 + $0x18] sm:$0xff] %v5435
          %5443 = vst [vmem:[#allocation12 + $0x20] sm:$0xff] %v5353
          %5444 = vst [vmem:[#allocation12 + $0x28] sm:$0xff] %v5381
          %5445 = vst [vmem:[#allocation12 + $0x30] sm:$0xff] %v5409
          %5446 = vst [vmem:[#allocation12 + $0x38] sm:$0xff] %v5437
        $region132: #{bert_forward_pallas.1} parent=103 // pred_fallthru
          _
        // Predicated region
        $region133: #{bert_forward_pallas.1} parent=103 // pred_check
          %p5447 = pneg %p556
        $region134: #{bert_forward_pallas.1} parent=103 // pred_check_branch
          %5449 = sbr.rel (%p5447) target = $region136
        $region135: #{bert_forward_pallas.1} parent=103 // pred_region
          %5451 = vsyncadd [#allocation5], 0
          %s5452 = sshll.u32 [#allocation12], 4
          %s5453 = int_to_ptr.vmem [resolvable:$true] %s5452
          %s5454 = sshll.u32 %s21, 4
          %s5455 = int_to_ptr.hbm [resolvable:$true] %s5454
          %5460 = dma.vmem_to_hbm [thread:$0]  %s5453, 1024, %s5455, [#allocation5], 512, 512, 32
        $region136: #{bert_forward_pallas.1} parent=103 // pred_fallthru
          _
        // Predicated region
        $region137: #{bert_forward_pallas.1} parent=103 // pred_check
          %p5461 = pneg %p556
        $region138: #{bert_forward_pallas.1} parent=103 // pred_check_branch
          %5463 = sbr.rel (%p5461) target = $region140
        $region139: #{bert_forward_pallas.1} parent=103 // pred_region
          %5465 = dma.done [#allocation5], 1024
        $region140: #{bert_forward_pallas.1} parent=103 // pred_fallthru
          _
      $region104: #{bert_forward_pallas.1} parent=5 // pred_fallthru
        _
      %p5466 = scmp.le.s32.totalorder 2, %s37
      // Predicated region
      $region141: #{bert_forward_pallas.1} parent=5 // pred_check
        %p5467 = pneg %p5466
      $region142: #{bert_forward_pallas.1} parent=5 // pred_check_branch
        %5469 = sbr.rel (%p5467) target = $region144
      $region143: #{bert_forward_pallas.1} parent=5 // pred_region
        %s5470 = ssub.s32 %s37, 2
      $region144: #{bert_forward_pallas.1} parent=5 // pred_fallthru
        _
    $region6: #{bert_forward_pallas.1} parent=1 // loop_footer
      %s41 = sadd.s32 1, %s37
    $region7: #{bert_forward_pallas.1} parent=1 // loop_footer_branch
      %36 = sbr.rel target = $region3
    $region8: #{bert_forward_pallas.1} parent=1 // loop_exit
      _
    %5471 = vsyncpa [#allocation4], 1
    %s5472 = scalar_lea.sflag [#allocation4], 1
    %5473 = vsyncpa %s5472, 1
    %5474 = vsyncpa [#allocation7], 1
    %s5475 = scalar_lea.sflag [#allocation7], 1
    %5476 = vsyncpa %s5475, 1
    %5477 = vsyncpa [#allocation10], 1
    %s5478 = scalar_lea.sflag [#allocation10], 1
    %5479 = vsyncpa %s5478, 1
    %5480 = vsyncpa [#allocation5], 1
    %s5481 = scalar_lea.sflag [#allocation5], 1
    %5482 = vsyncpa %s5481, 1

</llo_original>
